<compile_context>
chip_gen: v7x
topology: tpu7x:2x2x1
jax: 0.10.0
libtpu: 0.0.40
codegen_flags: <defaults>
</compile_context>

<pallas_src>
import functools
import math

import jax
import jax.numpy as jnp
from jax.experimental import pallas as pl
from jax.experimental.pallas import tpu as pltpu


# ----------------------------------------------------------------------------
# Tiled matmul kernels (bias / bias+ReLU / bias+residual+LayerNorm epilogues)
# ----------------------------------------------------------------------------

_VMEM_LIMIT = 48 * 1024 * 1024        # explicit: leaves headroom on v7x's 64 MiB


def _round_up(x, m):
    return ((x + m - 1) // m) * m


def _default_tiles():
    """256-aligned M/N tiles for the 256x256 MXU on v6e/v7x, 128 on v5e."""
    try:
        kind = jax.devices()[0].device_kind.lower()
    except Exception:
        kind = ""
    if "v5" in kind:
        return 128, 128, 512
    return 256, 256, 512


def _mm_bias_kernel(x_ref, w_ref, b_ref, o_ref, acc_ref, *, activation):
    @pl.when(pl.program_id(2) == 0)
    def _init():
        acc_ref[...] = jnp.zeros_like(acc_ref)

    acc_ref[...] += jnp.dot(x_ref[...], w_ref[...],
                            preferred_element_type=jnp.float32)

    @pl.when(pl.program_id(2) == pl.num_programs(2) - 1)
    def _fin():
        y = acc_ref[...] + b_ref[...]
        if activation == "relu":
            y = jnp.maximum(y, 0.0)
        o_ref[...] = y.astype(o_ref.dtype)


def _mm_bias_res_ln_kernel(x_ref, w_ref, b_ref, r_ref, g_ref, be_ref,
                           o_ref, acc_ref, *, eps):
    @pl.when(pl.program_id(2) == 0)
    def _init():
        acc_ref[...] = jnp.zeros_like(acc_ref)

    acc_ref[...] += jnp.dot(x_ref[...], w_ref[...],
                            preferred_element_type=jnp.float32)

    @pl.when(pl.program_id(2) == pl.num_programs(2) - 1)
    def _fin():
        h = acc_ref[...] + b_ref[...] + r_ref[...].astype(jnp.float32)
        mu = jnp.mean(h, axis=-1, keepdims=True)
        var = jnp.mean(jnp.square(h - mu), axis=-1, keepdims=True)
        y = (h - mu) * jax.lax.rsqrt(var + eps)
        o_ref[...] = (y * g_ref[...] + be_ref[...]).astype(o_ref.dtype)


def tiled_linear(x, w, b, *, activation=None, resid=None, gamma=None, beta=None,
                 eps=1e-5, out_dtype=jnp.float32):
    """out = epilogue(x @ w + b).

    Epilogues: identity | ReLU | (residual-add + LayerNorm) when `resid` given.
    x: (M, K), w: (K, N), b: (N,).  MXU inputs are cast to bf16; accumulation
    and all epilogue math are f32.  Inputs are zero-padded to tile multiples.
    """
    M, K = x.shape
    N = w.shape[1]
    fused_ln = resid is not None
    TM, TN, TK = _default_tiles()

    tm = min(TM, _round_up(M, 8))
    m_p = _round_up(M, tm)
    if fused_ln or N <= TN:
        # LayerNorm needs the full feature row in one tile; small N: full dim.
        tn, n_p = N, N
    else:
        tn, n_p = TN, _round_up(N, TN)
    if K <= TK:
        tk, k_p = K, K
    else:
        tk, k_p = TK, _round_up(K, TK)

    x_p = x.astype(jnp.bfloat16)
    w_p = w.astype(jnp.bfloat16)
    if (m_p, k_p) != (M, K):
        x_p = jnp.pad(x_p, ((0, m_p - M), (0, k_p - K)))
    if (k_p, n_p) != (K, N):
        w_p = jnp.pad(w_p, ((0, k_p - K), (0, n_p - N)))
    b_p = b.astype(jnp.float32).reshape(1, N)
    if n_p != N:
        b_p = jnp.pad(b_p, ((0, 0), (0, n_p - N)))

    grid = (m_p // tm, n_p // tn, k_p // tk)
    x_spec = pl.BlockSpec((tm, tk), lambda i, j, k: (i, k))
    w_spec = pl.BlockSpec((tk, tn), lambda i, j, k: (k, j))
    v_spec = pl.BlockSpec((1, tn), lambda i, j, k: (0, j))     # bias/gamma/beta
    o_spec = pl.BlockSpec((tm, tn), lambda i, j, k: (i, j))

    cost = pl.CostEstimate(
        flops=2 * m_p * n_p * k_p,
        transcendentals=0,
        bytes_accessed=2 * (m_p * k_p + k_p * n_p) + 4 * m_p * n_p,
    )
    cparams = pltpu.CompilerParams(
        dimension_semantics=("parallel", "parallel", "arbitrary"),
        vmem_limit_bytes=_VMEM_LIMIT,
    )
    common = dict(
        grid=grid,
        out_specs=o_spec,
        out_shape=jax.ShapeDtypeStruct((m_p, n_p), out_dtype),
        scratch_shapes=[pltpu.VMEM((tm, tn), jnp.float32)],
        compiler_params=cparams,
        cost_estimate=cost,
    )

    if fused_ln:
        r_p = resid.astype(jnp.float32)
        if m_p != M:
            r_p = jnp.pad(r_p, ((0, m_p - M), (0, 0)))
        g_p = gamma.astype(jnp.float32).reshape(1, N)
        be_p = beta.astype(jnp.float32).reshape(1, N)
        out = pl.pallas_call(
            functools.partial(_mm_bias_res_ln_kernel, eps=eps),
            in_specs=[x_spec, w_spec, v_spec, o_spec, v_spec, v_spec],
            **common,
        )(x_p, w_p, b_p, r_p, g_p, be_p)
    else:
        out = pl.pallas_call(
            functools.partial(_mm_bias_kernel, activation=activation),
            in_specs=[x_spec, w_spec, v_spec],
            **common,
        )(x_p, w_p, b_p)

    if (m_p, n_p) != (M, N):
        out = out[:M, :N]
    return out


# ----------------------------------------------------------------------------
# Attention: grid over batch, all heads handled in-kernel (lane-dense E layout)
# ----------------------------------------------------------------------------

def _attn_kernel(q_ref, k_ref, v_ref, o_ref, *, n_head, scale, causal):
    s_len, e = q_ref.shape
    t_len = k_ref.shape[0]
    dh = e // n_head

    if causal:
        rows = jax.lax.broadcasted_iota(jnp.int32, (s_len, t_len), 0)
        cols = jax.lax.broadcasted_iota(jnp.int32, (s_len, t_len), 1)
        neg = jnp.where(cols > rows, jnp.float32(-1e30), jnp.float32(0.0))

    for h in range(n_head):                       # static unroll over heads
        sl = slice(h * dh, (h + 1) * dh)
        q = q_ref[:, sl].astype(jnp.float32)      # (S, Dh)
        k = k_ref[:, sl].astype(jnp.float32)      # (T, Dh)
        v = v_ref[:, sl].astype(jnp.float32)      # (T, Dh)
        s = jax.lax.dot_general(q, k, (((1,), (1,)), ((), ())),
                                preferred_element_type=jnp.float32) * scale
        if causal:
            s = s + neg
        m = jnp.max(s, axis=-1, keepdims=True)
        p = jnp.exp(s - m)
        denom = jnp.sum(p, axis=-1, keepdims=True)
        p = p * pl.reciprocal(denom, approx=True)   # EUP, not a VPU divide
        o = jnp.dot(p, v, preferred_element_type=jnp.float32)
        o_ref[:, sl] = o.astype(o_ref.dtype)


def sdpa(q, k, v, *, n_head, causal):
    """q: (B, S, E), k/v: (B, T, E) -> (B, S, E). Heads are split in-kernel."""
    B, S, E = q.shape
    T = k.shape[1]
    scale = 1.0 / math.sqrt(E // n_head)
    return pl.pallas_call(
        functools.partial(_attn_kernel, n_head=n_head, scale=scale, causal=causal),
        grid=(B,),
        in_specs=[
            pl.BlockSpec((None, S, E), lambda b: (b, 0, 0)),
            pl.BlockSpec((None, T, E), lambda b: (b, 0, 0)),
            pl.BlockSpec((None, T, E), lambda b: (b, 0, 0)),
        ],
        out_specs=pl.BlockSpec((None, S, E), lambda b: (b, 0, 0)),
        out_shape=jax.ShapeDtypeStruct((B, S, E), q.dtype),
        compiler_params=pltpu.CompilerParams(
            dimension_semantics=("parallel",),
            vmem_limit_bytes=_VMEM_LIMIT,
        ),
    )(q, k, v)


# ----------------------------------------------------------------------------
# Decoder layer / full forward (glue in plain JAX; all heavy math in Pallas)
# ----------------------------------------------------------------------------

def decoder_layer(tgt, memory, p, n_head):
    """nn.TransformerDecoderLayer: post-norm, ReLU, dropout = eval identity."""
    B, S, E = tgt.shape
    T = memory.shape[1]
    tgt2 = tgt.reshape(B * S, E)
    mem2 = memory.reshape(B * T, E)

    # self-attention (causal), fused QKV projection, fused out-proj+resid+LN
    sa = p["self_attn"]
    qkv = tiled_linear(tgt2, sa["w_qkv"], sa["b_qkv"], out_dtype=jnp.bfloat16)
    q = qkv[:, :E].reshape(B, S, E)
    k = qkv[:, E:2 * E].reshape(B, S, E)
    v = qkv[:, 2 * E:].reshape(B, S, E)
    attn = sdpa(q, k, v, n_head=n_head, causal=True).reshape(B * S, E)
    x = tiled_linear(attn, sa["wo"], sa["bo"],
                     resid=tgt2, gamma=p["ln1_g"], beta=p["ln1_b"])

    # cross-attention over memory, fused KV projection, fused out-proj+resid+LN
    ca = p["cross_attn"]
    q = tiled_linear(x, ca["wq"], ca["bq"], out_dtype=jnp.bfloat16).reshape(B, S, E)
    kv = tiled_linear(mem2, ca["w_kv"], ca["b_kv"], out_dtype=jnp.bfloat16)
    k = kv[:, :E].reshape(B, T, E)
    v = kv[:, E:].reshape(B, T, E)
    attn = sdpa(q, k, v, n_head=n_head, causal=False).reshape(B * S, E)
    x2 = tiled_linear(attn, ca["wo"], ca["bo"],
                      resid=x, gamma=p["ln2_g"], beta=p["ln2_b"])

    # feed-forward: linear+ReLU, then linear with fused residual + LayerNorm
    h = tiled_linear(x2, p["w1"], p["b1"], activation="relu",
                     out_dtype=jnp.bfloat16)
    x3 = tiled_linear(h, p["w2"], p["b2"],
                      resid=x2, gamma=p["ln3_g"], beta=p["ln3_b"])
    return x3.reshape(B, S, E)


def transformer_decoder_forward(labels, inputs, params, *, n_head):
    """labels: (B, S, E) targets, inputs: (B, T, E) memory -> (B, S, vocab)."""
    B, S, E = labels.shape
    # generate_square_subsequent_mask is realized in-kernel (causal=True);
    # dropout is the eval-mode identity.
    # TODO(synk): tgt_key_padding_mask (pad_id) path not implemented; matches
    # the default pad_id=None call.
    x = labels.astype(jnp.float32)
    for layer_p in params["layers"]:
        x = decoder_layer(x, inputs, layer_p, n_head)
    logits = tiled_linear(x.reshape(B * S, E), params["fc_w"], params["fc_b"])
    return logits.reshape(B, S, -1)


# ----------------------------------------------------------------------------
# Parameter setup (weights stored bf16 for the MXU; LN/bias params f32)
# ----------------------------------------------------------------------------

def init_params(key, vocab_size, n_layer, d_model, ff_dim):
    def dense(k, shape, scale=0.02):
        return (scale * jax.random.normal(k, shape, jnp.float32)).astype(jnp.bfloat16)

    keys = jax.random.split(key, n_layer + 1)
    layers = []
    E = d_model
    for li in range(n_layer):
        lk = jax.random.split(keys[li], 10)
        layers.append({
            "self_attn": {
                "w_qkv": jnp.concatenate(
                    [dense(lk[0], (E, E)), dense(lk[1], (E, E)), dense(lk[2], (E, E))],
                    axis=1),
                "b_qkv": jnp.zeros((3 * E,), jnp.float32),
                "wo": dense(lk[3], (E, E)),
                "bo": jnp.zeros((E,), jnp.float32),
            },
            "cross_attn": {
                "wq": dense(lk[4], (E, E)),
                "bq": jnp.zeros((E,), jnp.float32),
                "w_kv": jnp.concatenate(
                    [dense(lk[5], (E, E)), dense(lk[6], (E, E))], axis=1),
                "b_kv": jnp.zeros((2 * E,), jnp.float32),
                "wo": dense(lk[7], (E, E)),
                "bo": jnp.zeros((E,), jnp.float32),
            },
            "w1": dense(lk[8], (E, ff_dim)), "b1": jnp.zeros((ff_dim,), jnp.float32),
            "w2": dense(lk[9], (ff_dim, E)), "b2": jnp.zeros((E,), jnp.float32),
            "ln1_g": jnp.ones((E,), jnp.float32), "ln1_b": jnp.zeros((E,), jnp.float32),
            "ln2_g": jnp.ones((E,), jnp.float32), "ln2_b": jnp.zeros((E,), jnp.float32),
            "ln3_g": jnp.ones((E,), jnp.float32), "ln3_b": jnp.zeros((E,), jnp.float32),
        })
    fk = keys[-1]
    return {
        "layers": layers,
        "fc_w": dense(fk, (d_model, vocab_size)),
        "fc_b": jnp.zeros((vocab_size,), jnp.float32),
    }


if __name__ == "__main__":
    # Small shapes consistent with the module's forward:
    #   labels (B, S, d_model), inputs/memory (B, T, d_model)
    B, S, T = 2, 8, 10
    vocab_size, n_layer, d_model, n_head, ff_dim = 16, 2, 32, 4, 64

    key = jax.random.PRNGKey(0)
    k_lab, k_in, k_par = jax.random.split(key, 3)
    labels = jax.random.normal(k_lab, (B, S, d_model), jnp.float32)
    inputs = jax.random.normal(k_in, (B, T, d_model), jnp.float32)
    params = init_params(k_par, vocab_size, n_layer, d_model, ff_dim)

    fwd = jax.jit(functools.partial(transformer_decoder_forward, n_head=n_head))
    out = fwd(labels, inputs, params)
    out = jax.block_until_ready(out)

    assert out.shape == (B, S, vocab_size), out.shape
    assert out.dtype == jnp.float32
    assert bool(jnp.all(jnp.isfinite(out)))
    print("KERNEL_OK")
</pallas_src>

<mosaic_0001>
module attributes {stable_mosaic.version = 11 : i64} {
  func.func @_attn_kernel(%arg0: i32, %arg1: memref<1x8x32xbf16, #tpu.memory_space<vmem>>, %arg2: memref<1x8x32xbf16, #tpu.memory_space<vmem>>, %arg3: memref<1x8x32xbf16, #tpu.memory_space<vmem>>, %arg4: memref<1x8x32xbf16, #tpu.memory_space<vmem>>) attributes {dimension_semantics = [#tpu.dimension_semantics<parallel>], iteration_bounds = array<i64: 2>, scalar_prefetch = 0 : i64, scratch_operands = 0 : i64, tpu.core_type = #tpu.core_type<tc>, window_params = [{transform_indices = @transform_0, window_bounds = array<i64: 1, 8, 32>}, {transform_indices = @transform_1, window_bounds = array<i64: 1, 8, 32>}, {transform_indices = @transform_2, window_bounds = array<i64: 1, 8, 32>}, {transform_indices = @transform_3, window_bounds = array<i64: 1, 8, 32>}]} {
    %0 = tpu.iota {dimensions = array<i32: 0>} : vector<8x8xi32>
    %1 = tpu.iota {dimensions = array<i32: 1>} : vector<8x8xi32>
    %2 = arith.cmpi sgt, %1, %0 : vector<8x8xi32>
    %cst = arith.constant -1.000000e+30 : f32
    %cst_0 = arith.constant 0.000000e+00 : f32
    %3 = vector.broadcast %cst : f32 to vector<8x8xf32>
    %4 = vector.broadcast %cst_0 : f32 to vector<8x8xf32>
    %5 = arith.select %2, %3, %4 : vector<8x8xi1>, vector<8x8xf32>
    %c0 = arith.constant 0 : index
    %c0_1 = arith.constant 0 : index
    %c0_2 = arith.constant 0 : index
    %6 = vector.load %arg1[%c0, %c0_1, %c0_2] : memref<1x8x32xbf16, #tpu.memory_space<vmem>>, vector<1x8x8xbf16>
    %7 = vector.shape_cast %6 : vector<1x8x8xbf16> to vector<8x8xbf16>
    %8 = arith.extf %7 : vector<8x8xbf16> to vector<8x8xf32>
    %c0_3 = arith.constant 0 : index
    %c0_4 = arith.constant 0 : index
    %c0_5 = arith.constant 0 : index
    %9 = vector.load %arg2[%c0_3, %c0_4, %c0_5] : memref<1x8x32xbf16, #tpu.memory_space<vmem>>, vector<1x8x8xbf16>
    %10 = vector.shape_cast %9 : vector<1x8x8xbf16> to vector<8x8xbf16>
    %11 = arith.extf %10 : vector<8x8xbf16> to vector<8x8xf32>
    %c0_6 = arith.constant 0 : index
    %c0_7 = arith.constant 0 : index
    %c0_8 = arith.constant 0 : index
    %12 = vector.load %arg3[%c0_6, %c0_7, %c0_8] : memref<1x8x32xbf16, #tpu.memory_space<vmem>>, vector<1x8x8xbf16>
    %13 = vector.shape_cast %12 : vector<1x8x8xbf16> to vector<8x8xbf16>
    %14 = arith.extf %13 : vector<8x8xbf16> to vector<8x8xf32>
    %cst_9 = arith.constant dense<0.000000e+00> : vector<8x8xf32>
    %15 = tpu.matmul %8, %11, %cst_9 {dimension_numbers = #tpu.dot_dimension_numbers<[1], [1], [0], [0], [0, 0, 1, 0], [], []>} : vector<8x8xf32>, vector<8x8xf32>, vector<8x8xf32> -> vector<8x8xf32>
    %cst_10 = arith.constant 0.353553385 : f32
    %16 = vector.broadcast %cst_10 : f32 to vector<8x8xf32>
    %17 = arith.mulf %15, %16 : vector<8x8xf32>
    %18 = arith.addf %17, %5 : vector<8x8xf32>
    %cst_11 = arith.constant dense<0xFF800000> : vector<8xf32>
    %19 = vector.multi_reduction <maximumf>, %18, %cst_11 [1] : vector<8x8xf32> to vector<8xf32>
    %20 = vector.shape_cast %19 : vector<8xf32> to vector<8x1xf32>
    %21 = vector.broadcast %20 : vector<8x1xf32> to vector<8x8xf32>
    %22 = arith.subf %18, %21 : vector<8x8xf32>
    %23 = math.exp %22 : vector<8x8xf32>
    %cst_12 = arith.constant dense<0.000000e+00> : vector<8xf32>
    %24 = vector.multi_reduction <add>, %23, %cst_12 [1] : vector<8x8xf32> to vector<8xf32>
    %25 = vector.shape_cast %24 : vector<8xf32> to vector<8x1xf32>
    %26 = tpu.reciprocal %25 {approx = true} : vector<8x1xf32> -> vector<8x1xf32>
    %27 = vector.broadcast %26 : vector<8x1xf32> to vector<8x8xf32>
    %28 = arith.mulf %23, %27 : vector<8x8xf32>
    %cst_13 = arith.constant dense<0.000000e+00> : vector<8x8xf32>
    %29 = tpu.matmul %28, %14, %cst_13 {dimension_numbers = #tpu.dot_dimension_numbers<[1], [0], [0], [1], [0, 0, 1, 1], [], []>} : vector<8x8xf32>, vector<8x8xf32>, vector<8x8xf32> -> vector<8x8xf32>
    %30 = arith.truncf %29 : vector<8x8xf32> to vector<8x8xbf16>
    %c0_14 = arith.constant 0 : index
    %c0_15 = arith.constant 0 : index
    %c0_16 = arith.constant 0 : index
    %31 = vector.load %arg4[%c0_14, %c0_15, %c0_16] : memref<1x8x32xbf16, #tpu.memory_space<vmem>>, vector<1x8x8xbf16>
    %32 = vector.shape_cast %31 : vector<1x8x8xbf16> to vector<8x8xbf16>
    %33 = vector.shape_cast %30 : vector<8x8xbf16> to vector<1x8x8xbf16>
    tpu.vector_store %arg4[%c0_14, %c0_15, %c0_16], %33 {strides = array<i32>} : memref<1x8x32xbf16, #tpu.memory_space<vmem>>, vector<1x8x8xbf16>,
    %c0_17 = arith.constant 0 : index
    %c0_18 = arith.constant 0 : index
    %c8 = arith.constant 8 : index
    %34 = vector.load %arg1[%c0_17, %c0_18, %c8] : memref<1x8x32xbf16, #tpu.memory_space<vmem>>, vector<1x8x8xbf16>
    %35 = vector.shape_cast %34 : vector<1x8x8xbf16> to vector<8x8xbf16>
    %36 = arith.extf %35 : vector<8x8xbf16> to vector<8x8xf32>
    %c0_19 = arith.constant 0 : index
    %c0_20 = arith.constant 0 : index
    %c8_21 = arith.constant 8 : index
    %37 = vector.load %arg2[%c0_19, %c0_20, %c8_21] : memref<1x8x32xbf16, #tpu.memory_space<vmem>>, vector<1x8x8xbf16>
    %38 = vector.shape_cast %37 : vector<1x8x8xbf16> to vector<8x8xbf16>
    %39 = arith.extf %38 : vector<8x8xbf16> to vector<8x8xf32>
    %c0_22 = arith.constant 0 : index
    %c0_23 = arith.constant 0 : index
    %c8_24 = arith.constant 8 : index
    %40 = vector.load %arg3[%c0_22, %c0_23, %c8_24] : memref<1x8x32xbf16, #tpu.memory_space<vmem>>, vector<1x8x8xbf16>
    %41 = vector.shape_cast %40 : vector<1x8x8xbf16> to vector<8x8xbf16>
    %42 = arith.extf %41 : vector<8x8xbf16> to vector<8x8xf32>
    %cst_25 = arith.constant dense<0.000000e+00> : vector<8x8xf32>
    %43 = tpu.matmul %36, %39, %cst_25 {dimension_numbers = #tpu.dot_dimension_numbers<[1], [1], [0], [0], [0, 0, 1, 0], [], []>} : vector<8x8xf32>, vector<8x8xf32>, vector<8x8xf32> -> vector<8x8xf32>
    %cst_26 = arith.constant 0.353553385 : f32
    %44 = vector.broadcast %cst_26 : f32 to vector<8x8xf32>
    %45 = arith.mulf %43, %44 : vector<8x8xf32>
    %46 = arith.addf %45, %5 : vector<8x8xf32>
    %cst_27 = arith.constant dense<0xFF800000> : vector<8xf32>
    %47 = vector.multi_reduction <maximumf>, %46, %cst_27 [1] : vector<8x8xf32> to vector<8xf32>
    %48 = vector.shape_cast %47 : vector<8xf32> to vector<8x1xf32>
    %49 = vector.broadcast %48 : vector<8x1xf32> to vector<8x8xf32>
    %50 = arith.subf %46, %49 : vector<8x8xf32>
    %51 = math.exp %50 : vector<8x8xf32>
    %cst_28 = arith.constant dense<0.000000e+00> : vector<8xf32>
    %52 = vector.multi_reduction <add>, %51, %cst_28 [1] : vector<8x8xf32> to vector<8xf32>
    %53 = vector.shape_cast %52 : vector<8xf32> to vector<8x1xf32>
    %54 = tpu.reciprocal %53 {approx = true} : vector<8x1xf32> -> vector<8x1xf32>
    %55 = vector.broadcast %54 : vector<8x1xf32> to vector<8x8xf32>
    %56 = arith.mulf %51, %55 : vector<8x8xf32>
    %cst_29 = arith.constant dense<0.000000e+00> : vector<8x8xf32>
    %57 = tpu.matmul %56, %42, %cst_29 {dimension_numbers = #tpu.dot_dimension_numbers<[1], [0], [0], [1], [0, 0, 1, 1], [], []>} : vector<8x8xf32>, vector<8x8xf32>, vector<8x8xf32> -> vector<8x8xf32>
    %58 = arith.truncf %57 : vector<8x8xf32> to vector<8x8xbf16>
    %c0_30 = arith.constant 0 : index
    %c0_31 = arith.constant 0 : index
    %c8_32 = arith.constant 8 : index
    %59 = vector.load %arg4[%c0_30, %c0_31, %c8_32] : memref<1x8x32xbf16, #tpu.memory_space<vmem>>, vector<1x8x8xbf16>
    %60 = vector.shape_cast %59 : vector<1x8x8xbf16> to vector<8x8xbf16>
    %61 = vector.shape_cast %58 : vector<8x8xbf16> to vector<1x8x8xbf16>
    tpu.vector_store %arg4[%c0_30, %c0_31, %c8_32], %61 {strides = array<i32>} : memref<1x8x32xbf16, #tpu.memory_space<vmem>>, vector<1x8x8xbf16>,
    %c0_33 = arith.constant 0 : index
    %c0_34 = arith.constant 0 : index
    %c16 = arith.constant 16 : index
    %62 = vector.load %arg1[%c0_33, %c0_34, %c16] : memref<1x8x32xbf16, #tpu.memory_space<vmem>>, vector<1x8x8xbf16>
    %63 = vector.shape_cast %62 : vector<1x8x8xbf16> to vector<8x8xbf16>
    %64 = arith.extf %63 : vector<8x8xbf16> to vector<8x8xf32>
    %c0_35 = arith.constant 0 : index
    %c0_36 = arith.constant 0 : index
    %c16_37 = arith.constant 16 : index
    %65 = vector.load %arg2[%c0_35, %c0_36, %c16_37] : memref<1x8x32xbf16, #tpu.memory_space<vmem>>, vector<1x8x8xbf16>
    %66 = vector.shape_cast %65 : vector<1x8x8xbf16> to vector<8x8xbf16>
    %67 = arith.extf %66 : vector<8x8xbf16> to vector<8x8xf32>
    %c0_38 = arith.constant 0 : index
    %c0_39 = arith.constant 0 : index
    %c16_40 = arith.constant 16 : index
    %68 = vector.load %arg3[%c0_38, %c0_39, %c16_40] : memref<1x8x32xbf16, #tpu.memory_space<vmem>>, vector<1x8x8xbf16>
    %69 = vector.shape_cast %68 : vector<1x8x8xbf16> to vector<8x8xbf16>
    %70 = arith.extf %69 : vector<8x8xbf16> to vector<8x8xf32>
    %cst_41 = arith.constant dense<0.000000e+00> : vector<8x8xf32>
    %71 = tpu.matmul %64, %67, %cst_41 {dimension_numbers = #tpu.dot_dimension_numbers<[1], [1], [0], [0], [0, 0, 1, 0], [], []>} : vector<8x8xf32>, vector<8x8xf32>, vector<8x8xf32> -> vector<8x8xf32>
    %cst_42 = arith.constant 0.353553385 : f32
    %72 = vector.broadcast %cst_42 : f32 to vector<8x8xf32>
    %73 = arith.mulf %71, %72 : vector<8x8xf32>
    %74 = arith.addf %73, %5 : vector<8x8xf32>
    %cst_43 = arith.constant dense<0xFF800000> : vector<8xf32>
    %75 = vector.multi_reduction <maximumf>, %74, %cst_43 [1] : vector<8x8xf32> to vector<8xf32>
    %76 = vector.shape_cast %75 : vector<8xf32> to vector<8x1xf32>
    %77 = vector.broadcast %76 : vector<8x1xf32> to vector<8x8xf32>
    %78 = arith.subf %74, %77 : vector<8x8xf32>
    %79 = math.exp %78 : vector<8x8xf32>
    %cst_44 = arith.constant dense<0.000000e+00> : vector<8xf32>
    %80 = vector.multi_reduction <add>, %79, %cst_44 [1] : vector<8x8xf32> to vector<8xf32>
    %81 = vector.shape_cast %80 : vector<8xf32> to vector<8x1xf32>
    %82 = tpu.reciprocal %81 {approx = true} : vector<8x1xf32> -> vector<8x1xf32>
    %83 = vector.broadcast %82 : vector<8x1xf32> to vector<8x8xf32>
    %84 = arith.mulf %79, %83 : vector<8x8xf32>
    %cst_45 = arith.constant dense<0.000000e+00> : vector<8x8xf32>
    %85 = tpu.matmul %84, %70, %cst_45 {dimension_numbers = #tpu.dot_dimension_numbers<[1], [0], [0], [1], [0, 0, 1, 1], [], []>} : vector<8x8xf32>, vector<8x8xf32>, vector<8x8xf32> -> vector<8x8xf32>
    %86 = arith.truncf %85 : vector<8x8xf32> to vector<8x8xbf16>
    %c0_46 = arith.constant 0 : index
    %c0_47 = arith.constant 0 : index
    %c16_48 = arith.constant 16 : index
    %87 = vector.load %arg4[%c0_46, %c0_47, %c16_48] : memref<1x8x32xbf16, #tpu.memory_space<vmem>>, vector<1x8x8xbf16>
    %88 = vector.shape_cast %87 : vector<1x8x8xbf16> to vector<8x8xbf16>
    %89 = vector.shape_cast %86 : vector<8x8xbf16> to vector<1x8x8xbf16>
    tpu.vector_store %arg4[%c0_46, %c0_47, %c16_48], %89 {strides = array<i32>} : memref<1x8x32xbf16, #tpu.memory_space<vmem>>, vector<1x8x8xbf16>,
    %c0_49 = arith.constant 0 : index
    %c0_50 = arith.constant 0 : index
    %c24 = arith.constant 24 : index
    %90 = vector.load %arg1[%c0_49, %c0_50, %c24] : memref<1x8x32xbf16, #tpu.memory_space<vmem>>, vector<1x8x8xbf16>
    %91 = vector.shape_cast %90 : vector<1x8x8xbf16> to vector<8x8xbf16>
    %92 = arith.extf %91 : vector<8x8xbf16> to vector<8x8xf32>
    %c0_51 = arith.constant 0 : index
    %c0_52 = arith.constant 0 : index
    %c24_53 = arith.constant 24 : index
    %93 = vector.load %arg2[%c0_51, %c0_52, %c24_53] : memref<1x8x32xbf16, #tpu.memory_space<vmem>>, vector<1x8x8xbf16>
    %94 = vector.shape_cast %93 : vector<1x8x8xbf16> to vector<8x8xbf16>
    %95 = arith.extf %94 : vector<8x8xbf16> to vector<8x8xf32>
    %c0_54 = arith.constant 0 : index
    %c0_55 = arith.constant 0 : index
    %c24_56 = arith.constant 24 : index
    %96 = vector.load %arg3[%c0_54, %c0_55, %c24_56] : memref<1x8x32xbf16, #tpu.memory_space<vmem>>, vector<1x8x8xbf16>
    %97 = vector.shape_cast %96 : vector<1x8x8xbf16> to vector<8x8xbf16>
    %98 = arith.extf %97 : vector<8x8xbf16> to vector<8x8xf32>
    %cst_57 = arith.constant dense<0.000000e+00> : vector<8x8xf32>
    %99 = tpu.matmul %92, %95, %cst_57 {dimension_numbers = #tpu.dot_dimension_numbers<[1], [1], [0], [0], [0, 0, 1, 0], [], []>} : vector<8x8xf32>, vector<8x8xf32>, vector<8x8xf32> -> vector<8x8xf32>
    %cst_58 = arith.constant 0.353553385 : f32
    %100 = vector.broadcast %cst_58 : f32 to vector<8x8xf32>
    %101 = arith.mulf %99, %100 : vector<8x8xf32>
    %102 = arith.addf %101, %5 : vector<8x8xf32>
    %cst_59 = arith.constant dense<0xFF800000> : vector<8xf32>
    %103 = vector.multi_reduction <maximumf>, %102, %cst_59 [1] : vector<8x8xf32> to vector<8xf32>
    %104 = vector.shape_cast %103 : vector<8xf32> to vector<8x1xf32>
    %105 = vector.broadcast %104 : vector<8x1xf32> to vector<8x8xf32>
    %106 = arith.subf %102, %105 : vector<8x8xf32>
    %107 = math.exp %106 : vector<8x8xf32>
    %cst_60 = arith.constant dense<0.000000e+00> : vector<8xf32>
    %108 = vector.multi_reduction <add>, %107, %cst_60 [1] : vector<8x8xf32> to vector<8xf32>
    %109 = vector.shape_cast %108 : vector<8xf32> to vector<8x1xf32>
    %110 = tpu.reciprocal %109 {approx = true} : vector<8x1xf32> -> vector<8x1xf32>
    %111 = vector.broadcast %110 : vector<8x1xf32> to vector<8x8xf32>
    %112 = arith.mulf %107, %111 : vector<8x8xf32>
    %cst_61 = arith.constant dense<0.000000e+00> : vector<8x8xf32>
    %113 = tpu.matmul %112, %98, %cst_61 {dimension_numbers = #tpu.dot_dimension_numbers<[1], [0], [0], [1], [0, 0, 1, 1], [], []>} : vector<8x8xf32>, vector<8x8xf32>, vector<8x8xf32> -> vector<8x8xf32>
    %114 = arith.truncf %113 : vector<8x8xf32> to vector<8x8xbf16>
    %c0_62 = arith.constant 0 : index
    %c0_63 = arith.constant 0 : index
    %c24_64 = arith.constant 24 : index
    %115 = vector.load %arg4[%c0_62, %c0_63, %c24_64] : memref<1x8x32xbf16, #tpu.memory_space<vmem>>, vector<1x8x8xbf16>
    %116 = vector.shape_cast %115 : vector<1x8x8xbf16> to vector<8x8xbf16>
    %117 = vector.shape_cast %114 : vector<8x8xbf16> to vector<1x8x8xbf16>
    tpu.vector_store %arg4[%c0_62, %c0_63, %c24_64], %117 {strides = array<i32>} : memref<1x8x32xbf16, #tpu.memory_space<vmem>>, vector<1x8x8xbf16>,
    return
  }
  func.func @transform_0(%arg0: i32) -> (i32, i32, i32) {
    %c0_i32 = arith.constant 0 : i32
    %c0_i32_0 = arith.constant 0 : i32
    %c0_i32_1 = arith.constant 0 : i32
    return %arg0, %c0_i32, %c0_i32_0 : i32, i32, i32
  }
  func.func @transform_1(%arg0: i32) -> (i32, i32, i32) {
    %c0_i32 = arith.constant 0 : i32
    %c0_i32_0 = arith.constant 0 : i32
    %c0_i32_1 = arith.constant 0 : i32
    return %arg0, %c0_i32, %c0_i32_0 : i32, i32, i32
  }
  func.func @transform_2(%arg0: i32) -> (i32, i32, i32) {
    %c0_i32 = arith.constant 0 : i32
    %c0_i32_0 = arith.constant 0 : i32
    %c0_i32_1 = arith.constant 0 : i32
    return %arg0, %c0_i32, %c0_i32_0 : i32, i32, i32
  }
  func.func @transform_3(%arg0: i32) -> (i32, i32, i32) {
    %c0_i32 = arith.constant 0 : i32
    %c0_i32_0 = arith.constant 0 : i32
    %c0_i32_1 = arith.constant 0 : i32
    return %arg0, %c0_i32, %c0_i32_0 : i32, i32, i32
  }
}

module attributes {stable_mosaic.version = 11 : i64} {
  func.func @_mm_bias_kernel(%arg0: i32, %arg1: i32, %arg2: i32, %arg3: memref<16x32xbf16, #tpu.memory_space<vmem>>, %arg4: memref<32x96xbf16, #tpu.memory_space<vmem>>, %arg5: memref<1x96xf32, #tpu.memory_space<vmem>>, %arg6: memref<16x96xbf16, #tpu.memory_space<vmem>>, %arg7: memref<16x96xf32, #tpu.memory_space<vmem>>) attributes {dimension_semantics = [#tpu.dimension_semantics<parallel>, #tpu.dimension_semantics<parallel>, #tpu.dimension_semantics<arbitrary>], iteration_bounds = array<i64: 1, 1, 1>, scalar_prefetch = 0 : i64, scratch_operands = 1 : i64, tpu.core_type = #tpu.core_type<tc>, window_params = [{transform_indices = @transform_0, window_bounds = array<i64: 16, 32>}, {transform_indices = @transform_1, window_bounds = array<i64: 32, 96>}, {transform_indices = @transform_2, window_bounds = array<i64: 1, 96>}, {transform_indices = @transform_3, window_bounds = array<i64: 16, 96>}]} {
    %c0_i32 = arith.constant 0 : i32
    %0 = arith.cmpi eq, %arg2, %c0_i32 : i32
    %1 = arith.extui %0 : i1 to i32
    %c0_i32_0 = arith.constant 0 : i32
    %2 = arith.cmpi ne, %1, %c0_i32_0 : i32
    scf.if %2 {
      %cst_10 = arith.constant 0.000000e+00 : f32
      %12 = vector.broadcast %cst_10 : f32 to vector<16x96xf32>
      %c0_11 = arith.constant 0 : index
      %c0_12 = arith.constant 0 : index
      %13 = vector.load %arg7[%c0_11, %c0_12] : memref<16x96xf32, #tpu.memory_space<vmem>>, vector<16x96xf32>
      tpu.vector_store %arg7[%c0_11, %c0_12], %12 {strides = array<i32>} : memref<16x96xf32, #tpu.memory_space<vmem>>, vector<16x96xf32>,
    } else {
    }
    %c0 = arith.constant 0 : index
    %c0_1 = arith.constant 0 : index
    %3 = vector.load %arg7[%c0, %c0_1] : memref<16x96xf32, #tpu.memory_space<vmem>>, vector<16x96xf32>
    %c0_2 = arith.constant 0 : index
    %c0_3 = arith.constant 0 : index
    %4 = vector.load %arg3[%c0_2, %c0_3] : memref<16x32xbf16, #tpu.memory_space<vmem>>, vector<16x32xbf16>
    %c0_4 = arith.constant 0 : index
    %c0_5 = arith.constant 0 : index
    %5 = vector.load %arg4[%c0_4, %c0_5] : memref<32x96xbf16, #tpu.memory_space<vmem>>, vector<32x96xbf16>
    %cst = arith.constant dense<0.000000e+00> : vector<16x96xf32>
    %6 = tpu.matmul %4, %5, %cst {dimension_numbers = #tpu.dot_dimension_numbers<[1], [0], [0], [1], [0, 0, 1, 1], [], []>} : vector<16x32xbf16>, vector<32x96xbf16>, vector<16x96xf32> -> vector<16x96xf32>
    %7 = arith.addf %3, %6 : vector<16x96xf32>
    %c0_6 = arith.constant 0 : index
    %c0_7 = arith.constant 0 : index
    %8 = vector.load %arg7[%c0_6, %c0_7] : memref<16x96xf32, #tpu.memory_space<vmem>>, vector<16x96xf32>
    tpu.vector_store %arg7[%c0_6, %c0_7], %7 {strides = array<i32>} : memref<16x96xf32, #tpu.memory_space<vmem>>, vector<16x96xf32>,
    %c0_i32_8 = arith.constant 0 : i32
    %9 = arith.cmpi eq, %arg2, %c0_i32_8 : i32
    %10 = arith.extui %9 : i1 to i32
    %c0_i32_9 = arith.constant 0 : i32
    %11 = arith.cmpi ne, %10, %c0_i32_9 : i32
    scf.if %11 {
      %c0_10 = arith.constant 0 : index
      %c0_11 = arith.constant 0 : index
      %12 = vector.load %arg7[%c0_10, %c0_11] : memref<16x96xf32, #tpu.memory_space<vmem>>, vector<16x96xf32>
      %c0_12 = arith.constant 0 : index
      %c0_13 = arith.constant 0 : index
      %13 = vector.load %arg5[%c0_12, %c0_13] : memref<1x96xf32, #tpu.memory_space<vmem>>, vector<1x96xf32>
      %14 = vector.broadcast %13 : vector<1x96xf32> to vector<16x96xf32>
      %15 = arith.addf %12, %14 : vector<16x96xf32>
      %16 = arith.truncf %15 : vector<16x96xf32> to vector<16x96xbf16>
      %c0_14 = arith.constant 0 : index
      %c0_15 = arith.constant 0 : index
      %17 = vector.load %arg6[%c0_14, %c0_15] : memref<16x96xbf16, #tpu.memory_space<vmem>>, vector<16x96xbf16>
      tpu.vector_store %arg6[%c0_14, %c0_15], %16 {strides = array<i32>} : memref<16x96xbf16, #tpu.memory_space<vmem>>, vector<16x96xbf16>,
    } else {
    }
    return
  }
  func.func @transform_0(%arg0: i32, %arg1: i32, %arg2: i32) -> (i32, i32) {
    %c0_i32 = arith.constant 0 : i32
    return %arg0, %arg2 : i32, i32
  }
  func.func @transform_1(%arg0: i32, %arg1: i32, %arg2: i32) -> (i32, i32) {
    %c0_i32 = arith.constant 0 : i32
    return %arg2, %arg1 : i32, i32
  }
  func.func @transform_2(%arg0: i32, %arg1: i32, %arg2: i32) -> (i32, i32) {
    %c0_i32 = arith.constant 0 : i32
    %c0_i32_0 = arith.constant 0 : i32
    return %c0_i32, %arg1 : i32, i32
  }
  func.func @transform_3(%arg0: i32, %arg1: i32, %arg2: i32) -> (i32, i32) {
    %c0_i32 = arith.constant 0 : i32
    return %arg0, %arg1 : i32, i32
  }
}

module attributes {stable_mosaic.version = 11 : i64} {
  func.func @_mm_bias_res_ln_kernel(%arg0: i32, %arg1: i32, %arg2: i32, %arg3: memref<16x32xbf16, #tpu.memory_space<vmem>>, %arg4: memref<32x32xbf16, #tpu.memory_space<vmem>>, %arg5: memref<1x32xf32, #tpu.memory_space<vmem>>, %arg6: memref<16x32xf32, #tpu.memory_space<vmem>>, %arg7: memref<1x32xf32, #tpu.memory_space<vmem>>, %arg8: memref<1x32xf32, #tpu.memory_space<vmem>>, %arg9: memref<16x32xf32, #tpu.memory_space<vmem>>, %arg10: memref<16x32xf32, #tpu.memory_space<vmem>>) attributes {dimension_semantics = [#tpu.dimension_semantics<parallel>, #tpu.dimension_semantics<parallel>, #tpu.dimension_semantics<arbitrary>], iteration_bounds = array<i64: 1, 1, 1>, scalar_prefetch = 0 : i64, scratch_operands = 1 : i64, tpu.core_type = #tpu.core_type<tc>, window_params = [{transform_indices = @transform_0, window_bounds = array<i64: 16, 32>}, {transform_indices = @transform_1, window_bounds = array<i64: 32, 32>}, {transform_indices = @transform_2, window_bounds = array<i64: 1, 32>}, {transform_indices = @transform_3, window_bounds = array<i64: 16, 32>}, {transform_indices = @transform_4, window_bounds = array<i64: 1, 32>}, {transform_indices = @transform_5, window_bounds = array<i64: 1, 32>}, {transform_indices = @transform_6, window_bounds = array<i64: 16, 32>}]} {
    %c0_i32 = arith.constant 0 : i32
    %0 = arith.cmpi eq, %arg2, %c0_i32 : i32
    %1 = arith.extui %0 : i1 to i32
    %c0_i32_0 = arith.constant 0 : i32
    %2 = arith.cmpi ne, %1, %c0_i32_0 : i32
    scf.if %2 {
      %cst_10 = arith.constant 0.000000e+00 : f32
      %12 = vector.broadcast %cst_10 : f32 to vector<16x32xf32>
      %c0_11 = arith.constant 0 : index
      %c0_12 = arith.constant 0 : index
      %13 = vector.load %arg10[%c0_11, %c0_12] : memref<16x32xf32, #tpu.memory_space<vmem>>, vector<16x32xf32>
      tpu.vector_store %arg10[%c0_11, %c0_12], %12 {strides = array<i32>} : memref<16x32xf32, #tpu.memory_space<vmem>>, vector<16x32xf32>,
    } else {
    }
    %c0 = arith.constant 0 : index
    %c0_1 = arith.constant 0 : index
    %3 = vector.load %arg10[%c0, %c0_1] : memref<16x32xf32, #tpu.memory_space<vmem>>, vector<16x32xf32>
    %c0_2 = arith.constant 0 : index
    %c0_3 = arith.constant 0 : index
    %4 = vector.load %arg3[%c0_2, %c0_3] : memref<16x32xbf16, #tpu.memory_space<vmem>>, vector<16x32xbf16>
    %c0_4 = arith.constant 0 : index
    %c0_5 = arith.constant 0 : index
    %5 = vector.load %arg4[%c0_4, %c0_5] : memref<32x32xbf16, #tpu.memory_space<vmem>>, vector<32x32xbf16>
    %cst = arith.constant dense<0.000000e+00> : vector<16x32xf32>
    %6 = tpu.matmul %4, %5, %cst {dimension_numbers = #tpu.dot_dimension_numbers<[1], [0], [0], [1], [0, 0, 1, 1], [], []>} : vector<16x32xbf16>, vector<32x32xbf16>, vector<16x32xf32> -> vector<16x32xf32>
    %7 = arith.addf %3, %6 : vector<16x32xf32>
    %c0_6 = arith.constant 0 : index
    %c0_7 = arith.constant 0 : index
    %8 = vector.load %arg10[%c0_6, %c0_7] : memref<16x32xf32, #tpu.memory_space<vmem>>, vector<16x32xf32>
    tpu.vector_store %arg10[%c0_6, %c0_7], %7 {strides = array<i32>} : memref<16x32xf32, #tpu.memory_space<vmem>>, vector<16x32xf32>,
    %c0_i32_8 = arith.constant 0 : i32
    %9 = arith.cmpi eq, %arg2, %c0_i32_8 : i32
    %10 = arith.extui %9 : i1 to i32
    %c0_i32_9 = arith.constant 0 : i32
    %11 = arith.cmpi ne, %10, %c0_i32_9 : i32
    scf.if %11 {
      %c0_10 = arith.constant 0 : index
      %c0_11 = arith.constant 0 : index
      %12 = vector.load %arg10[%c0_10, %c0_11] : memref<16x32xf32, #tpu.memory_space<vmem>>, vector<16x32xf32>
      %c0_12 = arith.constant 0 : index
      %c0_13 = arith.constant 0 : index
      %13 = vector.load %arg5[%c0_12, %c0_13] : memref<1x32xf32, #tpu.memory_space<vmem>>, vector<1x32xf32>
      %14 = vector.broadcast %13 : vector<1x32xf32> to vector<16x32xf32>
      %15 = arith.addf %12, %14 : vector<16x32xf32>
      %c0_14 = arith.constant 0 : index
      %c0_15 = arith.constant 0 : index
      %16 = vector.load %arg6[%c0_14, %c0_15] : memref<16x32xf32, #tpu.memory_space<vmem>>, vector<16x32xf32>
      %17 = arith.addf %15, %16 : vector<16x32xf32>
      %cst_16 = arith.constant dense<0.000000e+00> : vector<16xf32>
      %18 = vector.multi_reduction <add>, %17, %cst_16 [1] : vector<16x32xf32> to vector<16xf32>
      %19 = vector.shape_cast %18 : vector<16xf32> to vector<16x1xf32>
      %cst_17 = arith.constant 3.200000e+01 : f32
      %20 = vector.broadcast %cst_17 : f32 to vector<16x1xf32>
      %21 = arith.divf %19, %20 : vector<16x1xf32>
      %22 = vector.broadcast %21 : vector<16x1xf32> to vector<16x32xf32>
      %23 = arith.subf %17, %22 : vector<16x32xf32>
      %24 = arith.mulf %23, %23 : vector<16x32xf32>
      %cst_18 = arith.constant dense<0.000000e+00> : vector<16xf32>
      %25 = vector.multi_reduction <add>, %24, %cst_18 [1] : vector<16x32xf32> to vector<16xf32>
      %26 = vector.shape_cast %25 : vector<16xf32> to vector<16x1xf32>
      %cst_19 = arith.constant 3.200000e+01 : f32
      %27 = vector.broadcast %cst_19 : f32 to vector<16x1xf32>
      %28 = arith.divf %26, %27 : vector<16x1xf32>
      %29 = vector.broadcast %21 : vector<16x1xf32> to vector<16x32xf32>
      %30 = arith.subf %17, %29 : vector<16x32xf32>
      %cst_20 = arith.constant 9.99999974E-6 : f32
      %31 = vector.broadcast %cst_20 : f32 to vector<16x1xf32>
      %32 = arith.addf %28, %31 : vector<16x1xf32>
      %33 = math.rsqrt %32 : vector<16x1xf32>
      %34 = vector.broadcast %33 : vector<16x1xf32> to vector<16x32xf32>
      %35 = arith.mulf %30, %34 : vector<16x32xf32>
      %c0_21 = arith.constant 0 : index
      %c0_22 = arith.constant 0 : index
      %36 = vector.load %arg7[%c0_21, %c0_22] : memref<1x32xf32, #tpu.memory_space<vmem>>, vector<1x32xf32>
      %37 = vector.broadcast %36 : vector<1x32xf32> to vector<16x32xf32>
      %38 = arith.mulf %35, %37 : vector<16x32xf32>
      %c0_23 = arith.constant 0 : index
      %c0_24 = arith.constant 0 : index
      %39 = vector.load %arg8[%c0_23, %c0_24] : memref<1x32xf32, #tpu.memory_space<vmem>>, vector<1x32xf32>
      %40 = vector.broadcast %39 : vector<1x32xf32> to vector<16x32xf32>
      %41 = arith.addf %38, %40 : vector<16x32xf32>
      %c0_25 = arith.constant 0 : index
      %c0_26 = arith.constant 0 : index
      %42 = vector.load %arg9[%c0_25, %c0_26] : memref<16x32xf32, #tpu.memory_space<vmem>>, vector<16x32xf32>
      tpu.vector_store %arg9[%c0_25, %c0_26], %41 {strides = array<i32>} : memref<16x32xf32, #tpu.memory_space<vmem>>, vector<16x32xf32>,
    } else {
    }
    return
  }
  func.func @transform_0(%arg0: i32, %arg1: i32, %arg2: i32) -> (i32, i32) {
    %c0_i32 = arith.constant 0 : i32
    return %arg0, %arg2 : i32, i32
  }
  func.func @transform_1(%arg0: i32, %arg1: i32, %arg2: i32) -> (i32, i32) {
    %c0_i32 = arith.constant 0 : i32
    return %arg2, %arg1 : i32, i32
  }
  func.func @transform_2(%arg0: i32, %arg1: i32, %arg2: i32) -> (i32, i32) {
    %c0_i32 = arith.constant 0 : i32
    %c0_i32_0 = arith.constant 0 : i32
    return %c0_i32, %arg1 : i32, i32
  }
  func.func @transform_3(%arg0: i32, %arg1: i32, %arg2: i32) -> (i32, i32) {
    %c0_i32 = arith.constant 0 : i32
    return %arg0, %arg1 : i32, i32
  }
  func.func @transform_4(%arg0: i32, %arg1: i32, %arg2: i32) -> (i32, i32) {
    %c0_i32 = arith.constant 0 : i32
    %c0_i32_0 = arith.constant 0 : i32
    return %c0_i32, %arg1 : i32, i32
  }
  func.func @transform_5(%arg0: i32, %arg1: i32, %arg2: i32) -> (i32, i32) {
    %c0_i32 = arith.constant 0 : i32
    %c0_i32_0 = arith.constant 0 : i32
    return %c0_i32, %arg1 : i32, i32
  }
  func.func @transform_6(%arg0: i32, %arg1: i32, %arg2: i32) -> (i32, i32) {
    %c0_i32 = arith.constant 0 : i32
    return %arg0, %arg1 : i32, i32
  }
}

module attributes {stable_mosaic.version = 11 : i64} {
  func.func @_mm_bias_kernel(%arg0: i32, %arg1: i32, %arg2: i32, %arg3: memref<16x32xbf16, #tpu.memory_space<vmem>>, %arg4: memref<32x32xbf16, #tpu.memory_space<vmem>>, %arg5: memref<1x32xf32, #tpu.memory_space<vmem>>, %arg6: memref<16x32xbf16, #tpu.memory_space<vmem>>, %arg7: memref<16x32xf32, #tpu.memory_space<vmem>>) attributes {dimension_semantics = [#tpu.dimension_semantics<parallel>, #tpu.dimension_semantics<parallel>, #tpu.dimension_semantics<arbitrary>], iteration_bounds = array<i64: 1, 1, 1>, scalar_prefetch = 0 : i64, scratch_operands = 1 : i64, tpu.core_type = #tpu.core_type<tc>, window_params = [{transform_indices = @transform_0, window_bounds = array<i64: 16, 32>}, {transform_indices = @transform_1, window_bounds = array<i64: 32, 32>}, {transform_indices = @transform_2, window_bounds = array<i64: 1, 32>}, {transform_indices = @transform_3, window_bounds = array<i64: 16, 32>}]} {
    %c0_i32 = arith.constant 0 : i32
    %0 = arith.cmpi eq, %arg2, %c0_i32 : i32
    %1 = arith.extui %0 : i1 to i32
    %c0_i32_0 = arith.constant 0 : i32
    %2 = arith.cmpi ne, %1, %c0_i32_0 : i32
    scf.if %2 {
      %cst_10 = arith.constant 0.000000e+00 : f32
      %12 = vector.broadcast %cst_10 : f32 to vector<16x32xf32>
      %c0_11 = arith.constant 0 : index
      %c0_12 = arith.constant 0 : index
      %13 = vector.load %arg7[%c0_11, %c0_12] : memref<16x32xf32, #tpu.memory_space<vmem>>, vector<16x32xf32>
      tpu.vector_store %arg7[%c0_11, %c0_12], %12 {strides = array<i32>} : memref<16x32xf32, #tpu.memory_space<vmem>>, vector<16x32xf32>,
    } else {
    }
    %c0 = arith.constant 0 : index
    %c0_1 = arith.constant 0 : index
    %3 = vector.load %arg7[%c0, %c0_1] : memref<16x32xf32, #tpu.memory_space<vmem>>, vector<16x32xf32>
    %c0_2 = arith.constant 0 : index
    %c0_3 = arith.constant 0 : index
    %4 = vector.load %arg3[%c0_2, %c0_3] : memref<16x32xbf16, #tpu.memory_space<vmem>>, vector<16x32xbf16>
    %c0_4 = arith.constant 0 : index
    %c0_5 = arith.constant 0 : index
    %5 = vector.load %arg4[%c0_4, %c0_5] : memref<32x32xbf16, #tpu.memory_space<vmem>>, vector<32x32xbf16>
    %cst = arith.constant dense<0.000000e+00> : vector<16x32xf32>
    %6 = tpu.matmul %4, %5, %cst {dimension_numbers = #tpu.dot_dimension_numbers<[1], [0], [0], [1], [0, 0, 1, 1], [], []>} : vector<16x32xbf16>, vector<32x32xbf16>, vector<16x32xf32> -> vector<16x32xf32>
    %7 = arith.addf %3, %6 : vector<16x32xf32>
    %c0_6 = arith.constant 0 : index
    %c0_7 = arith.constant 0 : index
    %8 = vector.load %arg7[%c0_6, %c0_7] : memref<16x32xf32, #tpu.memory_space<vmem>>, vector<16x32xf32>
    tpu.vector_store %arg7[%c0_6, %c0_7], %7 {strides = array<i32>} : memref<16x32xf32, #tpu.memory_space<vmem>>, vector<16x32xf32>,
    %c0_i32_8 = arith.constant 0 : i32
    %9 = arith.cmpi eq, %arg2, %c0_i32_8 : i32
    %10 = arith.extui %9 : i1 to i32
    %c0_i32_9 = arith.constant 0 : i32
    %11 = arith.cmpi ne, %10, %c0_i32_9 : i32
    scf.if %11 {
      %c0_10 = arith.constant 0 : index
      %c0_11 = arith.constant 0 : index
      %12 = vector.load %arg7[%c0_10, %c0_11] : memref<16x32xf32, #tpu.memory_space<vmem>>, vector<16x32xf32>
      %c0_12 = arith.constant 0 : index
      %c0_13 = arith.constant 0 : index
      %13 = vector.load %arg5[%c0_12, %c0_13] : memref<1x32xf32, #tpu.memory_space<vmem>>, vector<1x32xf32>
      %14 = vector.broadcast %13 : vector<1x32xf32> to vector<16x32xf32>
      %15 = arith.addf %12, %14 : vector<16x32xf32>
      %16 = arith.truncf %15 : vector<16x32xf32> to vector<16x32xbf16>
      %c0_14 = arith.constant 0 : index
      %c0_15 = arith.constant 0 : index
      %17 = vector.load %arg6[%c0_14, %c0_15] : memref<16x32xbf16, #tpu.memory_space<vmem>>, vector<16x32xbf16>
      tpu.vector_store %arg6[%c0_14, %c0_15], %16 {strides = array<i32>} : memref<16x32xbf16, #tpu.memory_space<vmem>>, vector<16x32xbf16>,
    } else {
    }
    return
  }
  func.func @transform_0(%arg0: i32, %arg1: i32, %arg2: i32) -> (i32, i32) {
    %c0_i32 = arith.constant 0 : i32
    return %arg0, %arg2 : i32, i32
  }
  func.func @transform_1(%arg0: i32, %arg1: i32, %arg2: i32) -> (i32, i32) {
    %c0_i32 = arith.constant 0 : i32
    return %arg2, %arg1 : i32, i32
  }
  func.func @transform_2(%arg0: i32, %arg1: i32, %arg2: i32) -> (i32, i32) {
    %c0_i32 = arith.constant 0 : i32
    %c0_i32_0 = arith.constant 0 : i32
    return %c0_i32, %arg1 : i32, i32
  }
  func.func @transform_3(%arg0: i32, %arg1: i32, %arg2: i32) -> (i32, i32) {
    %c0_i32 = arith.constant 0 : i32
    return %arg0, %arg1 : i32, i32
  }
}

module attributes {stable_mosaic.version = 11 : i64} {
  func.func @_mm_bias_kernel(%arg0: i32, %arg1: i32, %arg2: i32, %arg3: memref<24x32xbf16, #tpu.memory_space<vmem>>, %arg4: memref<32x64xbf16, #tpu.memory_space<vmem>>, %arg5: memref<1x64xf32, #tpu.memory_space<vmem>>, %arg6: memref<24x64xbf16, #tpu.memory_space<vmem>>, %arg7: memref<24x64xf32, #tpu.memory_space<vmem>>) attributes {dimension_semantics = [#tpu.dimension_semantics<parallel>, #tpu.dimension_semantics<parallel>, #tpu.dimension_semantics<arbitrary>], iteration_bounds = array<i64: 1, 1, 1>, scalar_prefetch = 0 : i64, scratch_operands = 1 : i64, tpu.core_type = #tpu.core_type<tc>, window_params = [{transform_indices = @transform_0, window_bounds = array<i64: 24, 32>}, {transform_indices = @transform_1, window_bounds = array<i64: 32, 64>}, {transform_indices = @transform_2, window_bounds = array<i64: 1, 64>}, {transform_indices = @transform_3, window_bounds = array<i64: 24, 64>}]} {
    %c0_i32 = arith.constant 0 : i32
    %0 = arith.cmpi eq, %arg2, %c0_i32 : i32
    %1 = arith.extui %0 : i1 to i32
    %c0_i32_0 = arith.constant 0 : i32
    %2 = arith.cmpi ne, %1, %c0_i32_0 : i32
    scf.if %2 {
      %cst_10 = arith.constant 0.000000e+00 : f32
      %12 = vector.broadcast %cst_10 : f32 to vector<24x64xf32>
      %c0_11 = arith.constant 0 : index
      %c0_12 = arith.constant 0 : index
      %13 = vector.load %arg7[%c0_11, %c0_12] : memref<24x64xf32, #tpu.memory_space<vmem>>, vector<24x64xf32>
      tpu.vector_store %arg7[%c0_11, %c0_12], %12 {strides = array<i32>} : memref<24x64xf32, #tpu.memory_space<vmem>>, vector<24x64xf32>,
    } else {
    }
    %c0 = arith.constant 0 : index
    %c0_1 = arith.constant 0 : index
    %3 = vector.load %arg7[%c0, %c0_1] : memref<24x64xf32, #tpu.memory_space<vmem>>, vector<24x64xf32>
    %c0_2 = arith.constant 0 : index
    %c0_3 = arith.constant 0 : index
    %4 = vector.load %arg3[%c0_2, %c0_3] : memref<24x32xbf16, #tpu.memory_space<vmem>>, vector<24x32xbf16>
    %c0_4 = arith.constant 0 : index
    %c0_5 = arith.constant 0 : index
    %5 = vector.load %arg4[%c0_4, %c0_5] : memref<32x64xbf16, #tpu.memory_space<vmem>>, vector<32x64xbf16>
    %cst = arith.constant dense<0.000000e+00> : vector<24x64xf32>
    %6 = tpu.matmul %4, %5, %cst {dimension_numbers = #tpu.dot_dimension_numbers<[1], [0], [0], [1], [0, 0, 1, 1], [], []>} : vector<24x32xbf16>, vector<32x64xbf16>, vector<24x64xf32> -> vector<24x64xf32>
    %7 = arith.addf %3, %6 : vector<24x64xf32>
    %c0_6 = arith.constant 0 : index
    %c0_7 = arith.constant 0 : index
    %8 = vector.load %arg7[%c0_6, %c0_7] : memref<24x64xf32, #tpu.memory_space<vmem>>, vector<24x64xf32>
    tpu.vector_store %arg7[%c0_6, %c0_7], %7 {strides = array<i32>} : memref<24x64xf32, #tpu.memory_space<vmem>>, vector<24x64xf32>,
    %c0_i32_8 = arith.constant 0 : i32
    %9 = arith.cmpi eq, %arg2, %c0_i32_8 : i32
    %10 = arith.extui %9 : i1 to i32
    %c0_i32_9 = arith.constant 0 : i32
    %11 = arith.cmpi ne, %10, %c0_i32_9 : i32
    scf.if %11 {
      %c0_10 = arith.constant 0 : index
      %c0_11 = arith.constant 0 : index
      %12 = vector.load %arg7[%c0_10, %c0_11] : memref<24x64xf32, #tpu.memory_space<vmem>>, vector<24x64xf32>
      %c0_12 = arith.constant 0 : index
      %c0_13 = arith.constant 0 : index
      %13 = vector.load %arg5[%c0_12, %c0_13] : memref<1x64xf32, #tpu.memory_space<vmem>>, vector<1x64xf32>
      %14 = vector.broadcast %13 : vector<1x64xf32> to vector<24x64xf32>
      %15 = arith.addf %12, %14 : vector<24x64xf32>
      %16 = arith.truncf %15 : vector<24x64xf32> to vector<24x64xbf16>
      %c0_14 = arith.constant 0 : index
      %c0_15 = arith.constant 0 : index
      %17 = vector.load %arg6[%c0_14, %c0_15] : memref<24x64xbf16, #tpu.memory_space<vmem>>, vector<24x64xbf16>
      tpu.vector_store %arg6[%c0_14, %c0_15], %16 {strides = array<i32>} : memref<24x64xbf16, #tpu.memory_space<vmem>>, vector<24x64xbf16>,
    } else {
    }
    return
  }
  func.func @transform_0(%arg0: i32, %arg1: i32, %arg2: i32) -> (i32, i32) {
    %c0_i32 = arith.constant 0 : i32
    return %arg0, %arg2 : i32, i32
  }
  func.func @transform_1(%arg0: i32, %arg1: i32, %arg2: i32) -> (i32, i32) {
    %c0_i32 = arith.constant 0 : i32
    return %arg2, %arg1 : i32, i32
  }
  func.func @transform_2(%arg0: i32, %arg1: i32, %arg2: i32) -> (i32, i32) {
    %c0_i32 = arith.constant 0 : i32
    %c0_i32_0 = arith.constant 0 : i32
    return %c0_i32, %arg1 : i32, i32
  }
  func.func @transform_3(%arg0: i32, %arg1: i32, %arg2: i32) -> (i32, i32) {
    %c0_i32 = arith.constant 0 : i32
    return %arg0, %arg1 : i32, i32
  }
}

module attributes {stable_mosaic.version = 11 : i64} {
  func.func @_mm_bias_kernel(%arg0: i32, %arg1: i32, %arg2: i32, %arg3: memref<16x32xbf16, #tpu.memory_space<vmem>>, %arg4: memref<32x64xbf16, #tpu.memory_space<vmem>>, %arg5: memref<1x64xf32, #tpu.memory_space<vmem>>, %arg6: memref<16x64xbf16, #tpu.memory_space<vmem>>, %arg7: memref<16x64xf32, #tpu.memory_space<vmem>>) attributes {dimension_semantics = [#tpu.dimension_semantics<parallel>, #tpu.dimension_semantics<parallel>, #tpu.dimension_semantics<arbitrary>], iteration_bounds = array<i64: 1, 1, 1>, scalar_prefetch = 0 : i64, scratch_operands = 1 : i64, tpu.core_type = #tpu.core_type<tc>, window_params = [{transform_indices = @transform_0, window_bounds = array<i64: 16, 32>}, {transform_indices = @transform_1, window_bounds = array<i64: 32, 64>}, {transform_indices = @transform_2, window_bounds = array<i64: 1, 64>}, {transform_indices = @transform_3, window_bounds = array<i64: 16, 64>}]} {
    %c0_i32 = arith.constant 0 : i32
    %0 = arith.cmpi eq, %arg2, %c0_i32 : i32
    %1 = arith.extui %0 : i1 to i32
    %c0_i32_0 = arith.constant 0 : i32
    %2 = arith.cmpi ne, %1, %c0_i32_0 : i32
    scf.if %2 {
      %cst_10 = arith.constant 0.000000e+00 : f32
      %12 = vector.broadcast %cst_10 : f32 to vector<16x64xf32>
      %c0_11 = arith.constant 0 : index
      %c0_12 = arith.constant 0 : index
      %13 = vector.load %arg7[%c0_11, %c0_12] : memref<16x64xf32, #tpu.memory_space<vmem>>, vector<16x64xf32>
      tpu.vector_store %arg7[%c0_11, %c0_12], %12 {strides = array<i32>} : memref<16x64xf32, #tpu.memory_space<vmem>>, vector<16x64xf32>,
    } else {
    }
    %c0 = arith.constant 0 : index
    %c0_1 = arith.constant 0 : index
    %3 = vector.load %arg7[%c0, %c0_1] : memref<16x64xf32, #tpu.memory_space<vmem>>, vector<16x64xf32>
    %c0_2 = arith.constant 0 : index
    %c0_3 = arith.constant 0 : index
    %4 = vector.load %arg3[%c0_2, %c0_3] : memref<16x32xbf16, #tpu.memory_space<vmem>>, vector<16x32xbf16>
    %c0_4 = arith.constant 0 : index
    %c0_5 = arith.constant 0 : index
    %5 = vector.load %arg4[%c0_4, %c0_5] : memref<32x64xbf16, #tpu.memory_space<vmem>>, vector<32x64xbf16>
    %cst = arith.constant dense<0.000000e+00> : vector<16x64xf32>
    %6 = tpu.matmul %4, %5, %cst {dimension_numbers = #tpu.dot_dimension_numbers<[1], [0], [0], [1], [0, 0, 1, 1], [], []>} : vector<16x32xbf16>, vector<32x64xbf16>, vector<16x64xf32> -> vector<16x64xf32>
    %7 = arith.addf %3, %6 : vector<16x64xf32>
    %c0_6 = arith.constant 0 : index
    %c0_7 = arith.constant 0 : index
    %8 = vector.load %arg7[%c0_6, %c0_7] : memref<16x64xf32, #tpu.memory_space<vmem>>, vector<16x64xf32>
    tpu.vector_store %arg7[%c0_6, %c0_7], %7 {strides = array<i32>} : memref<16x64xf32, #tpu.memory_space<vmem>>, vector<16x64xf32>,
    %c0_i32_8 = arith.constant 0 : i32
    %9 = arith.cmpi eq, %arg2, %c0_i32_8 : i32
    %10 = arith.extui %9 : i1 to i32
    %c0_i32_9 = arith.constant 0 : i32
    %11 = arith.cmpi ne, %10, %c0_i32_9 : i32
    scf.if %11 {
      %c0_10 = arith.constant 0 : index
      %c0_11 = arith.constant 0 : index
      %12 = vector.load %arg7[%c0_10, %c0_11] : memref<16x64xf32, #tpu.memory_space<vmem>>, vector<16x64xf32>
      %c0_12 = arith.constant 0 : index
      %c0_13 = arith.constant 0 : index
      %13 = vector.load %arg5[%c0_12, %c0_13] : memref<1x64xf32, #tpu.memory_space<vmem>>, vector<1x64xf32>
      %14 = vector.broadcast %13 : vector<1x64xf32> to vector<16x64xf32>
      %15 = arith.addf %12, %14 : vector<16x64xf32>
      %cst_14 = arith.constant 0.000000e+00 : f32
      %16 = vector.broadcast %cst_14 : f32 to vector<16x64xf32>
      %17 = arith.maximumf %15, %16 : vector<16x64xf32>
      %18 = arith.truncf %17 : vector<16x64xf32> to vector<16x64xbf16>
      %c0_15 = arith.constant 0 : index
      %c0_16 = arith.constant 0 : index
      %19 = vector.load %arg6[%c0_15, %c0_16] : memref<16x64xbf16, #tpu.memory_space<vmem>>, vector<16x64xbf16>
      tpu.vector_store %arg6[%c0_15, %c0_16], %18 {strides = array<i32>} : memref<16x64xbf16, #tpu.memory_space<vmem>>, vector<16x64xbf16>,
    } else {
    }
    return
  }
  func.func @transform_0(%arg0: i32, %arg1: i32, %arg2: i32) -> (i32, i32) {
    %c0_i32 = arith.constant 0 : i32
    return %arg0, %arg2 : i32, i32
  }
  func.func @transform_1(%arg0: i32, %arg1: i32, %arg2: i32) -> (i32, i32) {
    %c0_i32 = arith.constant 0 : i32
    return %arg2, %arg1 : i32, i32
  }
  func.func @transform_2(%arg0: i32, %arg1: i32, %arg2: i32) -> (i32, i32) {
    %c0_i32 = arith.constant 0 : i32
    %c0_i32_0 = arith.constant 0 : i32
    return %c0_i32, %arg1 : i32, i32
  }
  func.func @transform_3(%arg0: i32, %arg1: i32, %arg2: i32) -> (i32, i32) {
    %c0_i32 = arith.constant 0 : i32
    return %arg0, %arg1 : i32, i32
  }
}

module attributes {stable_mosaic.version = 11 : i64} {
  func.func @_attn_kernel(%arg0: i32, %arg1: memref<1x8x32xbf16, #tpu.memory_space<vmem>>, %arg2: memref<1x10x32xbf16, #tpu.memory_space<vmem>>, %arg3: memref<1x10x32xbf16, #tpu.memory_space<vmem>>, %arg4: memref<1x8x32xbf16, #tpu.memory_space<vmem>>) attributes {dimension_semantics = [#tpu.dimension_semantics<parallel>], iteration_bounds = array<i64: 2>, scalar_prefetch = 0 : i64, scratch_operands = 0 : i64, tpu.core_type = #tpu.core_type<tc>, window_params = [{transform_indices = @transform_0, window_bounds = array<i64: 1, 8, 32>}, {transform_indices = @transform_1, window_bounds = array<i64: 1, 10, 32>}, {transform_indices = @transform_2, window_bounds = array<i64: 1, 10, 32>}, {transform_indices = @transform_3, window_bounds = array<i64: 1, 8, 32>}]} {
    %c0 = arith.constant 0 : index
    %c0_0 = arith.constant 0 : index
    %c0_1 = arith.constant 0 : index
    %0 = vector.load %arg1[%c0, %c0_0, %c0_1] : memref<1x8x32xbf16, #tpu.memory_space<vmem>>, vector<1x8x8xbf16>
    %1 = vector.shape_cast %0 : vector<1x8x8xbf16> to vector<8x8xbf16>
    %2 = arith.extf %1 : vector<8x8xbf16> to vector<8x8xf32>
    %c0_2 = arith.constant 0 : index
    %c0_3 = arith.constant 0 : index
    %c0_4 = arith.constant 0 : index
    %3 = vector.load %arg2[%c0_2, %c0_3, %c0_4] : memref<1x10x32xbf16, #tpu.memory_space<vmem>>, vector<1x10x8xbf16>
    %4 = vector.shape_cast %3 : vector<1x10x8xbf16> to vector<10x8xbf16>
    %5 = arith.extf %4 : vector<10x8xbf16> to vector<10x8xf32>
    %c0_5 = arith.constant 0 : index
    %c0_6 = arith.constant 0 : index
    %c0_7 = arith.constant 0 : index
    %6 = vector.load %arg3[%c0_5, %c0_6, %c0_7] : memref<1x10x32xbf16, #tpu.memory_space<vmem>>, vector<1x10x8xbf16>
    %7 = vector.shape_cast %6 : vector<1x10x8xbf16> to vector<10x8xbf16>
    %8 = arith.extf %7 : vector<10x8xbf16> to vector<10x8xf32>
    %cst = arith.constant dense<0.000000e+00> : vector<8x10xf32>
    %9 = tpu.matmul %2, %5, %cst {dimension_numbers = #tpu.dot_dimension_numbers<[1], [1], [0], [0], [0, 0, 1, 0], [], []>} : vector<8x8xf32>, vector<10x8xf32>, vector<8x10xf32> -> vector<8x10xf32>
    %cst_8 = arith.constant 0.353553385 : f32
    %10 = vector.broadcast %cst_8 : f32 to vector<8x10xf32>
    %11 = arith.mulf %9, %10 : vector<8x10xf32>
    %cst_9 = arith.constant dense<0xFF800000> : vector<8xf32>
    %12 = vector.multi_reduction <maximumf>, %11, %cst_9 [1] : vector<8x10xf32> to vector<8xf32>
    %13 = vector.shape_cast %12 : vector<8xf32> to vector<8x1xf32>
    %14 = vector.broadcast %13 : vector<8x1xf32> to vector<8x10xf32>
    %15 = arith.subf %11, %14 : vector<8x10xf32>
    %16 = math.exp %15 : vector<8x10xf32>
    %cst_10 = arith.constant dense<0.000000e+00> : vector<8xf32>
    %17 = vector.multi_reduction <add>, %16, %cst_10 [1] : vector<8x10xf32> to vector<8xf32>
    %18 = vector.shape_cast %17 : vector<8xf32> to vector<8x1xf32>
    %19 = tpu.reciprocal %18 {approx = true} : vector<8x1xf32> -> vector<8x1xf32>
    %20 = vector.broadcast %19 : vector<8x1xf32> to vector<8x10xf32>
    %21 = arith.mulf %16, %20 : vector<8x10xf32>
    %cst_11 = arith.constant dense<0.000000e+00> : vector<8x8xf32>
    %22 = tpu.matmul %21, %8, %cst_11 {dimension_numbers = #tpu.dot_dimension_numbers<[1], [0], [0], [1], [0, 0, 1, 1], [], []>} : vector<8x10xf32>, vector<10x8xf32>, vector<8x8xf32> -> vector<8x8xf32>
    %23 = arith.truncf %22 : vector<8x8xf32> to vector<8x8xbf16>
    %c0_12 = arith.constant 0 : index
    %c0_13 = arith.constant 0 : index
    %c0_14 = arith.constant 0 : index
    %24 = vector.load %arg4[%c0_12, %c0_13, %c0_14] : memref<1x8x32xbf16, #tpu.memory_space<vmem>>, vector<1x8x8xbf16>
    %25 = vector.shape_cast %24 : vector<1x8x8xbf16> to vector<8x8xbf16>
    %26 = vector.shape_cast %23 : vector<8x8xbf16> to vector<1x8x8xbf16>
    tpu.vector_store %arg4[%c0_12, %c0_13, %c0_14], %26 {strides = array<i32>} : memref<1x8x32xbf16, #tpu.memory_space<vmem>>, vector<1x8x8xbf16>,
    %c0_15 = arith.constant 0 : index
    %c0_16 = arith.constant 0 : index
    %c8 = arith.constant 8 : index
    %27 = vector.load %arg1[%c0_15, %c0_16, %c8] : memref<1x8x32xbf16, #tpu.memory_space<vmem>>, vector<1x8x8xbf16>
    %28 = vector.shape_cast %27 : vector<1x8x8xbf16> to vector<8x8xbf16>
    %29 = arith.extf %28 : vector<8x8xbf16> to vector<8x8xf32>
    %c0_17 = arith.constant 0 : index
    %c0_18 = arith.constant 0 : index
    %c8_19 = arith.constant 8 : index
    %30 = vector.load %arg2[%c0_17, %c0_18, %c8_19] : memref<1x10x32xbf16, #tpu.memory_space<vmem>>, vector<1x10x8xbf16>
    %31 = vector.shape_cast %30 : vector<1x10x8xbf16> to vector<10x8xbf16>
    %32 = arith.extf %31 : vector<10x8xbf16> to vector<10x8xf32>
    %c0_20 = arith.constant 0 : index
    %c0_21 = arith.constant 0 : index
    %c8_22 = arith.constant 8 : index
    %33 = vector.load %arg3[%c0_20, %c0_21, %c8_22] : memref<1x10x32xbf16, #tpu.memory_space<vmem>>, vector<1x10x8xbf16>
    %34 = vector.shape_cast %33 : vector<1x10x8xbf16> to vector<10x8xbf16>
    %35 = arith.extf %34 : vector<10x8xbf16> to vector<10x8xf32>
    %cst_23 = arith.constant dense<0.000000e+00> : vector<8x10xf32>
    %36 = tpu.matmul %29, %32, %cst_23 {dimension_numbers = #tpu.dot_dimension_numbers<[1], [1], [0], [0], [0, 0, 1, 0], [], []>} : vector<8x8xf32>, vector<10x8xf32>, vector<8x10xf32> -> vector<8x10xf32>
    %cst_24 = arith.constant 0.353553385 : f32
    %37 = vector.broadcast %cst_24 : f32 to vector<8x10xf32>
    %38 = arith.mulf %36, %37 : vector<8x10xf32>
    %cst_25 = arith.constant dense<0xFF800000> : vector<8xf32>
    %39 = vector.multi_reduction <maximumf>, %38, %cst_25 [1] : vector<8x10xf32> to vector<8xf32>
    %40 = vector.shape_cast %39 : vector<8xf32> to vector<8x1xf32>
    %41 = vector.broadcast %40 : vector<8x1xf32> to vector<8x10xf32>
    %42 = arith.subf %38, %41 : vector<8x10xf32>
    %43 = math.exp %42 : vector<8x10xf32>
    %cst_26 = arith.constant dense<0.000000e+00> : vector<8xf32>
    %44 = vector.multi_reduction <add>, %43, %cst_26 [1] : vector<8x10xf32> to vector<8xf32>
    %45 = vector.shape_cast %44 : vector<8xf32> to vector<8x1xf32>
    %46 = tpu.reciprocal %45 {approx = true} : vector<8x1xf32> -> vector<8x1xf32>
    %47 = vector.broadcast %46 : vector<8x1xf32> to vector<8x10xf32>
    %48 = arith.mulf %43, %47 : vector<8x10xf32>
    %cst_27 = arith.constant dense<0.000000e+00> : vector<8x8xf32>
    %49 = tpu.matmul %48, %35, %cst_27 {dimension_numbers = #tpu.dot_dimension_numbers<[1], [0], [0], [1], [0, 0, 1, 1], [], []>} : vector<8x10xf32>, vector<10x8xf32>, vector<8x8xf32> -> vector<8x8xf32>
    %50 = arith.truncf %49 : vector<8x8xf32> to vector<8x8xbf16>
    %c0_28 = arith.constant 0 : index
    %c0_29 = arith.constant 0 : index
    %c8_30 = arith.constant 8 : index
    %51 = vector.load %arg4[%c0_28, %c0_29, %c8_30] : memref<1x8x32xbf16, #tpu.memory_space<vmem>>, vector<1x8x8xbf16>
    %52 = vector.shape_cast %51 : vector<1x8x8xbf16> to vector<8x8xbf16>
    %53 = vector.shape_cast %50 : vector<8x8xbf16> to vector<1x8x8xbf16>
    tpu.vector_store %arg4[%c0_28, %c0_29, %c8_30], %53 {strides = array<i32>} : memref<1x8x32xbf16, #tpu.memory_space<vmem>>, vector<1x8x8xbf16>,
    %c0_31 = arith.constant 0 : index
    %c0_32 = arith.constant 0 : index
    %c16 = arith.constant 16 : index
    %54 = vector.load %arg1[%c0_31, %c0_32, %c16] : memref<1x8x32xbf16, #tpu.memory_space<vmem>>, vector<1x8x8xbf16>
    %55 = vector.shape_cast %54 : vector<1x8x8xbf16> to vector<8x8xbf16>
    %56 = arith.extf %55 : vector<8x8xbf16> to vector<8x8xf32>
    %c0_33 = arith.constant 0 : index
    %c0_34 = arith.constant 0 : index
    %c16_35 = arith.constant 16 : index
    %57 = vector.load %arg2[%c0_33, %c0_34, %c16_35] : memref<1x10x32xbf16, #tpu.memory_space<vmem>>, vector<1x10x8xbf16>
    %58 = vector.shape_cast %57 : vector<1x10x8xbf16> to vector<10x8xbf16>
    %59 = arith.extf %58 : vector<10x8xbf16> to vector<10x8xf32>
    %c0_36 = arith.constant 0 : index
    %c0_37 = arith.constant 0 : index
    %c16_38 = arith.constant 16 : index
    %60 = vector.load %arg3[%c0_36, %c0_37, %c16_38] : memref<1x10x32xbf16, #tpu.memory_space<vmem>>, vector<1x10x8xbf16>
    %61 = vector.shape_cast %60 : vector<1x10x8xbf16> to vector<10x8xbf16>
    %62 = arith.extf %61 : vector<10x8xbf16> to vector<10x8xf32>
    %cst_39 = arith.constant dense<0.000000e+00> : vector<8x10xf32>
    %63 = tpu.matmul %56, %59, %cst_39 {dimension_numbers = #tpu.dot_dimension_numbers<[1], [1], [0], [0], [0, 0, 1, 0], [], []>} : vector<8x8xf32>, vector<10x8xf32>, vector<8x10xf32> -> vector<8x10xf32>
    %cst_40 = arith.constant 0.353553385 : f32
    %64 = vector.broadcast %cst_40 : f32 to vector<8x10xf32>
    %65 = arith.mulf %63, %64 : vector<8x10xf32>
    %cst_41 = arith.constant dense<0xFF800000> : vector<8xf32>
    %66 = vector.multi_reduction <maximumf>, %65, %cst_41 [1] : vector<8x10xf32> to vector<8xf32>
    %67 = vector.shape_cast %66 : vector<8xf32> to vector<8x1xf32>
    %68 = vector.broadcast %67 : vector<8x1xf32> to vector<8x10xf32>
    %69 = arith.subf %65, %68 : vector<8x10xf32>
    %70 = math.exp %69 : vector<8x10xf32>
    %cst_42 = arith.constant dense<0.000000e+00> : vector<8xf32>
    %71 = vector.multi_reduction <add>, %70, %cst_42 [1] : vector<8x10xf32> to vector<8xf32>
    %72 = vector.shape_cast %71 : vector<8xf32> to vector<8x1xf32>
    %73 = tpu.reciprocal %72 {approx = true} : vector<8x1xf32> -> vector<8x1xf32>
    %74 = vector.broadcast %73 : vector<8x1xf32> to vector<8x10xf32>
    %75 = arith.mulf %70, %74 : vector<8x10xf32>
    %cst_43 = arith.constant dense<0.000000e+00> : vector<8x8xf32>
    %76 = tpu.matmul %75, %62, %cst_43 {dimension_numbers = #tpu.dot_dimension_numbers<[1], [0], [0], [1], [0, 0, 1, 1], [], []>} : vector<8x10xf32>, vector<10x8xf32>, vector<8x8xf32> -> vector<8x8xf32>
    %77 = arith.truncf %76 : vector<8x8xf32> to vector<8x8xbf16>
    %c0_44 = arith.constant 0 : index
    %c0_45 = arith.constant 0 : index
    %c16_46 = arith.constant 16 : index
    %78 = vector.load %arg4[%c0_44, %c0_45, %c16_46] : memref<1x8x32xbf16, #tpu.memory_space<vmem>>, vector<1x8x8xbf16>
    %79 = vector.shape_cast %78 : vector<1x8x8xbf16> to vector<8x8xbf16>
    %80 = vector.shape_cast %77 : vector<8x8xbf16> to vector<1x8x8xbf16>
    tpu.vector_store %arg4[%c0_44, %c0_45, %c16_46], %80 {strides = array<i32>} : memref<1x8x32xbf16, #tpu.memory_space<vmem>>, vector<1x8x8xbf16>,
    %c0_47 = arith.constant 0 : index
    %c0_48 = arith.constant 0 : index
    %c24 = arith.constant 24 : index
    %81 = vector.load %arg1[%c0_47, %c0_48, %c24] : memref<1x8x32xbf16, #tpu.memory_space<vmem>>, vector<1x8x8xbf16>
    %82 = vector.shape_cast %81 : vector<1x8x8xbf16> to vector<8x8xbf16>
    %83 = arith.extf %82 : vector<8x8xbf16> to vector<8x8xf32>
    %c0_49 = arith.constant 0 : index
    %c0_50 = arith.constant 0 : index
    %c24_51 = arith.constant 24 : index
    %84 = vector.load %arg2[%c0_49, %c0_50, %c24_51] : memref<1x10x32xbf16, #tpu.memory_space<vmem>>, vector<1x10x8xbf16>
    %85 = vector.shape_cast %84 : vector<1x10x8xbf16> to vector<10x8xbf16>
    %86 = arith.extf %85 : vector<10x8xbf16> to vector<10x8xf32>
    %c0_52 = arith.constant 0 : index
    %c0_53 = arith.constant 0 : index
    %c24_54 = arith.constant 24 : index
    %87 = vector.load %arg3[%c0_52, %c0_53, %c24_54] : memref<1x10x32xbf16, #tpu.memory_space<vmem>>, vector<1x10x8xbf16>
    %88 = vector.shape_cast %87 : vector<1x10x8xbf16> to vector<10x8xbf16>
    %89 = arith.extf %88 : vector<10x8xbf16> to vector<10x8xf32>
    %cst_55 = arith.constant dense<0.000000e+00> : vector<8x10xf32>
    %90 = tpu.matmul %83, %86, %cst_55 {dimension_numbers = #tpu.dot_dimension_numbers<[1], [1], [0], [0], [0, 0, 1, 0], [], []>} : vector<8x8xf32>, vector<10x8xf32>, vector<8x10xf32> -> vector<8x10xf32>
    %cst_56 = arith.constant 0.353553385 : f32
    %91 = vector.broadcast %cst_56 : f32 to vector<8x10xf32>
    %92 = arith.mulf %90, %91 : vector<8x10xf32>
    %cst_57 = arith.constant dense<0xFF800000> : vector<8xf32>
    %93 = vector.multi_reduction <maximumf>, %92, %cst_57 [1] : vector<8x10xf32> to vector<8xf32>
    %94 = vector.shape_cast %93 : vector<8xf32> to vector<8x1xf32>
    %95 = vector.broadcast %94 : vector<8x1xf32> to vector<8x10xf32>
    %96 = arith.subf %92, %95 : vector<8x10xf32>
    %97 = math.exp %96 : vector<8x10xf32>
    %cst_58 = arith.constant dense<0.000000e+00> : vector<8xf32>
    %98 = vector.multi_reduction <add>, %97, %cst_58 [1] : vector<8x10xf32> to vector<8xf32>
    %99 = vector.shape_cast %98 : vector<8xf32> to vector<8x1xf32>
    %100 = tpu.reciprocal %99 {approx = true} : vector<8x1xf32> -> vector<8x1xf32>
    %101 = vector.broadcast %100 : vector<8x1xf32> to vector<8x10xf32>
    %102 = arith.mulf %97, %101 : vector<8x10xf32>
    %cst_59 = arith.constant dense<0.000000e+00> : vector<8x8xf32>
    %103 = tpu.matmul %102, %89, %cst_59 {dimension_numbers = #tpu.dot_dimension_numbers<[1], [0], [0], [1], [0, 0, 1, 1], [], []>} : vector<8x10xf32>, vector<10x8xf32>, vector<8x8xf32> -> vector<8x8xf32>
    %104 = arith.truncf %103 : vector<8x8xf32> to vector<8x8xbf16>
    %c0_60 = arith.constant 0 : index
    %c0_61 = arith.constant 0 : index
    %c24_62 = arith.constant 24 : index
    %105 = vector.load %arg4[%c0_60, %c0_61, %c24_62] : memref<1x8x32xbf16, #tpu.memory_space<vmem>>, vector<1x8x8xbf16>
    %106 = vector.shape_cast %105 : vector<1x8x8xbf16> to vector<8x8xbf16>
    %107 = vector.shape_cast %104 : vector<8x8xbf16> to vector<1x8x8xbf16>
    tpu.vector_store %arg4[%c0_60, %c0_61, %c24_62], %107 {strides = array<i32>} : memref<1x8x32xbf16, #tpu.memory_space<vmem>>, vector<1x8x8xbf16>,
    return
  }
  func.func @transform_0(%arg0: i32) -> (i32, i32, i32) {
    %c0_i32 = arith.constant 0 : i32
    %c0_i32_0 = arith.constant 0 : i32
    %c0_i32_1 = arith.constant 0 : i32
    return %arg0, %c0_i32, %c0_i32_0 : i32, i32, i32
  }
  func.func @transform_1(%arg0: i32) -> (i32, i32, i32) {
    %c0_i32 = arith.constant 0 : i32
    %c0_i32_0 = arith.constant 0 : i32
    %c0_i32_1 = arith.constant 0 : i32
    return %arg0, %c0_i32, %c0_i32_0 : i32, i32, i32
  }
  func.func @transform_2(%arg0: i32) -> (i32, i32, i32) {
    %c0_i32 = arith.constant 0 : i32
    %c0_i32_0 = arith.constant 0 : i32
    %c0_i32_1 = arith.constant 0 : i32
    return %arg0, %c0_i32, %c0_i32_0 : i32, i32, i32
  }
  func.func @transform_3(%arg0: i32) -> (i32, i32, i32) {
    %c0_i32 = arith.constant 0 : i32
    %c0_i32_0 = arith.constant 0 : i32
    %c0_i32_1 = arith.constant 0 : i32
    return %arg0, %c0_i32, %c0_i32_0 : i32, i32, i32
  }
}

module attributes {stable_mosaic.version = 11 : i64} {
  func.func @_mm_bias_res_ln_kernel(%arg0: i32, %arg1: i32, %arg2: i32, %arg3: memref<16x64xbf16, #tpu.memory_space<vmem>>, %arg4: memref<64x32xbf16, #tpu.memory_space<vmem>>, %arg5: memref<1x32xf32, #tpu.memory_space<vmem>>, %arg6: memref<16x32xf32, #tpu.memory_space<vmem>>, %arg7: memref<1x32xf32, #tpu.memory_space<vmem>>, %arg8: memref<1x32xf32, #tpu.memory_space<vmem>>, %arg9: memref<16x32xf32, #tpu.memory_space<vmem>>, %arg10: memref<16x32xf32, #tpu.memory_space<vmem>>) attributes {dimension_semantics = [#tpu.dimension_semantics<parallel>, #tpu.dimension_semantics<parallel>, #tpu.dimension_semantics<arbitrary>], iteration_bounds = array<i64: 1, 1, 1>, scalar_prefetch = 0 : i64, scratch_operands = 1 : i64, tpu.core_type = #tpu.core_type<tc>, window_params = [{transform_indices = @transform_0, window_bounds = array<i64: 16, 64>}, {transform_indices = @transform_1, window_bounds = array<i64: 64, 32>}, {transform_indices = @transform_2, window_bounds = array<i64: 1, 32>}, {transform_indices = @transform_3, window_bounds = array<i64: 16, 32>}, {transform_indices = @transform_4, window_bounds = array<i64: 1, 32>}, {transform_indices = @transform_5, window_bounds = array<i64: 1, 32>}, {transform_indices = @transform_6, window_bounds = array<i64: 16, 32>}]} {
    %c0_i32 = arith.constant 0 : i32
    %0 = arith.cmpi eq, %arg2, %c0_i32 : i32
    %1 = arith.extui %0 : i1 to i32
    %c0_i32_0 = arith.constant 0 : i32
    %2 = arith.cmpi ne, %1, %c0_i32_0 : i32
    scf.if %2 {
      %cst_10 = arith.constant 0.000000e+00 : f32
      %12 = vector.broadcast %cst_10 : f32 to vector<16x32xf32>
      %c0_11 = arith.constant 0 : index
      %c0_12 = arith.constant 0 : index
      %13 = vector.load %arg10[%c0_11, %c0_12] : memref<16x32xf32, #tpu.memory_space<vmem>>, vector<16x32xf32>
      tpu.vector_store %arg10[%c0_11, %c0_12], %12 {strides = array<i32>} : memref<16x32xf32, #tpu.memory_space<vmem>>, vector<16x32xf32>,
    } else {
    }
    %c0 = arith.constant 0 : index
    %c0_1 = arith.constant 0 : index
    %3 = vector.load %arg10[%c0, %c0_1] : memref<16x32xf32, #tpu.memory_space<vmem>>, vector<16x32xf32>
    %c0_2 = arith.constant 0 : index
    %c0_3 = arith.constant 0 : index
    %4 = vector.load %arg3[%c0_2, %c0_3] : memref<16x64xbf16, #tpu.memory_space<vmem>>, vector<16x64xbf16>
    %c0_4 = arith.constant 0 : index
    %c0_5 = arith.constant 0 : index
    %5 = vector.load %arg4[%c0_4, %c0_5] : memref<64x32xbf16, #tpu.memory_space<vmem>>, vector<64x32xbf16>
    %cst = arith.constant dense<0.000000e+00> : vector<16x32xf32>
    %6 = tpu.matmul %4, %5, %cst {dimension_numbers = #tpu.dot_dimension_numbers<[1], [0], [0], [1], [0, 0, 1, 1], [], []>} : vector<16x64xbf16>, vector<64x32xbf16>, vector<16x32xf32> -> vector<16x32xf32>
    %7 = arith.addf %3, %6 : vector<16x32xf32>
    %c0_6 = arith.constant 0 : index
    %c0_7 = arith.constant 0 : index
    %8 = vector.load %arg10[%c0_6, %c0_7] : memref<16x32xf32, #tpu.memory_space<vmem>>, vector<16x32xf32>
    tpu.vector_store %arg10[%c0_6, %c0_7], %7 {strides = array<i32>} : memref<16x32xf32, #tpu.memory_space<vmem>>, vector<16x32xf32>,
    %c0_i32_8 = arith.constant 0 : i32
    %9 = arith.cmpi eq, %arg2, %c0_i32_8 : i32
    %10 = arith.extui %9 : i1 to i32
    %c0_i32_9 = arith.constant 0 : i32
    %11 = arith.cmpi ne, %10, %c0_i32_9 : i32
    scf.if %11 {
      %c0_10 = arith.constant 0 : index
      %c0_11 = arith.constant 0 : index
      %12 = vector.load %arg10[%c0_10, %c0_11] : memref<16x32xf32, #tpu.memory_space<vmem>>, vector<16x32xf32>
      %c0_12 = arith.constant 0 : index
      %c0_13 = arith.constant 0 : index
      %13 = vector.load %arg5[%c0_12, %c0_13] : memref<1x32xf32, #tpu.memory_space<vmem>>, vector<1x32xf32>
      %14 = vector.broadcast %13 : vector<1x32xf32> to vector<16x32xf32>
      %15 = arith.addf %12, %14 : vector<16x32xf32>
      %c0_14 = arith.constant 0 : index
      %c0_15 = arith.constant 0 : index
      %16 = vector.load %arg6[%c0_14, %c0_15] : memref<16x32xf32, #tpu.memory_space<vmem>>, vector<16x32xf32>
      %17 = arith.addf %15, %16 : vector<16x32xf32>
      %cst_16 = arith.constant dense<0.000000e+00> : vector<16xf32>
      %18 = vector.multi_reduction <add>, %17, %cst_16 [1] : vector<16x32xf32> to vector<16xf32>
      %19 = vector.shape_cast %18 : vector<16xf32> to vector<16x1xf32>
      %cst_17 = arith.constant 3.200000e+01 : f32
      %20 = vector.broadcast %cst_17 : f32 to vector<16x1xf32>
      %21 = arith.divf %19, %20 : vector<16x1xf32>
      %22 = vector.broadcast %21 : vector<16x1xf32> to vector<16x32xf32>
      %23 = arith.subf %17, %22 : vector<16x32xf32>
      %24 = arith.mulf %23, %23 : vector<16x32xf32>
      %cst_18 = arith.constant dense<0.000000e+00> : vector<16xf32>
      %25 = vector.multi_reduction <add>, %24, %cst_18 [1] : vector<16x32xf32> to vector<16xf32>
      %26 = vector.shape_cast %25 : vector<16xf32> to vector<16x1xf32>
      %cst_19 = arith.constant 3.200000e+01 : f32
      %27 = vector.broadcast %cst_19 : f32 to vector<16x1xf32>
      %28 = arith.divf %26, %27 : vector<16x1xf32>
      %29 = vector.broadcast %21 : vector<16x1xf32> to vector<16x32xf32>
      %30 = arith.subf %17, %29 : vector<16x32xf32>
      %cst_20 = arith.constant 9.99999974E-6 : f32
      %31 = vector.broadcast %cst_20 : f32 to vector<16x1xf32>
      %32 = arith.addf %28, %31 : vector<16x1xf32>
      %33 = math.rsqrt %32 : vector<16x1xf32>
      %34 = vector.broadcast %33 : vector<16x1xf32> to vector<16x32xf32>
      %35 = arith.mulf %30, %34 : vector<16x32xf32>
      %c0_21 = arith.constant 0 : index
      %c0_22 = arith.constant 0 : index
      %36 = vector.load %arg7[%c0_21, %c0_22] : memref<1x32xf32, #tpu.memory_space<vmem>>, vector<1x32xf32>
      %37 = vector.broadcast %36 : vector<1x32xf32> to vector<16x32xf32>
      %38 = arith.mulf %35, %37 : vector<16x32xf32>
      %c0_23 = arith.constant 0 : index
      %c0_24 = arith.constant 0 : index
      %39 = vector.load %arg8[%c0_23, %c0_24] : memref<1x32xf32, #tpu.memory_space<vmem>>, vector<1x32xf32>
      %40 = vector.broadcast %39 : vector<1x32xf32> to vector<16x32xf32>
      %41 = arith.addf %38, %40 : vector<16x32xf32>
      %c0_25 = arith.constant 0 : index
      %c0_26 = arith.constant 0 : index
      %42 = vector.load %arg9[%c0_25, %c0_26] : memref<16x32xf32, #tpu.memory_space<vmem>>, vector<16x32xf32>
      tpu.vector_store %arg9[%c0_25, %c0_26], %41 {strides = array<i32>} : memref<16x32xf32, #tpu.memory_space<vmem>>, vector<16x32xf32>,
    } else {
    }
    return
  }
  func.func @transform_0(%arg0: i32, %arg1: i32, %arg2: i32) -> (i32, i32) {
    %c0_i32 = arith.constant 0 : i32
    return %arg0, %arg2 : i32, i32
  }
  func.func @transform_1(%arg0: i32, %arg1: i32, %arg2: i32) -> (i32, i32) {
    %c0_i32 = arith.constant 0 : i32
    return %arg2, %arg1 : i32, i32
  }
  func.func @transform_2(%arg0: i32, %arg1: i32, %arg2: i32) -> (i32, i32) {
    %c0_i32 = arith.constant 0 : i32
    %c0_i32_0 = arith.constant 0 : i32
    return %c0_i32, %arg1 : i32, i32
  }
  func.func @transform_3(%arg0: i32, %arg1: i32, %arg2: i32) -> (i32, i32) {
    %c0_i32 = arith.constant 0 : i32
    return %arg0, %arg1 : i32, i32
  }
  func.func @transform_4(%arg0: i32, %arg1: i32, %arg2: i32) -> (i32, i32) {
    %c0_i32 = arith.constant 0 : i32
    %c0_i32_0 = arith.constant 0 : i32
    return %c0_i32, %arg1 : i32, i32
  }
  func.func @transform_5(%arg0: i32, %arg1: i32, %arg2: i32) -> (i32, i32) {
    %c0_i32 = arith.constant 0 : i32
    %c0_i32_0 = arith.constant 0 : i32
    return %c0_i32, %arg1 : i32, i32
  }
  func.func @transform_6(%arg0: i32, %arg1: i32, %arg2: i32) -> (i32, i32) {
    %c0_i32 = arith.constant 0 : i32
    return %arg0, %arg1 : i32, i32
  }
}

module attributes {stable_mosaic.version = 11 : i64} {
  func.func @_mm_bias_kernel(%arg0: i32, %arg1: i32, %arg2: i32, %arg3: memref<16x32xbf16, #tpu.memory_space<vmem>>, %arg4: memref<32x16xbf16, #tpu.memory_space<vmem>>, %arg5: memref<1x16xf32, #tpu.memory_space<vmem>>, %arg6: memref<16x16xf32, #tpu.memory_space<vmem>>, %arg7: memref<16x16xf32, #tpu.memory_space<vmem>>) attributes {dimension_semantics = [#tpu.dimension_semantics<parallel>, #tpu.dimension_semantics<parallel>, #tpu.dimension_semantics<arbitrary>], iteration_bounds = array<i64: 1, 1, 1>, scalar_prefetch = 0 : i64, scratch_operands = 1 : i64, tpu.core_type = #tpu.core_type<tc>, window_params = [{transform_indices = @transform_0, window_bounds = array<i64: 16, 32>}, {transform_indices = @transform_1, window_bounds = array<i64: 32, 16>}, {transform_indices = @transform_2, window_bounds = array<i64: 1, 16>}, {transform_indices = @transform_3, window_bounds = array<i64: 16, 16>}]} {
    %c0_i32 = arith.constant 0 : i32
    %0 = arith.cmpi eq, %arg2, %c0_i32 : i32
    %1 = arith.extui %0 : i1 to i32
    %c0_i32_0 = arith.constant 0 : i32
    %2 = arith.cmpi ne, %1, %c0_i32_0 : i32
    scf.if %2 {
      %cst_10 = arith.constant 0.000000e+00 : f32
      %12 = vector.broadcast %cst_10 : f32 to vector<16x16xf32>
      %c0_11 = arith.constant 0 : index
      %c0_12 = arith.constant 0 : index
      %13 = vector.load %arg7[%c0_11, %c0_12] : memref<16x16xf32, #tpu.memory_space<vmem>>, vector<16x16xf32>
      tpu.vector_store %arg7[%c0_11, %c0_12], %12 {strides = array<i32>} : memref<16x16xf32, #tpu.memory_space<vmem>>, vector<16x16xf32>,
    } else {
    }
    %c0 = arith.constant 0 : index
    %c0_1 = arith.constant 0 : index
    %3 = vector.load %arg7[%c0, %c0_1] : memref<16x16xf32, #tpu.memory_space<vmem>>, vector<16x16xf32>
    %c0_2 = arith.constant 0 : index
    %c0_3 = arith.constant 0 : index
    %4 = vector.load %arg3[%c0_2, %c0_3] : memref<16x32xbf16, #tpu.memory_space<vmem>>, vector<16x32xbf16>
    %c0_4 = arith.constant 0 : index
    %c0_5 = arith.constant 0 : index
    %5 = vector.load %arg4[%c0_4, %c0_5] : memref<32x16xbf16, #tpu.memory_space<vmem>>, vector<32x16xbf16>
    %cst = arith.constant dense<0.000000e+00> : vector<16x16xf32>
    %6 = tpu.matmul %4, %5, %cst {dimension_numbers = #tpu.dot_dimension_numbers<[1], [0], [0], [1], [0, 0, 1, 1], [], []>} : vector<16x32xbf16>, vector<32x16xbf16>, vector<16x16xf32> -> vector<16x16xf32>
    %7 = arith.addf %3, %6 : vector<16x16xf32>
    %c0_6 = arith.constant 0 : index
    %c0_7 = arith.constant 0 : index
    %8 = vector.load %arg7[%c0_6, %c0_7] : memref<16x16xf32, #tpu.memory_space<vmem>>, vector<16x16xf32>
    tpu.vector_store %arg7[%c0_6, %c0_7], %7 {strides = array<i32>} : memref<16x16xf32, #tpu.memory_space<vmem>>, vector<16x16xf32>,
    %c0_i32_8 = arith.constant 0 : i32
    %9 = arith.cmpi eq, %arg2, %c0_i32_8 : i32
    %10 = arith.extui %9 : i1 to i32
    %c0_i32_9 = arith.constant 0 : i32
    %11 = arith.cmpi ne, %10, %c0_i32_9 : i32
    scf.if %11 {
      %c0_10 = arith.constant 0 : index
      %c0_11 = arith.constant 0 : index
      %12 = vector.load %arg7[%c0_10, %c0_11] : memref<16x16xf32, #tpu.memory_space<vmem>>, vector<16x16xf32>
      %c0_12 = arith.constant 0 : index
      %c0_13 = arith.constant 0 : index
      %13 = vector.load %arg5[%c0_12, %c0_13] : memref<1x16xf32, #tpu.memory_space<vmem>>, vector<1x16xf32>
      %14 = vector.broadcast %13 : vector<1x16xf32> to vector<16x16xf32>
      %15 = arith.addf %12, %14 : vector<16x16xf32>
      %c0_14 = arith.constant 0 : index
      %c0_15 = arith.constant 0 : index
      %16 = vector.load %arg6[%c0_14, %c0_15] : memref<16x16xf32, #tpu.memory_space<vmem>>, vector<16x16xf32>
      tpu.vector_store %arg6[%c0_14, %c0_15], %15 {strides = array<i32>} : memref<16x16xf32, #tpu.memory_space<vmem>>, vector<16x16xf32>,
    } else {
    }
    return
  }
  func.func @transform_0(%arg0: i32, %arg1: i32, %arg2: i32) -> (i32, i32) {
    %c0_i32 = arith.constant 0 : i32
    return %arg0, %arg2 : i32, i32
  }
  func.func @transform_1(%arg0: i32, %arg1: i32, %arg2: i32) -> (i32, i32) {
    %c0_i32 = arith.constant 0 : i32
    return %arg2, %arg1 : i32, i32
  }
  func.func @transform_2(%arg0: i32, %arg1: i32, %arg2: i32) -> (i32, i32) {
    %c0_i32 = arith.constant 0 : i32
    %c0_i32_0 = arith.constant 0 : i32
    return %c0_i32, %arg1 : i32, i32
  }
  func.func @transform_3(%arg0: i32, %arg1: i32, %arg2: i32) -> (i32, i32) {
    %c0_i32 = arith.constant 0 : i32
    return %arg0, %arg1 : i32, i32
  }
}

</mosaic_0001>

<llo_original>
// kernel: transformer_decoder_forward.19
$region0: #{transformer_decoder_forward.19}
  #allocation0 [shape = 'u32[]', space=smem, size = 0x4, offset = 0x4, fixed_abs, tag = 'smem constant byte address 0x4 - core index']
  #allocation1 [shape = 'u32[144,128]{1,0:T(1,128)}', space=vmem, size = 0x12000, scoped, tag = 'internal scratch']
  #allocation2 [shape = 'f32[16,96]{1,0:T(8,128)}', space=vmem, size = 0x2000, scoped, tag = 'scratch operand']
  %s0 = inlined_call_operand.vmem [shape: bf16[16,32], index: 0, kind: input, shape index: {}]
  %s1 = inlined_call_operand.vmem [shape: bf16[32,96], index: 1, kind: input, shape index: {}]
  %s2 = inlined_call_operand.vmem [shape: f32[1,96], index: 2, kind: input, shape index: {}]
  %s3 = inlined_call_operand.vmem [shape: bf16[16,96], index: 3, kind: output, shape index: {}]
  %s4 = sld [smem:[#allocation0]]
  $region30: #{transformer_decoder_forward.19} parent=0
    _
  %s6 = ssub.s32 1, %s4
  %s7 = scalar_select 0, %s6, %s4
  // Predicated region
  $region2: #{transformer_decoder_forward.19} parent=0 // pred_check
    _
  $region3: #{transformer_decoder_forward.19} parent=0 // pred_check_branch
    %9 = sbr.rel (0) target = $region5
  $region4: #{transformer_decoder_forward.19} parent=0 // pred_region
    _
  $region5: #{transformer_decoder_forward.19} parent=0 // pred_fallthru
    _
  // Predicated region
  $region6: #{transformer_decoder_forward.19} parent=0 // pred_check
    _
  $region7: #{transformer_decoder_forward.19} parent=0 // pred_check_branch
    %11 = sbr.rel (0) target = $region9
  $region8: #{transformer_decoder_forward.19} parent=0 // pred_region
    _
  $region9: #{transformer_decoder_forward.19} parent=0 // pred_fallthru
    _
  // Predicated region
  $region10: #{transformer_decoder_forward.19} parent=0 // pred_check
    _
  $region11: #{transformer_decoder_forward.19} parent=0 // pred_check_branch
    %13 = sbr.rel (0) target = $region13
  $region12: #{transformer_decoder_forward.19} parent=0 // pred_region
    _
  $region13: #{transformer_decoder_forward.19} parent=0 // pred_fallthru
    _
  %p15 = scmp.eq.s32.totalorder 0, 0
  // Predicated region
  $region14: #{transformer_decoder_forward.19} parent=0 // pred_check
    %p16 = pneg %p15
  $region15: #{transformer_decoder_forward.19} parent=0 // pred_check_branch
    %18 = sbr.rel (%p16) target = $region17
  $region16: #{transformer_decoder_forward.19} parent=0 // pred_region
    %vm19 = vcmask 785408
    %20 = vst.msk [vmem:[#allocation2] sm:$0xff] %vm19, 0.0
    %21 = vst.msk [vmem:[#allocation2 + $0x8] sm:$0xff] %vm19, 0.0
  $region17: #{transformer_decoder_forward.19} parent=0 // pred_fallthru
    _
  %v22 = vld [vmem:[#allocation2] sm:$0xff]
  %v23 = vld [vmem:[#allocation2 + $0x8] sm:$0xff]
  %v24 = vld [vmem:[%s0] sm:$0xf]
  %v25 = vld [vmem:[%s0 + $0x4] sm:$0xf]
  %v26 = vld [vmem:[%s1] sm:$0xf]
  %v27 = vld [vmem:[%s1 + $0x4] sm:$0xf]
  %v28 = vld [vmem:[%s1 + $0x8] sm:$0xf]
  %v29 = vld [vmem:[%s1 + $0xc] sm:$0xf]
  %v32 = vunpack.c.l.b16 %v24
  %v33 = vunpack.c.l.b16 %v25
  %v34 = vpack.c.b16 %v33, %v32
  %v39 = vunpack.c.l.b16 %v26
  %v40 = vunpack.c.l.b16 %v27
  %v41 = vunpack.c.l.b16 %v28
  %v42 = vunpack.c.l.b16 %v29
  %v43 = vpack.c.b16 %v40, %v39
  %v44 = vpack.c.b16 %v42, %v41
  %vm47 = vcmask 261120
  %v49 = vsel %vm47, %v34, 0
  %51 = vmatprep.subr.bf16.mxu0 0
  %52 = vmatpush1.bf16.msra.mxu0 %v43
  %53 = vmatprep.subr.bf16.mxu0 0
  %54 = vmatpush1.bf16.msra.mxu0 %v44
  %55 = vmatprep.subr.bf16.mxu0 0
  %56 = vmatpush1.bf16.msra.mxu0 0
  %57 = vmatprep.subr.bf16.mxu0 0
  %58 = vmatpush1.bf16.msra.mxu0 0
  %59 = vmatprep.subr.bf16.mxu0 0
  %60 = vmatpush1.bf16.msra.mxu0 0
  %61 = vmatprep.subr.bf16.mxu0 0
  %62 = vmatpush1.bf16.msra.mxu0 0
  %63 = vmatprep.subr.bf16.mxu0 0
  %64 = vmatpush1.bf16.msra.mxu0 0
  %65 = vmatprep.subr.bf16.mxu0 0
  %66 = vmatpush1.bf16.msra.mxu0 0
  %67 = vmatprep.subr.bf16.mxu0 0
  %68 = vmatpush1.bf16.msra.mxu0 0
  %69 = vmatprep.subr.bf16.mxu0 0
  %70 = vmatpush1.bf16.msra.mxu0 0
  %71 = vmatprep.subr.bf16.mxu0 0
  %72 = vmatpush1.bf16.msra.mxu0 0
  %73 = vmatprep.subr.bf16.mxu0 0
  %74 = vmatpush1.bf16.msra.mxu0 0
  %75 = vmatprep.subr.bf16.mxu0 0
  %76 = vmatpush1.bf16.msra.mxu0 0
  %77 = vmatprep.subr.bf16.mxu0 0
  %78 = vmatpush1.bf16.msra.mxu0 0
  %79 = vmatprep.subr.bf16.mxu0 0
  %80 = vmatpush1.bf16.msra.mxu0 0
  %81 = vmatprep.subr.bf16.mxu0 0
  %82 = vmatpush1.bf16.msra.mxu0 0
  %83 = vmatprep.mubr.bf16.mxu0 0
  %84 = vmatmul.mubr.bf16.gmra.mrb[0].mxu0 %v49
  %v85 = vpop.f32.mrb[0].mxu0
  %v86 = vadd.f32 0.0, %v85
  %v87 = vpop.f32.mrb[0].mxu0
  %v88 = vpop.f32.mrb[0].mxu0
  %v89 = vadd.f32 0.0, %v88
  %v90 = vpop.f32.mrb[0].mxu0
  %91 = vdwg.mxu0
  %v92 = vadd.f32 %v22, %v86
  %v93 = vadd.f32 %v23, %v89
  %vm94 = vcmask 785408
  %95 = vst.msk [vmem:[#allocation2] sm:$0xff] %vm94, %v92
  %96 = vst.msk [vmem:[#allocation2 + $0x8] sm:$0xff] %vm94, %v93
  // Predicated region
  $region18: #{transformer_decoder_forward.19} parent=0 // pred_check
    %p97 = pneg %p15
  $region19: #{transformer_decoder_forward.19} parent=0 // pred_check_branch
    %99 = sbr.rel (%p97) target = $region21
  $region20: #{transformer_decoder_forward.19} parent=0 // pred_region
    %v100 = vld [vmem:[#allocation2] sm:$0xff]
    %v101 = vld [vmem:[#allocation2 + $0x8] sm:$0xff]
    %v102 = vld [vmem:[%s2] sm:$0x1]
    %v104 = vlaneseq
    %v105 = vshrl.u32 %v104, 7
    %v106 = vsub.s32 0, %v105
    %v107 = vrot.slane %v102, %v106
    %v109 = vadd.f32 %v100, %v107
    %v110 = vadd.f32 %v101, %v107
    %v111 = vpack.c.bf16 %v110, %v109
    %v113 = vunpack.c.l.b16 %v111
    %v114 = vunpack.c.h.b16 %v111
    %v115 = vpack.c.b16 %v113, %v113
    %v116 = vpack.c.b16 %v114, %v114
    %vm119 = vcmask 781312
    %120 = vst.msk [vmem:[%s3] sm:$0xf] %vm119, %v115
    %121 = vst.msk [vmem:[%s3 + $0x4] sm:$0xf] %vm119, %v116
  $region21: #{transformer_decoder_forward.19} parent=0 // pred_fallthru
    _
  // Predicated region
  $region22: #{transformer_decoder_forward.19} parent=0 // pred_check
    _
  $region23: #{transformer_decoder_forward.19} parent=0 // pred_check_branch
    %123 = sbr.rel (0) target = $region25
  $region24: #{transformer_decoder_forward.19} parent=0 // pred_region
    _
  $region25: #{transformer_decoder_forward.19} parent=0 // pred_fallthru
    _
  // Predicated region
  $region26: #{transformer_decoder_forward.19} parent=0 // pred_check
    _
  $region27: #{transformer_decoder_forward.19} parent=0 // pred_check_branch
    %125 = sbr.rel (0) target = $region29
  $region28: #{transformer_decoder_forward.19} parent=0 // pred_region
    _
  $region29: #{transformer_decoder_forward.19} parent=0 // pred_fallthru
    _

// kernel: transformer_decoder_forward.20
$region0: #{transformer_decoder_forward.20}
  #allocation0 [shape = 'u32[]', space=smem, size = 0x4, offset = 0x4, fixed_abs, tag = 'smem constant byte address 0x4 - core index']
  #allocation1 [shape = 'u32[144,128]{1,0:T(1,128)}', space=vmem, size = 0x12000, scoped, tag = 'internal scratch']
  %s0 = inlined_call_operand.vmem [shape: bf16[2,8,32], index: 0, kind: input, shape index: {}]
  %s1 = inlined_call_operand.vmem [shape: bf16[2,8,32], index: 1, kind: input, shape index: {}]
  %s2 = inlined_call_operand.vmem [shape: bf16[2,8,32], index: 2, kind: input, shape index: {}]
  %s3 = inlined_call_operand.vmem [shape: bf16[2,8,32], index: 3, kind: output, shape index: {}]
  %s4 = sld [smem:[#allocation0]]
  $region45: #{transformer_decoder_forward.20} parent=0
    _
  %s6 = ssub.s32 1, %s4
  %s7 = scalar_select 0, %s6, %s4
  loop: start=0, step=1, limit=4
  $region2: #{transformer_decoder_forward.20} parent=0 // loop_pre_header
    _
  $region3: #{transformer_decoder_forward.20} parent=0 // loop_header
    %s9 = sphi 0, %s13
    %p10 = scmp.ge.s32.totalorder %s9, 4
    %s19 = sphi 0, %s21
    %s22 = sphi 0, %s19
    %s23 = sphi 0, %s22
    %s39 = sphi 0, %s23
    %s45 = sphi 0, %s47
    %s48 = sphi 0, %s45
    %s49 = sphi 0, %s48
    %s65 = sphi 0, %s49
    %s71 = sphi 0, %s73
    %s74 = sphi 0, %s71
    %s75 = sphi 0, %s74
    %s91 = sphi 0, %s75
    %s97 = sphi 0, %s99
    %s100 = sphi 0, %s97
    %s101 = sphi 0, %s100
    %s117 = sphi 0, %s101
  $region4: #{transformer_decoder_forward.20} parent=0 // loop_header_branch
    %12 = sbr.rel (%p10) target = $region8
  $region5: #{transformer_decoder_forward.20} parent=0 // loop_body
    %s14 = ssub.s32 %s9, 1
    %s15 = ssub.s32 %s9, 2
    %s16 = sadd.s32 %s9, 1
    %s17 = ssub.s32 %s9, %s16
    %p18 = scmp.eq.s32.totalorder %s17, 0
    %s20 = sadd.s32 %s19, 1
    %s21 = scalar_select %p18, %s19, %s20
    %p24 = pneg %p18
    %p25 = scmp.eq.s32.totalorder %s9, 1
    %p26 = por %p24, %p25
    %p27 = scmp.ne.s32.totalorder %s19, %s22
    %p28 = scmp.eq.s32.totalorder %s9, 0
    %p29 = por %p27, %p28
    %p30 = scmp.ne.s32.totalorder %s19, %s22
    %p31 = scmp.eq.s32.totalorder %s14, 1
    %p32 = por %p30, %p31
    %p33 = scmp.ne.s32.totalorder %s22, %s23
    %p34 = scmp.eq.s32.totalorder %s14, 0
    %p35 = por %p33, %p34
    %p36 = scmp.ne.s32.totalorder %s22, %s23
    %p37 = scmp.eq.s32.totalorder %s15, 1
    %p38 = por %p36, %p37
    %p40 = scmp.ne.s32.totalorder %s23, %s39
    %p41 = scmp.eq.s32.totalorder %s15, 0
    %p42 = por %p40, %p41
    %s43 = ssub.s32 %s9, %s16
    %p44 = scmp.eq.s32.totalorder %s43, 0
    %s46 = sadd.s32 %s45, 1
    %s47 = scalar_select %p44, %s45, %s46
    %p50 = pneg %p44
    %p51 = scmp.eq.s32.totalorder %s9, 1
    %p52 = por %p50, %p51
    %p53 = scmp.ne.s32.totalorder %s45, %s48
    %p54 = scmp.eq.s32.totalorder %s9, 0
    %p55 = por %p53, %p54
    %p56 = scmp.ne.s32.totalorder %s45, %s48
    %p57 = scmp.eq.s32.totalorder %s14, 1
    %p58 = por %p56, %p57
    %p59 = scmp.ne.s32.totalorder %s48, %s49
    %p60 = scmp.eq.s32.totalorder %s14, 0
    %p61 = por %p59, %p60
    %p62 = scmp.ne.s32.totalorder %s48, %s49
    %p63 = scmp.eq.s32.totalorder %s15, 1
    %p64 = por %p62, %p63
    %p66 = scmp.ne.s32.totalorder %s49, %s65
    %p67 = scmp.eq.s32.totalorder %s15, 0
    %p68 = por %p66, %p67
    %s69 = ssub.s32 %s9, %s16
    %p70 = scmp.eq.s32.totalorder %s69, 0
    %s72 = sadd.s32 %s71, 1
    %s73 = scalar_select %p70, %s71, %s72
    %p76 = pneg %p70
    %p77 = scmp.eq.s32.totalorder %s9, 1
    %p78 = por %p76, %p77
    %p79 = scmp.ne.s32.totalorder %s71, %s74
    %p80 = scmp.eq.s32.totalorder %s9, 0
    %p81 = por %p79, %p80
    %p82 = scmp.ne.s32.totalorder %s71, %s74
    %p83 = scmp.eq.s32.totalorder %s14, 1
    %p84 = por %p82, %p83
    %p85 = scmp.ne.s32.totalorder %s74, %s75
    %p86 = scmp.eq.s32.totalorder %s14, 0
    %p87 = por %p85, %p86
    %p88 = scmp.ne.s32.totalorder %s74, %s75
    %p89 = scmp.eq.s32.totalorder %s15, 1
    %p90 = por %p88, %p89
    %p92 = scmp.ne.s32.totalorder %s75, %s91
    %p93 = scmp.eq.s32.totalorder %s15, 0
    %p94 = por %p92, %p93
    %s95 = ssub.s32 %s9, %s16
    %p96 = scmp.eq.s32.totalorder %s95, 0
    %s98 = sadd.s32 %s97, 1
    %s99 = scalar_select %p96, %s97, %s98
    %p102 = pneg %p96
    %p103 = scmp.eq.s32.totalorder %s9, 1
    %p104 = por %p102, %p103
    %p105 = scmp.ne.s32.totalorder %s97, %s100
    %p106 = scmp.eq.s32.totalorder %s9, 0
    %p107 = por %p105, %p106
    %p108 = scmp.ne.s32.totalorder %s97, %s100
    %p109 = scmp.eq.s32.totalorder %s14, 1
    %p110 = por %p108, %p109
    %p111 = scmp.ne.s32.totalorder %s100, %s101
    %p112 = scmp.eq.s32.totalorder %s14, 0
    %p113 = por %p111, %p112
    %p114 = scmp.ne.s32.totalorder %s100, %s101
    %p115 = scmp.eq.s32.totalorder %s15, 1
    %p116 = por %p114, %p115
    %p118 = scmp.ne.s32.totalorder %s101, %s117
    %p119 = scmp.eq.s32.totalorder %s15, 0
    %p120 = por %p118, %p119
    %p121 = scmp.le.s32.totalorder 1, %s9
    %p122 = scmp.lt.s32.totalorder %s9, 3
    %p123 = pnand %p121, %p122
    %p124 = pneg %p123
    // Predicated region
    $region9: #{transformer_decoder_forward.20} parent=5 // pred_check
      _
    $region10: #{transformer_decoder_forward.20} parent=5 // pred_check_branch
      %126 = sbr.rel (%p123) target = $region12
    $region11: #{transformer_decoder_forward.20} parent=5 // pred_region
      %s127 = ssub.s32 %s9, 1
    $region12: #{transformer_decoder_forward.20} parent=5 // pred_fallthru
      _
    %p128 = scmp.lt.s32.totalorder %s9, 2
    // Predicated region
    $region13: #{transformer_decoder_forward.20} parent=5 // pred_check
      %p129 = pneg %p128
    $region14: #{transformer_decoder_forward.20} parent=5 // pred_check_branch
      %131 = sbr.rel (%p129) target = $region16
    $region15: #{transformer_decoder_forward.20} parent=5 // pred_region
      // Predicated region
      $region17: #{transformer_decoder_forward.20} parent=15 // pred_check
        %p132 = pneg %p29
      $region18: #{transformer_decoder_forward.20} parent=15 // pred_check_branch
        %134 = sbr.rel (%p132) target = $region20
      $region19: #{transformer_decoder_forward.20} parent=15 // pred_region
        %p135 = scmp.lt.s32.totalorder %s9, 1
        %s136 = scalar_select %p135, %s9, 1
        %s137 = smul.addr %s136, 4
        %s138 = scalar_lea.vmem %s0, %s137
      $region20: #{transformer_decoder_forward.20} parent=15 // pred_fallthru
        _
      // Predicated region
      $region21: #{transformer_decoder_forward.20} parent=15 // pred_check
        %p139 = pneg %p55
      $region22: #{transformer_decoder_forward.20} parent=15 // pred_check_branch
        %141 = sbr.rel (%p139) target = $region24
      $region23: #{transformer_decoder_forward.20} parent=15 // pred_region
        %p142 = scmp.lt.s32.totalorder %s9, 1
        %s143 = scalar_select %p142, %s9, 1
        %s144 = smul.addr %s143, 4
        %s145 = scalar_lea.vmem %s1, %s144
      $region24: #{transformer_decoder_forward.20} parent=15 // pred_fallthru
        _
      // Predicated region
      $region25: #{transformer_decoder_forward.20} parent=15 // pred_check
        %p146 = pneg %p81
      $region26: #{transformer_decoder_forward.20} parent=15 // pred_check_branch
        %148 = sbr.rel (%p146) target = $region28
      $region27: #{transformer_decoder_forward.20} parent=15 // pred_region
        %p149 = scmp.lt.s32.totalorder %s9, 1
        %s150 = scalar_select %p149, %s9, 1
        %s151 = smul.addr %s150, 4
        %s152 = scalar_lea.vmem %s2, %s151
      $region28: #{transformer_decoder_forward.20} parent=15 // pred_fallthru
        _
    $region16: #{transformer_decoder_forward.20} parent=5 // pred_fallthru
      _
    %p153 = scmp.le.s32.totalorder 1, %s9
    %p154 = scmp.lt.s32.totalorder %s9, 3
    %p155 = pnand %p153, %p154
    %p156 = pneg %p155
    // Predicated region
    $region29: #{transformer_decoder_forward.20} parent=5 // pred_check
      _
    $region30: #{transformer_decoder_forward.20} parent=5 // pred_check_branch
      %158 = sbr.rel (%p155) target = $region32
    $region31: #{transformer_decoder_forward.20} parent=5 // pred_region
      %s159 = ssub.s32 %s9, 1
      %p160 = scmp.lt.s32.totalorder %s14, 1
      %s161 = scalar_select %p160, %s14, 1
      %s162 = smul.addr %s161, 4
      %s163 = scalar_lea.vmem %s0, %s162
      %p164 = pneg %p35
      %p165 = pneg %p32
      %p166 = scmp.lt.s32.totalorder %s14, 1
      %s167 = scalar_select %p166, %s14, 1
      %s168 = smul.addr %s167, 4
      %s169 = scalar_lea.vmem %s1, %s168
      %p170 = pneg %p61
      %p171 = pneg %p58
      %p172 = scmp.lt.s32.totalorder %s14, 1
      %s173 = scalar_select %p172, %s14, 1
      %s174 = smul.addr %s173, 4
      %s175 = scalar_lea.vmem %s2, %s174
      %p176 = pneg %p87
      %p177 = pneg %p84
      %p178 = pneg %p113
      %p179 = pneg %p110
      %p180 = scmp.lt.s32.totalorder %s14, 1
      %s181 = scalar_select %p180, %s14, 1
      %s182 = smul.addr %s181, 4
      %s183 = scalar_lea.vmem %s3, %s182
      %p184 = scmp.lt.s32.totalorder %s14, 1
      %s185 = scalar_select %p184, %s14, 1
      %s186 = smul.addr %s185, 4
      %s187 = scalar_lea.vmem %s0, %s186
      %p188 = scmp.lt.s32.totalorder %s14, 1
      %s189 = scalar_select %p188, %s14, 1
      %s190 = smul.addr %s189, 4
      %s191 = scalar_lea.vmem %s1, %s190
      %p192 = scmp.lt.s32.totalorder %s14, 1
      %s193 = scalar_select %p192, %s14, 1
      %s194 = smul.addr %s193, 4
      %s195 = scalar_lea.vmem %s2, %s194
      %p196 = scmp.lt.s32.totalorder %s14, 1
      %s197 = scalar_select %p196, %s14, 1
      %s198 = smul.addr %s197, 4
      %s199 = scalar_lea.vmem %s3, %s198
      %v200 = vlaneseq
      %v201 = vshrl.u32 %v200, 7
      %v202 = vlaneseq
      %v203 = vand.u32 %v202, 127
      %vm204 = vcmp.gt.s32.totalorder %v203, %v201
      %v205 = vsel %vm204, -1e+30, 0.0
      %v206 = vld [vmem:[%s187] sm:$0xf]
      %v207 = vunpack.c.l.bf16 %v206
      %v208 = vld [vmem:[%s191] sm:$0xf]
      %v209 = vunpack.c.l.bf16 %v208
      %v210 = vld [vmem:[%s195] sm:$0xf]
      %v211 = vunpack.c.l.bf16 %v210
      %vm212 = vcmask 64512
      %v214 = vsel %vm212, %v207, 0
      %v217 = vsel %vm212, %v209, 0
      %219 = vmatprep.subr.mxu0 0.0
      %220 = vmatpush1.xpose.msra.mxu0 %v217
      %221 = vmatprep.subr.mxu0 0.0
      %222 = vmatpush1.xpose.msra.mxu0 0.0
      %223 = vmatprep.subr.mxu0 0.0
      %224 = vmatpush1.xpose.msra.mxu0 0.0
      %225 = vmatprep.subr.mxu0 0.0
      %226 = vmatpush1.xpose.msra.mxu0 0.0
      %227 = vmatprep.subr.mxu0 0.0
      %228 = vmatpush1.xpose.msra.mxu0 0.0
      %229 = vmatprep.subr.mxu0 0.0
      %230 = vmatpush1.xpose.msra.mxu0 0.0
      %231 = vmatprep.subr.mxu0 0.0
      %232 = vmatpush1.xpose.msra.mxu0 0.0
      %233 = vmatprep.subr.mxu0 0.0
      %234 = vmatpush1.xpose.msra.mxu0 0.0
      %235 = vmatprep.subr.mxu0 0.0
      %236 = vmatpush1.xpose.msra.mxu0 0.0
      %237 = vmatprep.subr.mxu0 0.0
      %238 = vmatpush1.xpose.msra.mxu0 0.0
      %239 = vmatprep.subr.mxu0 0.0
      %240 = vmatpush1.xpose.msra.mxu0 0.0
      %241 = vmatprep.subr.mxu0 0.0
      %242 = vmatpush1.xpose.msra.mxu0 0.0
      %243 = vmatprep.subr.mxu0 0.0
      %244 = vmatpush1.xpose.msra.mxu0 0.0
      %245 = vmatprep.subr.mxu0 0.0
      %246 = vmatpush1.xpose.msra.mxu0 0.0
      %247 = vmatprep.subr.mxu0 0.0
      %248 = vmatpush1.xpose.msra.mxu0 0.0
      %249 = vmatprep.subr.mxu0 0.0
      %250 = vmatpush1.xpose.msra.mxu0 0.0
      %251 = vmatprep.subr.mxu0 0.0
      %252 = vmatpush1.xpose.msra.mxu0 0.0
      %253 = vmatprep.subr.mxu0 0.0
      %254 = vmatpush1.xpose.msra.mxu0 0.0
      %255 = vmatprep.subr.mxu0 0.0
      %256 = vmatpush1.xpose.msra.mxu0 0.0
      %257 = vmatprep.subr.mxu0 0.0
      %258 = vmatpush1.xpose.msra.mxu0 0.0
      %259 = vmatprep.subr.mxu0 0.0
      %260 = vmatpush1.xpose.msra.mxu0 0.0
      %261 = vmatprep.subr.mxu0 0.0
      %262 = vmatpush1.xpose.msra.mxu0 0.0
      %263 = vmatprep.subr.mxu0 0.0
      %264 = vmatpush1.xpose.msra.mxu0 0.0
      %265 = vmatprep.subr.mxu0 0.0
      %266 = vmatpush1.xpose.msra.mxu0 0.0
      %267 = vmatprep.subr.mxu0 0.0
      %268 = vmatpush1.xpose.msra.mxu0 0.0
      %269 = vmatprep.subr.mxu0 0.0
      %270 = vmatpush1.xpose.msra.mxu0 0.0
      %271 = vmatprep.subr.mxu0 0.0
      %272 = vmatpush1.xpose.msra.mxu0 0.0
      %273 = vmatprep.subr.mxu0 0.0
      %274 = vmatpush1.xpose.msra.mxu0 0.0
      %275 = vmatprep.subr.mxu0 0.0
      %276 = vmatpush1.xpose.msra.mxu0 0.0
      %277 = vmatprep.subr.mxu0 0.0
      %278 = vmatpush1.xpose.msra.mxu0 0.0
      %279 = vmatprep.subr.mxu0 0.0
      %280 = vmatpush1.xpose.msra.mxu0 0.0
      %281 = vmatprep.subr.mxu0 0.0
      %282 = vmatpush1.xpose.msra.mxu0 0.0
      %283 = vmatprep.mubr.f32.mxu0 0.0
      %284 = vmatmul.mubr.f32.gmra.mrb[0].mxu0 %v214
      %v285 = vpop.f32.mrb[0].mxu0
      %v286 = vadd.f32 0.0, %v285
      %v287 = vpop.f32.mrb[0].mxu0
      %288 = vdwg.mxu0
      %v289 = vmul.f32 %v286, 0.35355338
      %v290 = vadd.f32 %v289, %v205
      %v291 = vsel %vm212, %v290, -inf
      %292 = vmax.xlane.f32.xlu0 %v291
      %v293 = vpop.xlane.xlu0 %292
      %v294 = vsub.f32 %v290, %v293
      %v295 = vmul.f32 %v294, 1.442695
      %v296 = vpow.pop %v295
      %v297 = vsel %vm212, %v296, 0.0
      %298 = vadd.xlane.f32.xlu0 %v297
      %v299 = vpop.xlane.xlu0 %298
      %v300 = vrcp.pop %v299
      %v301 = vmul.f32 %v296, %v300
      %v303 = vsel %vm212, %v301, 0
      %305 = vmatprep.subr.mxu0 0.0
      %306 = vmatpush1.msra.mxu0 %v211
      %307 = vmatprep.subr.mxu0 0.0
      %308 = vmatpush1.msra.mxu0 0.0
      %309 = vmatprep.subr.mxu0 0.0
      %310 = vmatpush1.msra.mxu0 0.0
      %311 = vmatprep.subr.mxu0 0.0
      %312 = vmatpush1.msra.mxu0 0.0
      %313 = vmatprep.subr.mxu0 0.0
      %314 = vmatpush1.msra.mxu0 0.0
      %315 = vmatprep.subr.mxu0 0.0
      %316 = vmatpush1.msra.mxu0 0.0
      %317 = vmatprep.subr.mxu0 0.0
      %318 = vmatpush1.msra.mxu0 0.0
      %319 = vmatprep.subr.mxu0 0.0
      %320 = vmatpush1.msra.mxu0 0.0
      %321 = vmatprep.subr.mxu0 0.0
      %322 = vmatpush1.msra.mxu0 0.0
      %323 = vmatprep.subr.mxu0 0.0
      %324 = vmatpush1.msra.mxu0 0.0
      %325 = vmatprep.subr.mxu0 0.0
      %326 = vmatpush1.msra.mxu0 0.0
      %327 = vmatprep.subr.mxu0 0.0
      %328 = vmatpush1.msra.mxu0 0.0
      %329 = vmatprep.subr.mxu0 0.0
      %330 = vmatpush1.msra.mxu0 0.0
      %331 = vmatprep.subr.mxu0 0.0
      %332 = vmatpush1.msra.mxu0 0.0
      %333 = vmatprep.subr.mxu0 0.0
      %334 = vmatpush1.msra.mxu0 0.0
      %335 = vmatprep.subr.mxu0 0.0
      %336 = vmatpush1.msra.mxu0 0.0
      %337 = vmatprep.subr.mxu0 0.0
      %338 = vmatpush1.msra.mxu0 0.0
      %339 = vmatprep.subr.mxu0 0.0
      %340 = vmatpush1.msra.mxu0 0.0
      %341 = vmatprep.subr.mxu0 0.0
      %342 = vmatpush1.msra.mxu0 0.0
      %343 = vmatprep.subr.mxu0 0.0
      %344 = vmatpush1.msra.mxu0 0.0
      %345 = vmatprep.subr.mxu0 0.0
      %346 = vmatpush1.msra.mxu0 0.0
      %347 = vmatprep.subr.mxu0 0.0
      %348 = vmatpush1.msra.mxu0 0.0
      %349 = vmatprep.subr.mxu0 0.0
      %350 = vmatpush1.msra.mxu0 0.0
      %351 = vmatprep.subr.mxu0 0.0
      %352 = vmatpush1.msra.mxu0 0.0
      %353 = vmatprep.subr.mxu0 0.0
      %354 = vmatpush1.msra.mxu0 0.0
      %355 = vmatprep.subr.mxu0 0.0
      %356 = vmatpush1.msra.mxu0 0.0
      %357 = vmatprep.subr.mxu0 0.0
      %358 = vmatpush1.msra.mxu0 0.0
      %359 = vmatprep.subr.mxu0 0.0
      %360 = vmatpush1.msra.mxu0 0.0
      %361 = vmatprep.subr.mxu0 0.0
      %362 = vmatpush1.msra.mxu0 0.0
      %363 = vmatprep.subr.mxu0 0.0
      %364 = vmatpush1.msra.mxu0 0.0
      %365 = vmatprep.subr.mxu0 0.0
      %366 = vmatpush1.msra.mxu0 0.0
      %367 = vmatprep.subr.mxu0 0.0
      %368 = vmatpush1.msra.mxu0 0.0
      %369 = vmatprep.mubr.f32.mxu0 0.0
      %370 = vmatmul.mubr.f32.gmra.mrb[0].mxu0 %v303
      %v371 = vpop.f32.mrb[0].mxu0
      %v372 = vadd.f32 0.0, %v371
      %v373 = vpop.f32.mrb[0].mxu0
      %374 = vdwg.mxu0
      %v375 = vpack.c.bf16 %v372, %v372
      %vm376 = vcmask 60416
      %377 = vst.msk [vmem:[%s199] sm:$0xf] %vm376, %v375
      %v378 = vld [vmem:[%s187] sm:$0xf]
      %v379 = vunpack.c.l.bf16 %v378
      %v380 = vld [vmem:[%s191] sm:$0xf]
      %v381 = vunpack.c.l.bf16 %v380
      %v382 = vld [vmem:[%s195] sm:$0xf]
      %v383 = vunpack.c.l.bf16 %v382
      %385 = vrot.lane.b32.xlu0 %v379, 120
      %v386 = vpop.permute.xlu0 %385
      %388 = vrot.lane.b32.xlu0 %v381, 120
      %v389 = vpop.permute.xlu0 %388
      %v390 = vsel %vm212, %v386, 0
      %v392 = vsel %vm212, %v389, 0
      %394 = vmatprep.subr.mxu0 0.0
      %395 = vmatpush1.xpose.msra.mxu0 %v392
      %396 = vmatprep.subr.mxu0 0.0
      %397 = vmatpush1.xpose.msra.mxu0 0.0
      %398 = vmatprep.subr.mxu0 0.0
      %399 = vmatpush1.xpose.msra.mxu0 0.0
      %400 = vmatprep.subr.mxu0 0.0
      %401 = vmatpush1.xpose.msra.mxu0 0.0
      %402 = vmatprep.subr.mxu0 0.0
      %403 = vmatpush1.xpose.msra.mxu0 0.0
      %404 = vmatprep.subr.mxu0 0.0
      %405 = vmatpush1.xpose.msra.mxu0 0.0
      %406 = vmatprep.subr.mxu0 0.0
      %407 = vmatpush1.xpose.msra.mxu0 0.0
      %408 = vmatprep.subr.mxu0 0.0
      %409 = vmatpush1.xpose.msra.mxu0 0.0
      %410 = vmatprep.subr.mxu0 0.0
      %411 = vmatpush1.xpose.msra.mxu0 0.0
      %412 = vmatprep.subr.mxu0 0.0
      %413 = vmatpush1.xpose.msra.mxu0 0.0
      %414 = vmatprep.subr.mxu0 0.0
      %415 = vmatpush1.xpose.msra.mxu0 0.0
      %416 = vmatprep.subr.mxu0 0.0
      %417 = vmatpush1.xpose.msra.mxu0 0.0
      %418 = vmatprep.subr.mxu0 0.0
      %419 = vmatpush1.xpose.msra.mxu0 0.0
      %420 = vmatprep.subr.mxu0 0.0
      %421 = vmatpush1.xpose.msra.mxu0 0.0
      %422 = vmatprep.subr.mxu0 0.0
      %423 = vmatpush1.xpose.msra.mxu0 0.0
      %424 = vmatprep.subr.mxu0 0.0
      %425 = vmatpush1.xpose.msra.mxu0 0.0
      %426 = vmatprep.subr.mxu0 0.0
      %427 = vmatpush1.xpose.msra.mxu0 0.0
      %428 = vmatprep.subr.mxu0 0.0
      %429 = vmatpush1.xpose.msra.mxu0 0.0
      %430 = vmatprep.subr.mxu0 0.0
      %431 = vmatpush1.xpose.msra.mxu0 0.0
      %432 = vmatprep.subr.mxu0 0.0
      %433 = vmatpush1.xpose.msra.mxu0 0.0
      %434 = vmatprep.subr.mxu0 0.0
      %435 = vmatpush1.xpose.msra.mxu0 0.0
      %436 = vmatprep.subr.mxu0 0.0
      %437 = vmatpush1.xpose.msra.mxu0 0.0
      %438 = vmatprep.subr.mxu0 0.0
      %439 = vmatpush1.xpose.msra.mxu0 0.0
      %440 = vmatprep.subr.mxu0 0.0
      %441 = vmatpush1.xpose.msra.mxu0 0.0
      %442 = vmatprep.subr.mxu0 0.0
      %443 = vmatpush1.xpose.msra.mxu0 0.0
      %444 = vmatprep.subr.mxu0 0.0
      %445 = vmatpush1.xpose.msra.mxu0 0.0
      %446 = vmatprep.subr.mxu0 0.0
      %447 = vmatpush1.xpose.msra.mxu0 0.0
      %448 = vmatprep.subr.mxu0 0.0
      %449 = vmatpush1.xpose.msra.mxu0 0.0
      %450 = vmatprep.subr.mxu0 0.0
      %451 = vmatpush1.xpose.msra.mxu0 0.0
      %452 = vmatprep.subr.mxu0 0.0
      %453 = vmatpush1.xpose.msra.mxu0 0.0
      %454 = vmatprep.subr.mxu0 0.0
      %455 = vmatpush1.xpose.msra.mxu0 0.0
      %456 = vmatprep.subr.mxu0 0.0
      %457 = vmatpush1.xpose.msra.mxu0 0.0
      %458 = vmatprep.mubr.f32.mxu0 0.0
      %459 = vmatmul.mubr.f32.gmra.mrb[0].mxu0 %v390
      %v460 = vpop.f32.mrb[0].mxu0
      %v461 = vadd.f32 0.0, %v460
      %v462 = vpop.f32.mrb[0].mxu0
      %463 = vdwg.mxu0
      %v464 = vmul.f32 %v461, 0.35355338
      %v465 = vadd.f32 %v464, %v205
      %v466 = vsel %vm212, %v465, -inf
      %467 = vmax.xlane.f32.xlu0 %v466
      %v468 = vpop.xlane.xlu0 %467
      %v469 = vsub.f32 %v465, %v468
      %v470 = vmul.f32 %v469, 1.442695
      %v471 = vpow.pop %v470
      %v472 = vsel %vm212, %v471, 0.0
      %473 = vadd.xlane.f32.xlu0 %v472
      %v474 = vpop.xlane.xlu0 %473
      %v475 = vrcp.pop %v474
      %v476 = vmul.f32 %v471, %v475
      %478 = vrot.lane.b32.xlu0 %v383, 120
      %v479 = vpop.permute.xlu0 %478
      %v482 = vsel %vm212, %v476, 0
      %484 = vmatprep.subr.mxu0 0.0
      %485 = vmatpush1.msra.mxu0 %v479
      %486 = vmatprep.subr.mxu0 0.0
      %487 = vmatpush1.msra.mxu0 0.0
      %488 = vmatprep.subr.mxu0 0.0
      %489 = vmatpush1.msra.mxu0 0.0
      %490 = vmatprep.subr.mxu0 0.0
      %491 = vmatpush1.msra.mxu0 0.0
      %492 = vmatprep.subr.mxu0 0.0
      %493 = vmatpush1.msra.mxu0 0.0
      %494 = vmatprep.subr.mxu0 0.0
      %495 = vmatpush1.msra.mxu0 0.0
      %496 = vmatprep.subr.mxu0 0.0
      %497 = vmatpush1.msra.mxu0 0.0
      %498 = vmatprep.subr.mxu0 0.0
      %499 = vmatpush1.msra.mxu0 0.0
      %500 = vmatprep.subr.mxu0 0.0
      %501 = vmatpush1.msra.mxu0 0.0
      %502 = vmatprep.subr.mxu0 0.0
      %503 = vmatpush1.msra.mxu0 0.0
      %504 = vmatprep.subr.mxu0 0.0
      %505 = vmatpush1.msra.mxu0 0.0
      %506 = vmatprep.subr.mxu0 0.0
      %507 = vmatpush1.msra.mxu0 0.0
      %508 = vmatprep.subr.mxu0 0.0
      %509 = vmatpush1.msra.mxu0 0.0
      %510 = vmatprep.subr.mxu0 0.0
      %511 = vmatpush1.msra.mxu0 0.0
      %512 = vmatprep.subr.mxu0 0.0
      %513 = vmatpush1.msra.mxu0 0.0
      %514 = vmatprep.subr.mxu0 0.0
      %515 = vmatpush1.msra.mxu0 0.0
      %516 = vmatprep.subr.mxu0 0.0
      %517 = vmatpush1.msra.mxu0 0.0
      %518 = vmatprep.subr.mxu0 0.0
      %519 = vmatpush1.msra.mxu0 0.0
      %520 = vmatprep.subr.mxu0 0.0
      %521 = vmatpush1.msra.mxu0 0.0
      %522 = vmatprep.subr.mxu0 0.0
      %523 = vmatpush1.msra.mxu0 0.0
      %524 = vmatprep.subr.mxu0 0.0
      %525 = vmatpush1.msra.mxu0 0.0
      %526 = vmatprep.subr.mxu0 0.0
      %527 = vmatpush1.msra.mxu0 0.0
      %528 = vmatprep.subr.mxu0 0.0
      %529 = vmatpush1.msra.mxu0 0.0
      %530 = vmatprep.subr.mxu0 0.0
      %531 = vmatpush1.msra.mxu0 0.0
      %532 = vmatprep.subr.mxu0 0.0
      %533 = vmatpush1.msra.mxu0 0.0
      %534 = vmatprep.subr.mxu0 0.0
      %535 = vmatpush1.msra.mxu0 0.0
      %536 = vmatprep.subr.mxu0 0.0
      %537 = vmatpush1.msra.mxu0 0.0
      %538 = vmatprep.subr.mxu0 0.0
      %539 = vmatpush1.msra.mxu0 0.0
      %540 = vmatprep.subr.mxu0 0.0
      %541 = vmatpush1.msra.mxu0 0.0
      %542 = vmatprep.subr.mxu0 0.0
      %543 = vmatpush1.msra.mxu0 0.0
      %544 = vmatprep.subr.mxu0 0.0
      %545 = vmatpush1.msra.mxu0 0.0
      %546 = vmatprep.subr.mxu0 0.0
      %547 = vmatpush1.msra.mxu0 0.0
      %548 = vmatprep.mubr.f32.mxu0 0.0
      %549 = vmatmul.mubr.f32.gmra.mrb[0].mxu0 %v482
      %v550 = vpop.f32.mrb[0].mxu0
      %v551 = vadd.f32 0.0, %v550
      %v552 = vpop.f32.mrb[0].mxu0
      %553 = vdwg.mxu0
      %v554 = vpack.c.bf16 %v551, %v551
      %v556 = vunpack.c.l.b16 %v554
      %v557 = vpack.c.b16 %v556, %v556
      %558 = vrot.lane.b32.xlu0 %v557, 8
      %v559 = vpop.permute.xlu0 %558
      %vm561 = vcmask 126016
      %562 = vst.msk [vmem:[%s199] sm:$0xf] %vm561, %v559
      %v563 = vld [vmem:[%s187] sm:$0xf]
      %v564 = vunpack.c.l.bf16 %v563
      %v565 = vld [vmem:[%s191] sm:$0xf]
      %v566 = vunpack.c.l.bf16 %v565
      %v567 = vld [vmem:[%s195] sm:$0xf]
      %v568 = vunpack.c.l.bf16 %v567
      %570 = vrot.lane.b32.xlu0 %v564, 112
      %v571 = vpop.permute.xlu0 %570
      %573 = vrot.lane.b32.xlu0 %v566, 112
      %v574 = vpop.permute.xlu0 %573
      %v575 = vsel %vm212, %v571, 0
      %v577 = vsel %vm212, %v574, 0
      %579 = vmatprep.subr.mxu0 0.0
      %580 = vmatpush1.xpose.msra.mxu0 %v577
      %581 = vmatprep.subr.mxu0 0.0
      %582 = vmatpush1.xpose.msra.mxu0 0.0
      %583 = vmatprep.subr.mxu0 0.0
      %584 = vmatpush1.xpose.msra.mxu0 0.0
      %585 = vmatprep.subr.mxu0 0.0
      %586 = vmatpush1.xpose.msra.mxu0 0.0
      %587 = vmatprep.subr.mxu0 0.0
      %588 = vmatpush1.xpose.msra.mxu0 0.0
      %589 = vmatprep.subr.mxu0 0.0
      %590 = vmatpush1.xpose.msra.mxu0 0.0
      %591 = vmatprep.subr.mxu0 0.0
      %592 = vmatpush1.xpose.msra.mxu0 0.0
      %593 = vmatprep.subr.mxu0 0.0
      %594 = vmatpush1.xpose.msra.mxu0 0.0
      %595 = vmatprep.subr.mxu0 0.0
      %596 = vmatpush1.xpose.msra.mxu0 0.0
      %597 = vmatprep.subr.mxu0 0.0
      %598 = vmatpush1.xpose.msra.mxu0 0.0
      %599 = vmatprep.subr.mxu0 0.0
      %600 = vmatpush1.xpose.msra.mxu0 0.0
      %601 = vmatprep.subr.mxu0 0.0
      %602 = vmatpush1.xpose.msra.mxu0 0.0
      %603 = vmatprep.subr.mxu0 0.0
      %604 = vmatpush1.xpose.msra.mxu0 0.0
      %605 = vmatprep.subr.mxu0 0.0
      %606 = vmatpush1.xpose.msra.mxu0 0.0
      %607 = vmatprep.subr.mxu0 0.0
      %608 = vmatpush1.xpose.msra.mxu0 0.0
      %609 = vmatprep.subr.mxu0 0.0
      %610 = vmatpush1.xpose.msra.mxu0 0.0
      %611 = vmatprep.subr.mxu0 0.0
      %612 = vmatpush1.xpose.msra.mxu0 0.0
      %613 = vmatprep.subr.mxu0 0.0
      %614 = vmatpush1.xpose.msra.mxu0 0.0
      %615 = vmatprep.subr.mxu0 0.0
      %616 = vmatpush1.xpose.msra.mxu0 0.0
      %617 = vmatprep.subr.mxu0 0.0
      %618 = vmatpush1.xpose.msra.mxu0 0.0
      %619 = vmatprep.subr.mxu0 0.0
      %620 = vmatpush1.xpose.msra.mxu0 0.0
      %621 = vmatprep.subr.mxu0 0.0
      %622 = vmatpush1.xpose.msra.mxu0 0.0
      %623 = vmatprep.subr.mxu0 0.0
      %624 = vmatpush1.xpose.msra.mxu0 0.0
      %625 = vmatprep.subr.mxu0 0.0
      %626 = vmatpush1.xpose.msra.mxu0 0.0
      %627 = vmatprep.subr.mxu0 0.0
      %628 = vmatpush1.xpose.msra.mxu0 0.0
      %629 = vmatprep.subr.mxu0 0.0
      %630 = vmatpush1.xpose.msra.mxu0 0.0
      %631 = vmatprep.subr.mxu0 0.0
      %632 = vmatpush1.xpose.msra.mxu0 0.0
      %633 = vmatprep.subr.mxu0 0.0
      %634 = vmatpush1.xpose.msra.mxu0 0.0
      %635 = vmatprep.subr.mxu0 0.0
      %636 = vmatpush1.xpose.msra.mxu0 0.0
      %637 = vmatprep.subr.mxu0 0.0
      %638 = vmatpush1.xpose.msra.mxu0 0.0
      %639 = vmatprep.subr.mxu0 0.0
      %640 = vmatpush1.xpose.msra.mxu0 0.0
      %641 = vmatprep.subr.mxu0 0.0
      %642 = vmatpush1.xpose.msra.mxu0 0.0
      %643 = vmatprep.mubr.f32.mxu0 0.0
      %644 = vmatmul.mubr.f32.gmra.mrb[0].mxu0 %v575
      %v645 = vpop.f32.mrb[0].mxu0
      %v646 = vadd.f32 0.0, %v645
      %v647 = vpop.f32.mrb[0].mxu0
      %648 = vdwg.mxu0
      %v649 = vmul.f32 %v646, 0.35355338
      %v650 = vadd.f32 %v649, %v205
      %v651 = vsel %vm212, %v650, -inf
      %652 = vmax.xlane.f32.xlu0 %v651
      %v653 = vpop.xlane.xlu0 %652
      %v654 = vsub.f32 %v650, %v653
      %v655 = vmul.f32 %v654, 1.442695
      %v656 = vpow.pop %v655
      %v657 = vsel %vm212, %v656, 0.0
      %658 = vadd.xlane.f32.xlu0 %v657
      %v659 = vpop.xlane.xlu0 %658
      %v660 = vrcp.pop %v659
      %v661 = vmul.f32 %v656, %v660
      %663 = vrot.lane.b32.xlu0 %v568, 112
      %v664 = vpop.permute.xlu0 %663
      %v667 = vsel %vm212, %v661, 0
      %669 = vmatprep.subr.mxu0 0.0
      %670 = vmatpush1.msra.mxu0 %v664
      %671 = vmatprep.subr.mxu0 0.0
      %672 = vmatpush1.msra.mxu0 0.0
      %673 = vmatprep.subr.mxu0 0.0
      %674 = vmatpush1.msra.mxu0 0.0
      %675 = vmatprep.subr.mxu0 0.0
      %676 = vmatpush1.msra.mxu0 0.0
      %677 = vmatprep.subr.mxu0 0.0
      %678 = vmatpush1.msra.mxu0 0.0
      %679 = vmatprep.subr.mxu0 0.0
      %680 = vmatpush1.msra.mxu0 0.0
      %681 = vmatprep.subr.mxu0 0.0
      %682 = vmatpush1.msra.mxu0 0.0
      %683 = vmatprep.subr.mxu0 0.0
      %684 = vmatpush1.msra.mxu0 0.0
      %685 = vmatprep.subr.mxu0 0.0
      %686 = vmatpush1.msra.mxu0 0.0
      %687 = vmatprep.subr.mxu0 0.0
      %688 = vmatpush1.msra.mxu0 0.0
      %689 = vmatprep.subr.mxu0 0.0
      %690 = vmatpush1.msra.mxu0 0.0
      %691 = vmatprep.subr.mxu0 0.0
      %692 = vmatpush1.msra.mxu0 0.0
      %693 = vmatprep.subr.mxu0 0.0
      %694 = vmatpush1.msra.mxu0 0.0
      %695 = vmatprep.subr.mxu0 0.0
      %696 = vmatpush1.msra.mxu0 0.0
      %697 = vmatprep.subr.mxu0 0.0
      %698 = vmatpush1.msra.mxu0 0.0
      %699 = vmatprep.subr.mxu0 0.0
      %700 = vmatpush1.msra.mxu0 0.0
      %701 = vmatprep.subr.mxu0 0.0
      %702 = vmatpush1.msra.mxu0 0.0
      %703 = vmatprep.subr.mxu0 0.0
      %704 = vmatpush1.msra.mxu0 0.0
      %705 = vmatprep.subr.mxu0 0.0
      %706 = vmatpush1.msra.mxu0 0.0
      %707 = vmatprep.subr.mxu0 0.0
      %708 = vmatpush1.msra.mxu0 0.0
      %709 = vmatprep.subr.mxu0 0.0
      %710 = vmatpush1.msra.mxu0 0.0
      %711 = vmatprep.subr.mxu0 0.0
      %712 = vmatpush1.msra.mxu0 0.0
      %713 = vmatprep.subr.mxu0 0.0
      %714 = vmatpush1.msra.mxu0 0.0
      %715 = vmatprep.subr.mxu0 0.0
      %716 = vmatpush1.msra.mxu0 0.0
      %717 = vmatprep.subr.mxu0 0.0
      %718 = vmatpush1.msra.mxu0 0.0
      %719 = vmatprep.subr.mxu0 0.0
      %720 = vmatpush1.msra.mxu0 0.0
      %721 = vmatprep.subr.mxu0 0.0
      %722 = vmatpush1.msra.mxu0 0.0
      %723 = vmatprep.subr.mxu0 0.0
      %724 = vmatpush1.msra.mxu0 0.0
      %725 = vmatprep.subr.mxu0 0.0
      %726 = vmatpush1.msra.mxu0 0.0
      %727 = vmatprep.subr.mxu0 0.0
      %728 = vmatpush1.msra.mxu0 0.0
      %729 = vmatprep.subr.mxu0 0.0
      %730 = vmatpush1.msra.mxu0 0.0
      %731 = vmatprep.subr.mxu0 0.0
      %732 = vmatpush1.msra.mxu0 0.0
      %733 = vmatprep.mubr.f32.mxu0 0.0
      %734 = vmatmul.mubr.f32.gmra.mrb[0].mxu0 %v667
      %v735 = vpop.f32.mrb[0].mxu0
      %v736 = vadd.f32 0.0, %v735
      %v737 = vpop.f32.mrb[0].mxu0
      %738 = vdwg.mxu0
      %v739 = vpack.c.bf16 %v736, %v736
      %v741 = vunpack.c.l.b16 %v739
      %v742 = vpack.c.b16 %v741, %v741
      %743 = vrot.lane.b32.xlu0 %v742, 16
      %v744 = vpop.permute.xlu0 %743
      %vm746 = vcmask 191616
      %747 = vst.msk [vmem:[%s199] sm:$0xf] %vm746, %v744
      %v748 = vld [vmem:[%s187] sm:$0xf]
      %v749 = vunpack.c.l.bf16 %v748
      %v750 = vld [vmem:[%s191] sm:$0xf]
      %v751 = vunpack.c.l.bf16 %v750
      %v752 = vld [vmem:[%s195] sm:$0xf]
      %v753 = vunpack.c.l.bf16 %v752
      %755 = vrot.lane.b32.xlu0 %v749, 104
      %v756 = vpop.permute.xlu0 %755
      %758 = vrot.lane.b32.xlu0 %v751, 104
      %v759 = vpop.permute.xlu0 %758
      %v760 = vsel %vm212, %v756, 0
      %v762 = vsel %vm212, %v759, 0
      %764 = vmatprep.subr.mxu0 0.0
      %765 = vmatpush1.xpose.msra.mxu0 %v762
      %766 = vmatprep.subr.mxu0 0.0
      %767 = vmatpush1.xpose.msra.mxu0 0.0
      %768 = vmatprep.subr.mxu0 0.0
      %769 = vmatpush1.xpose.msra.mxu0 0.0
      %770 = vmatprep.subr.mxu0 0.0
      %771 = vmatpush1.xpose.msra.mxu0 0.0
      %772 = vmatprep.subr.mxu0 0.0
      %773 = vmatpush1.xpose.msra.mxu0 0.0
      %774 = vmatprep.subr.mxu0 0.0
      %775 = vmatpush1.xpose.msra.mxu0 0.0
      %776 = vmatprep.subr.mxu0 0.0
      %777 = vmatpush1.xpose.msra.mxu0 0.0
      %778 = vmatprep.subr.mxu0 0.0
      %779 = vmatpush1.xpose.msra.mxu0 0.0
      %780 = vmatprep.subr.mxu0 0.0
      %781 = vmatpush1.xpose.msra.mxu0 0.0
      %782 = vmatprep.subr.mxu0 0.0
      %783 = vmatpush1.xpose.msra.mxu0 0.0
      %784 = vmatprep.subr.mxu0 0.0
      %785 = vmatpush1.xpose.msra.mxu0 0.0
      %786 = vmatprep.subr.mxu0 0.0
      %787 = vmatpush1.xpose.msra.mxu0 0.0
      %788 = vmatprep.subr.mxu0 0.0
      %789 = vmatpush1.xpose.msra.mxu0 0.0
      %790 = vmatprep.subr.mxu0 0.0
      %791 = vmatpush1.xpose.msra.mxu0 0.0
      %792 = vmatprep.subr.mxu0 0.0
      %793 = vmatpush1.xpose.msra.mxu0 0.0
      %794 = vmatprep.subr.mxu0 0.0
      %795 = vmatpush1.xpose.msra.mxu0 0.0
      %796 = vmatprep.subr.mxu0 0.0
      %797 = vmatpush1.xpose.msra.mxu0 0.0
      %798 = vmatprep.subr.mxu0 0.0
      %799 = vmatpush1.xpose.msra.mxu0 0.0
      %800 = vmatprep.subr.mxu0 0.0
      %801 = vmatpush1.xpose.msra.mxu0 0.0
      %802 = vmatprep.subr.mxu0 0.0
      %803 = vmatpush1.xpose.msra.mxu0 0.0
      %804 = vmatprep.subr.mxu0 0.0
      %805 = vmatpush1.xpose.msra.mxu0 0.0
      %806 = vmatprep.subr.mxu0 0.0
      %807 = vmatpush1.xpose.msra.mxu0 0.0
      %808 = vmatprep.subr.mxu0 0.0
      %809 = vmatpush1.xpose.msra.mxu0 0.0
      %810 = vmatprep.subr.mxu0 0.0
      %811 = vmatpush1.xpose.msra.mxu0 0.0
      %812 = vmatprep.subr.mxu0 0.0
      %813 = vmatpush1.xpose.msra.mxu0 0.0
      %814 = vmatprep.subr.mxu0 0.0
      %815 = vmatpush1.xpose.msra.mxu0 0.0
      %816 = vmatprep.subr.mxu0 0.0
      %817 = vmatpush1.xpose.msra.mxu0 0.0
      %818 = vmatprep.subr.mxu0 0.0
      %819 = vmatpush1.xpose.msra.mxu0 0.0
      %820 = vmatprep.subr.mxu0 0.0
      %821 = vmatpush1.xpose.msra.mxu0 0.0
      %822 = vmatprep.subr.mxu0 0.0
      %823 = vmatpush1.xpose.msra.mxu0 0.0
      %824 = vmatprep.subr.mxu0 0.0
      %825 = vmatpush1.xpose.msra.mxu0 0.0
      %826 = vmatprep.subr.mxu0 0.0
      %827 = vmatpush1.xpose.msra.mxu0 0.0
      %828 = vmatprep.mubr.f32.mxu0 0.0
      %829 = vmatmul.mubr.f32.gmra.mrb[0].mxu0 %v760
      %v830 = vpop.f32.mrb[0].mxu0
      %v831 = vadd.f32 0.0, %v830
      %v832 = vpop.f32.mrb[0].mxu0
      %833 = vdwg.mxu0
      %v834 = vmul.f32 %v831, 0.35355338
      %v835 = vadd.f32 %v834, %v205
      %v836 = vsel %vm212, %v835, -inf
      %837 = vmax.xlane.f32.xlu0 %v836
      %v838 = vpop.xlane.xlu0 %837
      %v839 = vsub.f32 %v835, %v838
      %v840 = vmul.f32 %v839, 1.442695
      %v841 = vpow.pop %v840
      %v842 = vsel %vm212, %v841, 0.0
      %843 = vadd.xlane.f32.xlu0 %v842
      %v844 = vpop.xlane.xlu0 %843
      %v845 = vrcp.pop %v844
      %v846 = vmul.f32 %v841, %v845
      %848 = vrot.lane.b32.xlu0 %v753, 104
      %v849 = vpop.permute.xlu0 %848
      %v852 = vsel %vm212, %v846, 0
      %854 = vmatprep.subr.mxu0 0.0
      %855 = vmatpush1.msra.mxu0 %v849
      %856 = vmatprep.subr.mxu0 0.0
      %857 = vmatpush1.msra.mxu0 0.0
      %858 = vmatprep.subr.mxu0 0.0
      %859 = vmatpush1.msra.mxu0 0.0
      %860 = vmatprep.subr.mxu0 0.0
      %861 = vmatpush1.msra.mxu0 0.0
      %862 = vmatprep.subr.mxu0 0.0
      %863 = vmatpush1.msra.mxu0 0.0
      %864 = vmatprep.subr.mxu0 0.0
      %865 = vmatpush1.msra.mxu0 0.0
      %866 = vmatprep.subr.mxu0 0.0
      %867 = vmatpush1.msra.mxu0 0.0
      %868 = vmatprep.subr.mxu0 0.0
      %869 = vmatpush1.msra.mxu0 0.0
      %870 = vmatprep.subr.mxu0 0.0
      %871 = vmatpush1.msra.mxu0 0.0
      %872 = vmatprep.subr.mxu0 0.0
      %873 = vmatpush1.msra.mxu0 0.0
      %874 = vmatprep.subr.mxu0 0.0
      %875 = vmatpush1.msra.mxu0 0.0
      %876 = vmatprep.subr.mxu0 0.0
      %877 = vmatpush1.msra.mxu0 0.0
      %878 = vmatprep.subr.mxu0 0.0
      %879 = vmatpush1.msra.mxu0 0.0
      %880 = vmatprep.subr.mxu0 0.0
      %881 = vmatpush1.msra.mxu0 0.0
      %882 = vmatprep.subr.mxu0 0.0
      %883 = vmatpush1.msra.mxu0 0.0
      %884 = vmatprep.subr.mxu0 0.0
      %885 = vmatpush1.msra.mxu0 0.0
      %886 = vmatprep.subr.mxu0 0.0
      %887 = vmatpush1.msra.mxu0 0.0
      %888 = vmatprep.subr.mxu0 0.0
      %889 = vmatpush1.msra.mxu0 0.0
      %890 = vmatprep.subr.mxu0 0.0
      %891 = vmatpush1.msra.mxu0 0.0
      %892 = vmatprep.subr.mxu0 0.0
      %893 = vmatpush1.msra.mxu0 0.0
      %894 = vmatprep.subr.mxu0 0.0
      %895 = vmatpush1.msra.mxu0 0.0
      %896 = vmatprep.subr.mxu0 0.0
      %897 = vmatpush1.msra.mxu0 0.0
      %898 = vmatprep.subr.mxu0 0.0
      %899 = vmatpush1.msra.mxu0 0.0
      %900 = vmatprep.subr.mxu0 0.0
      %901 = vmatpush1.msra.mxu0 0.0
      %902 = vmatprep.subr.mxu0 0.0
      %903 = vmatpush1.msra.mxu0 0.0
      %904 = vmatprep.subr.mxu0 0.0
      %905 = vmatpush1.msra.mxu0 0.0
      %906 = vmatprep.subr.mxu0 0.0
      %907 = vmatpush1.msra.mxu0 0.0
      %908 = vmatprep.subr.mxu0 0.0
      %909 = vmatpush1.msra.mxu0 0.0
      %910 = vmatprep.subr.mxu0 0.0
      %911 = vmatpush1.msra.mxu0 0.0
      %912 = vmatprep.subr.mxu0 0.0
      %913 = vmatpush1.msra.mxu0 0.0
      %914 = vmatprep.subr.mxu0 0.0
      %915 = vmatpush1.msra.mxu0 0.0
      %916 = vmatprep.subr.mxu0 0.0
      %917 = vmatpush1.msra.mxu0 0.0
      %918 = vmatprep.mubr.f32.mxu0 0.0
      %919 = vmatmul.mubr.f32.gmra.mrb[0].mxu0 %v852
      %v920 = vpop.f32.mrb[0].mxu0
      %v921 = vadd.f32 0.0, %v920
      %v922 = vpop.f32.mrb[0].mxu0
      %923 = vdwg.mxu0
      %v924 = vpack.c.bf16 %v921, %v921
      %v926 = vunpack.c.l.b16 %v924
      %v927 = vpack.c.b16 %v926, %v926
      %928 = vrot.lane.b32.xlu0 %v927, 24
      %v929 = vpop.permute.xlu0 %928
      %vm931 = vcmask 257216
      %932 = vst.msk [vmem:[%s199] sm:$0xf] %vm931, %v929
      %p933 = scmp.lt.s32.totalorder %s14, 1
      %s934 = scalar_select %p933, %s14, 1
      %s935 = smul.addr %s934, 4
      %s936 = scalar_lea.vmem %s3, %s935
      // Predicated region
      $region33: #{transformer_decoder_forward.20} parent=31 // pred_check
        %p937 = pneg %p110
      $region34: #{transformer_decoder_forward.20} parent=31 // pred_check_branch
        %939 = sbr.rel (%p937) target = $region36
      $region35: #{transformer_decoder_forward.20} parent=31 // pred_region
        _
      $region36: #{transformer_decoder_forward.20} parent=31 // pred_fallthru
        _
    $region32: #{transformer_decoder_forward.20} parent=5 // pred_fallthru
      _
    %p940 = scmp.le.s32.totalorder 2, %s9
    // Predicated region
    $region37: #{transformer_decoder_forward.20} parent=5 // pred_check
      %p941 = pneg %p940
    $region38: #{transformer_decoder_forward.20} parent=5 // pred_check_branch
      %943 = sbr.rel (%p941) target = $region40
    $region39: #{transformer_decoder_forward.20} parent=5 // pred_region
      %s944 = ssub.s32 %s9, 2
      // Predicated region
      $region41: #{transformer_decoder_forward.20} parent=39 // pred_check
        %p945 = pneg %p116
      $region42: #{transformer_decoder_forward.20} parent=39 // pred_check_branch
        %947 = sbr.rel (%p945) target = $region44
      $region43: #{transformer_decoder_forward.20} parent=39 // pred_region
        %p948 = scmp.lt.s32.totalorder %s15, 1
        %s949 = scalar_select %p948, %s15, 1
        %s950 = smul.addr %s949, 4
        %s951 = scalar_lea.vmem %s3, %s950
      $region44: #{transformer_decoder_forward.20} parent=39 // pred_fallthru
        _
    $region40: #{transformer_decoder_forward.20} parent=5 // pred_fallthru
      _
  $region6: #{transformer_decoder_forward.20} parent=0 // loop_footer
    %s13 = sadd.s32 1, %s9
  $region7: #{transformer_decoder_forward.20} parent=0 // loop_footer_branch
    %8 = sbr.rel target = $region3
  $region8: #{transformer_decoder_forward.20} parent=0 // loop_exit
    _

// kernel: transformer_decoder_forward.22
$region0: #{transformer_decoder_forward.22}
  #allocation0 [shape = 'u32[]', space=smem, size = 0x4, offset = 0x4, fixed_abs, tag = 'smem constant byte address 0x4 - core index']
  #allocation1 [shape = 'u32[144,128]{1,0:T(1,128)}', space=vmem, size = 0x12000, scoped, tag = 'internal scratch']
  #allocation2 [shape = 'f32[16,32]{1,0:T(8,128)}', space=vmem, size = 0x2000, scoped, tag = 'scratch operand']
  %s0 = inlined_call_operand.vmem [shape: bf16[16,32], index: 0, kind: input, shape index: {}]
  %s1 = inlined_call_operand.vmem [shape: bf16[32,32], index: 1, kind: input, shape index: {}]
  %s2 = inlined_call_operand.vmem [shape: f32[1,32], index: 2, kind: input, shape index: {}]
  %s3 = inlined_call_operand.vmem [shape: bf16[16,32], index: 3, kind: output, shape index: {}]
  %s4 = sld [smem:[#allocation0]]
  $region30: #{transformer_decoder_forward.22} parent=0
    _
  %s6 = ssub.s32 1, %s4
  %s7 = scalar_select 0, %s6, %s4
  // Predicated region
  $region2: #{transformer_decoder_forward.22} parent=0 // pred_check
    _
  $region3: #{transformer_decoder_forward.22} parent=0 // pred_check_branch
    %9 = sbr.rel (0) target = $region5
  $region4: #{transformer_decoder_forward.22} parent=0 // pred_region
    _
  $region5: #{transformer_decoder_forward.22} parent=0 // pred_fallthru
    _
  // Predicated region
  $region6: #{transformer_decoder_forward.22} parent=0 // pred_check
    _
  $region7: #{transformer_decoder_forward.22} parent=0 // pred_check_branch
    %11 = sbr.rel (0) target = $region9
  $region8: #{transformer_decoder_forward.22} parent=0 // pred_region
    _
  $region9: #{transformer_decoder_forward.22} parent=0 // pred_fallthru
    _
  // Predicated region
  $region10: #{transformer_decoder_forward.22} parent=0 // pred_check
    _
  $region11: #{transformer_decoder_forward.22} parent=0 // pred_check_branch
    %13 = sbr.rel (0) target = $region13
  $region12: #{transformer_decoder_forward.22} parent=0 // pred_region
    _
  $region13: #{transformer_decoder_forward.22} parent=0 // pred_fallthru
    _
  %p15 = scmp.eq.s32.totalorder 0, 0
  // Predicated region
  $region14: #{transformer_decoder_forward.22} parent=0 // pred_check
    %p16 = pneg %p15
  $region15: #{transformer_decoder_forward.22} parent=0 // pred_check_branch
    %18 = sbr.rel (%p16) target = $region17
  $region16: #{transformer_decoder_forward.22} parent=0 // pred_region
    %vm19 = vcmask 261120
    %20 = vst.msk [vmem:[#allocation2] sm:$0xff] %vm19, 0.0
    %21 = vst.msk [vmem:[#allocation2 + $0x8] sm:$0xff] %vm19, 0.0
  $region17: #{transformer_decoder_forward.22} parent=0 // pred_fallthru
    _
  %v22 = vld [vmem:[#allocation2] sm:$0xff]
  %v23 = vld [vmem:[#allocation2 + $0x8] sm:$0xff]
  %v24 = vld [vmem:[%s0] sm:$0xf]
  %v25 = vld [vmem:[%s0 + $0x4] sm:$0xf]
  %v26 = vld [vmem:[%s1] sm:$0xf]
  %v27 = vld [vmem:[%s1 + $0x4] sm:$0xf]
  %v28 = vld [vmem:[%s1 + $0x8] sm:$0xf]
  %v29 = vld [vmem:[%s1 + $0xc] sm:$0xf]
  %v32 = vunpack.c.l.b16 %v24
  %v33 = vunpack.c.l.b16 %v25
  %v34 = vpack.c.b16 %v33, %v32
  %v39 = vunpack.c.l.b16 %v26
  %v40 = vunpack.c.l.b16 %v27
  %v41 = vunpack.c.l.b16 %v28
  %v42 = vunpack.c.l.b16 %v29
  %v43 = vpack.c.b16 %v40, %v39
  %v44 = vpack.c.b16 %v42, %v41
  %vm47 = vcmask 261120
  %v49 = vsel %vm47, %v34, 0
  %51 = vmatprep.subr.bf16.mxu0 0
  %52 = vmatpush1.bf16.msra.mxu0 %v43
  %53 = vmatprep.subr.bf16.mxu0 0
  %54 = vmatpush1.bf16.msra.mxu0 %v44
  %55 = vmatprep.subr.bf16.mxu0 0
  %56 = vmatpush1.bf16.msra.mxu0 0
  %57 = vmatprep.subr.bf16.mxu0 0
  %58 = vmatpush1.bf16.msra.mxu0 0
  %59 = vmatprep.subr.bf16.mxu0 0
  %60 = vmatpush1.bf16.msra.mxu0 0
  %61 = vmatprep.subr.bf16.mxu0 0
  %62 = vmatpush1.bf16.msra.mxu0 0
  %63 = vmatprep.subr.bf16.mxu0 0
  %64 = vmatpush1.bf16.msra.mxu0 0
  %65 = vmatprep.subr.bf16.mxu0 0
  %66 = vmatpush1.bf16.msra.mxu0 0
  %67 = vmatprep.subr.bf16.mxu0 0
  %68 = vmatpush1.bf16.msra.mxu0 0
  %69 = vmatprep.subr.bf16.mxu0 0
  %70 = vmatpush1.bf16.msra.mxu0 0
  %71 = vmatprep.subr.bf16.mxu0 0
  %72 = vmatpush1.bf16.msra.mxu0 0
  %73 = vmatprep.subr.bf16.mxu0 0
  %74 = vmatpush1.bf16.msra.mxu0 0
  %75 = vmatprep.subr.bf16.mxu0 0
  %76 = vmatpush1.bf16.msra.mxu0 0
  %77 = vmatprep.subr.bf16.mxu0 0
  %78 = vmatpush1.bf16.msra.mxu0 0
  %79 = vmatprep.subr.bf16.mxu0 0
  %80 = vmatpush1.bf16.msra.mxu0 0
  %81 = vmatprep.subr.bf16.mxu0 0
  %82 = vmatpush1.bf16.msra.mxu0 0
  %83 = vmatprep.mubr.bf16.mxu0 0
  %84 = vmatmul.mubr.bf16.gmra.mrb[0].mxu0 %v49
  %v85 = vpop.f32.mrb[0].mxu0
  %v86 = vadd.f32 0.0, %v85
  %v87 = vpop.f32.mrb[0].mxu0
  %v88 = vpop.f32.mrb[0].mxu0
  %v89 = vadd.f32 0.0, %v88
  %v90 = vpop.f32.mrb[0].mxu0
  %91 = vdwg.mxu0
  %v92 = vadd.f32 %v22, %v86
  %v93 = vadd.f32 %v23, %v89
  %94 = vst.msk [vmem:[#allocation2] sm:$0xff] %vm47, %v92
  %95 = vst.msk [vmem:[#allocation2 + $0x8] sm:$0xff] %vm47, %v93
  // Predicated region
  $region18: #{transformer_decoder_forward.22} parent=0 // pred_check
    %p96 = pneg %p15
  $region19: #{transformer_decoder_forward.22} parent=0 // pred_check_branch
    %98 = sbr.rel (%p96) target = $region21
  $region20: #{transformer_decoder_forward.22} parent=0 // pred_region
    %v99 = vld [vmem:[#allocation2] sm:$0xff]
    %v100 = vld [vmem:[#allocation2 + $0x8] sm:$0xff]
    %v101 = vld [vmem:[%s2] sm:$0x1]
    %v103 = vlaneseq
    %v104 = vshrl.u32 %v103, 7
    %v105 = vsub.s32 0, %v104
    %v106 = vrot.slane %v101, %v105
    %v108 = vadd.f32 %v99, %v106
    %v109 = vadd.f32 %v100, %v106
    %v110 = vpack.c.bf16 %v109, %v108
    %v112 = vunpack.c.l.b16 %v110
    %v113 = vunpack.c.h.b16 %v110
    %v114 = vpack.c.b16 %v112, %v112
    %v115 = vpack.c.b16 %v113, %v113
    %vm118 = vcmask 257024
    %119 = vst.msk [vmem:[%s3] sm:$0xf] %vm118, %v114
    %120 = vst.msk [vmem:[%s3 + $0x4] sm:$0xf] %vm118, %v115
  $region21: #{transformer_decoder_forward.22} parent=0 // pred_fallthru
    _
  // Predicated region
  $region22: #{transformer_decoder_forward.22} parent=0 // pred_check
    _
  $region23: #{transformer_decoder_forward.22} parent=0 // pred_check_branch
    %122 = sbr.rel (0) target = $region25
  $region24: #{transformer_decoder_forward.22} parent=0 // pred_region
    _
  $region25: #{transformer_decoder_forward.22} parent=0 // pred_fallthru
    _
  // Predicated region
  $region26: #{transformer_decoder_forward.22} parent=0 // pred_check
    _
  $region27: #{transformer_decoder_forward.22} parent=0 // pred_check_branch
    %124 = sbr.rel (0) target = $region29
  $region28: #{transformer_decoder_forward.22} parent=0 // pred_region
    _
  $region29: #{transformer_decoder_forward.22} parent=0 // pred_fallthru
    _

// kernel: transformer_decoder_forward.21
$region0: #{transformer_decoder_forward.21}
  #allocation0 [shape = 'u32[]', space=smem, size = 0x4, offset = 0x4, fixed_abs, tag = 'smem constant byte address 0x4 - core index']
  #allocation1 [shape = 'u32[144,128]{1,0:T(1,128)}', space=vmem, size = 0x12000, scoped, tag = 'internal scratch']
  #allocation2 [shape = 'f32[16,32]{1,0:T(8,128)}', space=vmem, size = 0x2000, scoped, tag = 'scratch operand']
  %s0 = inlined_call_operand.vmem [shape: bf16[16,32], index: 0, kind: input, shape index: {}]
  %s1 = inlined_call_operand.vmem [shape: bf16[32,32], index: 1, kind: input, shape index: {}]
  %s2 = inlined_call_operand.vmem [shape: f32[1,32], index: 2, kind: input, shape index: {}]
  %s3 = inlined_call_operand.vmem [shape: f32[16,32], index: 3, kind: input, shape index: {}]
  %s4 = inlined_call_operand.vmem [shape: f32[1,32], index: 4, kind: input, shape index: {}]
  %s5 = inlined_call_operand.vmem [shape: f32[1,32], index: 5, kind: input, shape index: {}]
  %s6 = inlined_call_operand.vmem [shape: f32[16,32], index: 6, kind: output, shape index: {}]
  %s7 = sld [smem:[#allocation0]]
  $region42: #{transformer_decoder_forward.21} parent=0
    _
  %s9 = ssub.s32 1, %s7
  %s10 = scalar_select 0, %s9, %s7
  // Predicated region
  $region2: #{transformer_decoder_forward.21} parent=0 // pred_check
    _
  $region3: #{transformer_decoder_forward.21} parent=0 // pred_check_branch
    %12 = sbr.rel (0) target = $region5
  $region4: #{transformer_decoder_forward.21} parent=0 // pred_region
    _
  $region5: #{transformer_decoder_forward.21} parent=0 // pred_fallthru
    _
  // Predicated region
  $region6: #{transformer_decoder_forward.21} parent=0 // pred_check
    _
  $region7: #{transformer_decoder_forward.21} parent=0 // pred_check_branch
    %14 = sbr.rel (0) target = $region9
  $region8: #{transformer_decoder_forward.21} parent=0 // pred_region
    _
  $region9: #{transformer_decoder_forward.21} parent=0 // pred_fallthru
    _
  // Predicated region
  $region10: #{transformer_decoder_forward.21} parent=0 // pred_check
    _
  $region11: #{transformer_decoder_forward.21} parent=0 // pred_check_branch
    %16 = sbr.rel (0) target = $region13
  $region12: #{transformer_decoder_forward.21} parent=0 // pred_region
    _
  $region13: #{transformer_decoder_forward.21} parent=0 // pred_fallthru
    _
  // Predicated region
  $region14: #{transformer_decoder_forward.21} parent=0 // pred_check
    _
  $region15: #{transformer_decoder_forward.21} parent=0 // pred_check_branch
    %18 = sbr.rel (0) target = $region17
  $region16: #{transformer_decoder_forward.21} parent=0 // pred_region
    _
  $region17: #{transformer_decoder_forward.21} parent=0 // pred_fallthru
    _
  // Predicated region
  $region18: #{transformer_decoder_forward.21} parent=0 // pred_check
    _
  $region19: #{transformer_decoder_forward.21} parent=0 // pred_check_branch
    %20 = sbr.rel (0) target = $region21
  $region20: #{transformer_decoder_forward.21} parent=0 // pred_region
    _
  $region21: #{transformer_decoder_forward.21} parent=0 // pred_fallthru
    _
  // Predicated region
  $region22: #{transformer_decoder_forward.21} parent=0 // pred_check
    _
  $region23: #{transformer_decoder_forward.21} parent=0 // pred_check_branch
    %22 = sbr.rel (0) target = $region25
  $region24: #{transformer_decoder_forward.21} parent=0 // pred_region
    _
  $region25: #{transformer_decoder_forward.21} parent=0 // pred_fallthru
    _
  %p24 = scmp.eq.s32.totalorder 0, 0
  // Predicated region
  $region26: #{transformer_decoder_forward.21} parent=0 // pred_check
    %p25 = pneg %p24
  $region27: #{transformer_decoder_forward.21} parent=0 // pred_check_branch
    %27 = sbr.rel (%p25) target = $region29
  $region28: #{transformer_decoder_forward.21} parent=0 // pred_region
    %vm28 = vcmask 261120
    %29 = vst.msk [vmem:[#allocation2] sm:$0xff] %vm28, 0.0
    %30 = vst.msk [vmem:[#allocation2 + $0x8] sm:$0xff] %vm28, 0.0
  $region29: #{transformer_decoder_forward.21} parent=0 // pred_fallthru
    _
  %v31 = vld [vmem:[#allocation2] sm:$0xff]
  %v32 = vld [vmem:[#allocation2 + $0x8] sm:$0xff]
  %v33 = vld [vmem:[%s0] sm:$0xf]
  %v34 = vld [vmem:[%s0 + $0x4] sm:$0xf]
  %v35 = vld [vmem:[%s1] sm:$0xf]
  %v36 = vld [vmem:[%s1 + $0x4] sm:$0xf]
  %v37 = vld [vmem:[%s1 + $0x8] sm:$0xf]
  %v38 = vld [vmem:[%s1 + $0xc] sm:$0xf]
  %v41 = vunpack.c.l.b16 %v33
  %v42 = vunpack.c.l.b16 %v34
  %v43 = vpack.c.b16 %v42, %v41
  %v48 = vunpack.c.l.b16 %v35
  %v49 = vunpack.c.l.b16 %v36
  %v50 = vunpack.c.l.b16 %v37
  %v51 = vunpack.c.l.b16 %v38
  %v52 = vpack.c.b16 %v49, %v48
  %v53 = vpack.c.b16 %v51, %v50
  %vm56 = vcmask 261120
  %v58 = vsel %vm56, %v43, 0
  %60 = vmatprep.subr.bf16.mxu0 0
  %61 = vmatpush1.bf16.msra.mxu0 %v52
  %62 = vmatprep.subr.bf16.mxu0 0
  %63 = vmatpush1.bf16.msra.mxu0 %v53
  %64 = vmatprep.subr.bf16.mxu0 0
  %65 = vmatpush1.bf16.msra.mxu0 0
  %66 = vmatprep.subr.bf16.mxu0 0
  %67 = vmatpush1.bf16.msra.mxu0 0
  %68 = vmatprep.subr.bf16.mxu0 0
  %69 = vmatpush1.bf16.msra.mxu0 0
  %70 = vmatprep.subr.bf16.mxu0 0
  %71 = vmatpush1.bf16.msra.mxu0 0
  %72 = vmatprep.subr.bf16.mxu0 0
  %73 = vmatpush1.bf16.msra.mxu0 0
  %74 = vmatprep.subr.bf16.mxu0 0
  %75 = vmatpush1.bf16.msra.mxu0 0
  %76 = vmatprep.subr.bf16.mxu0 0
  %77 = vmatpush1.bf16.msra.mxu0 0
  %78 = vmatprep.subr.bf16.mxu0 0
  %79 = vmatpush1.bf16.msra.mxu0 0
  %80 = vmatprep.subr.bf16.mxu0 0
  %81 = vmatpush1.bf16.msra.mxu0 0
  %82 = vmatprep.subr.bf16.mxu0 0
  %83 = vmatpush1.bf16.msra.mxu0 0
  %84 = vmatprep.subr.bf16.mxu0 0
  %85 = vmatpush1.bf16.msra.mxu0 0
  %86 = vmatprep.subr.bf16.mxu0 0
  %87 = vmatpush1.bf16.msra.mxu0 0
  %88 = vmatprep.subr.bf16.mxu0 0
  %89 = vmatpush1.bf16.msra.mxu0 0
  %90 = vmatprep.subr.bf16.mxu0 0
  %91 = vmatpush1.bf16.msra.mxu0 0
  %92 = vmatprep.mubr.bf16.mxu0 0
  %93 = vmatmul.mubr.bf16.gmra.mrb[0].mxu0 %v58
  %v94 = vpop.f32.mrb[0].mxu0
  %v95 = vadd.f32 0.0, %v94
  %v96 = vpop.f32.mrb[0].mxu0
  %v97 = vpop.f32.mrb[0].mxu0
  %v98 = vadd.f32 0.0, %v97
  %v99 = vpop.f32.mrb[0].mxu0
  %100 = vdwg.mxu0
  %v101 = vadd.f32 %v31, %v95
  %v102 = vadd.f32 %v32, %v98
  %103 = vst.msk [vmem:[#allocation2] sm:$0xff] %vm56, %v101
  %104 = vst.msk [vmem:[#allocation2 + $0x8] sm:$0xff] %vm56, %v102
  // Predicated region
  $region30: #{transformer_decoder_forward.21} parent=0 // pred_check
    %p105 = pneg %p24
  $region31: #{transformer_decoder_forward.21} parent=0 // pred_check_branch
    %107 = sbr.rel (%p105) target = $region33
  $region32: #{transformer_decoder_forward.21} parent=0 // pred_region
    %v108 = vld [vmem:[#allocation2] sm:$0xff]
    %v109 = vld [vmem:[#allocation2 + $0x8] sm:$0xff]
    %v110 = vld [vmem:[%s2] sm:$0x1]
    %v112 = vlaneseq
    %v113 = vshrl.u32 %v112, 7
    %v114 = vsub.s32 0, %v113
    %v115 = vrot.slane %v110, %v114
    %v117 = vadd.f32 %v108, %v115
    %v118 = vadd.f32 %v109, %v115
    %v119 = vld [vmem:[%s3] sm:$0xff]
    %v120 = vld [vmem:[%s3 + $0x8] sm:$0xff]
    %v121 = vadd.f32 %v117, %v119
    %v122 = vadd.f32 %v118, %v120
    %v123 = vsel %vm56, %v121, 0.0
    %124 = vadd.xlane.f32.xlu0 %v123
    %v125 = vpop.xlane.xlu0 %124
    %v126 = vsel %vm56, %v122, 0.0
    %127 = vadd.xlane.f32.xlu0 %v126
    %v128 = vpop.xlane.xlu0 %127
    %v129 = vrcp.pop 32.0
    %v130 = vmul.f32 %v125, %v129
    %v131 = vmul.f32 %v128, %v129
    %v132 = vsub.f32 %v121, %v130
    %v133 = vsub.f32 %v122, %v131
    %v134 = vmul.f32 %v132, %v132
    %v135 = vmul.f32 %v133, %v133
    %v136 = vsel %vm56, %v134, 0.0
    %137 = vadd.xlane.f32.xlu0 %v136
    %v138 = vpop.xlane.xlu0 %137
    %v139 = vsel %vm56, %v135, 0.0
    %140 = vadd.xlane.f32.xlu0 %v139
    %v141 = vpop.xlane.xlu0 %140
    %v142 = vmul.f32 %v138, %v129
    %v143 = vmul.f32 %v141, %v129
    %v144 = vadd.f32 %v142, 1e-05
    %v145 = vadd.f32 %v143, 1e-05
    %v146 = vrsqrt.pop %v144
    %v147 = vrsqrt.pop %v145
    %v148 = vmul.f32 %v132, %v146
    %v149 = vmul.f32 %v133, %v147
    %v150 = vld [vmem:[%s4] sm:$0x1]
    %v152 = vlaneseq
    %v153 = vshrl.u32 %v152, 7
    %v154 = vsub.s32 0, %v153
    %v155 = vrot.slane %v150, %v154
    %v157 = vmul.f32 %v148, %v155
    %v158 = vmul.f32 %v149, %v155
    %v159 = vld [vmem:[%s5] sm:$0x1]
    %v161 = vlaneseq
    %v162 = vshrl.u32 %v161, 7
    %v163 = vsub.s32 0, %v162
    %v164 = vrot.slane %v159, %v163
    %v166 = vadd.f32 %v157, %v164
    %v167 = vadd.f32 %v158, %v164
    %168 = vst.msk [vmem:[%s6] sm:$0xff] %vm56, %v166
    %169 = vst.msk [vmem:[%s6 + $0x8] sm:$0xff] %vm56, %v167
  $region33: #{transformer_decoder_forward.21} parent=0 // pred_fallthru
    _
  // Predicated region
  $region34: #{transformer_decoder_forward.21} parent=0 // pred_check
    _
  $region35: #{transformer_decoder_forward.21} parent=0 // pred_check_branch
    %171 = sbr.rel (0) target = $region37
  $region36: #{transformer_decoder_forward.21} parent=0 // pred_region
    _
  $region37: #{transformer_decoder_forward.21} parent=0 // pred_fallthru
    _
  // Predicated region
  $region38: #{transformer_decoder_forward.21} parent=0 // pred_check
    _
  $region39: #{transformer_decoder_forward.21} parent=0 // pred_check_branch
    %173 = sbr.rel (0) target = $region41
  $region40: #{transformer_decoder_forward.21} parent=0 // pred_region
    _
  $region41: #{transformer_decoder_forward.21} parent=0 // pred_fallthru
    _

// kernel: transformer_decoder_forward.26
$region0: #{transformer_decoder_forward.26}
  #allocation0 [shape = 'u32[]', space=smem, size = 0x4, offset = 0x4, fixed_abs, tag = 'smem constant byte address 0x4 - core index']
  #allocation1 [shape = 'u32[144,128]{1,0:T(1,128)}', space=vmem, size = 0x12000, scoped, tag = 'internal scratch']
  #allocation2 [shape = 'f32[16,64]{1,0:T(8,128)}', space=vmem, size = 0x2000, scoped, tag = 'scratch operand']
  %s0 = inlined_call_operand.vmem [shape: bf16[16,32], index: 0, kind: input, shape index: {}]
  %s1 = inlined_call_operand.vmem [shape: bf16[32,64], index: 1, kind: input, shape index: {}]
  %s2 = inlined_call_operand.vmem [shape: f32[1,64], index: 2, kind: input, shape index: {}]
  %s3 = inlined_call_operand.vmem [shape: bf16[16,64], index: 3, kind: output, shape index: {}]
  %s4 = sld [smem:[#allocation0]]
  $region30: #{transformer_decoder_forward.26} parent=0
    _
  %s6 = ssub.s32 1, %s4
  %s7 = scalar_select 0, %s6, %s4
  // Predicated region
  $region2: #{transformer_decoder_forward.26} parent=0 // pred_check
    _
  $region3: #{transformer_decoder_forward.26} parent=0 // pred_check_branch
    %9 = sbr.rel (0) target = $region5
  $region4: #{transformer_decoder_forward.26} parent=0 // pred_region
    _
  $region5: #{transformer_decoder_forward.26} parent=0 // pred_fallthru
    _
  // Predicated region
  $region6: #{transformer_decoder_forward.26} parent=0 // pred_check
    _
  $region7: #{transformer_decoder_forward.26} parent=0 // pred_check_branch
    %11 = sbr.rel (0) target = $region9
  $region8: #{transformer_decoder_forward.26} parent=0 // pred_region
    _
  $region9: #{transformer_decoder_forward.26} parent=0 // pred_fallthru
    _
  // Predicated region
  $region10: #{transformer_decoder_forward.26} parent=0 // pred_check
    _
  $region11: #{transformer_decoder_forward.26} parent=0 // pred_check_branch
    %13 = sbr.rel (0) target = $region13
  $region12: #{transformer_decoder_forward.26} parent=0 // pred_region
    _
  $region13: #{transformer_decoder_forward.26} parent=0 // pred_fallthru
    _
  %p15 = scmp.eq.s32.totalorder 0, 0
  // Predicated region
  $region14: #{transformer_decoder_forward.26} parent=0 // pred_check
    %p16 = pneg %p15
  $region15: #{transformer_decoder_forward.26} parent=0 // pred_check_branch
    %18 = sbr.rel (%p16) target = $region17
  $region16: #{transformer_decoder_forward.26} parent=0 // pred_region
    %vm19 = vcmask 523264
    %20 = vst.msk [vmem:[#allocation2] sm:$0xff] %vm19, 0.0
    %21 = vst.msk [vmem:[#allocation2 + $0x8] sm:$0xff] %vm19, 0.0
  $region17: #{transformer_decoder_forward.26} parent=0 // pred_fallthru
    _
  %v22 = vld [vmem:[#allocation2] sm:$0xff]
  %v23 = vld [vmem:[#allocation2 + $0x8] sm:$0xff]
  %v24 = vld [vmem:[%s0] sm:$0xf]
  %v25 = vld [vmem:[%s0 + $0x4] sm:$0xf]
  %v26 = vld [vmem:[%s1] sm:$0xf]
  %v27 = vld [vmem:[%s1 + $0x4] sm:$0xf]
  %v28 = vld [vmem:[%s1 + $0x8] sm:$0xf]
  %v29 = vld [vmem:[%s1 + $0xc] sm:$0xf]
  %v32 = vunpack.c.l.b16 %v24
  %v33 = vunpack.c.l.b16 %v25
  %v34 = vpack.c.b16 %v33, %v32
  %v39 = vunpack.c.l.b16 %v26
  %v40 = vunpack.c.l.b16 %v27
  %v41 = vunpack.c.l.b16 %v28
  %v42 = vunpack.c.l.b16 %v29
  %v43 = vpack.c.b16 %v40, %v39
  %v44 = vpack.c.b16 %v42, %v41
  %vm47 = vcmask 261120
  %v49 = vsel %vm47, %v34, 0
  %51 = vmatprep.subr.bf16.mxu0 0
  %52 = vmatpush1.bf16.msra.mxu0 %v43
  %53 = vmatprep.subr.bf16.mxu0 0
  %54 = vmatpush1.bf16.msra.mxu0 %v44
  %55 = vmatprep.subr.bf16.mxu0 0
  %56 = vmatpush1.bf16.msra.mxu0 0
  %57 = vmatprep.subr.bf16.mxu0 0
  %58 = vmatpush1.bf16.msra.mxu0 0
  %59 = vmatprep.subr.bf16.mxu0 0
  %60 = vmatpush1.bf16.msra.mxu0 0
  %61 = vmatprep.subr.bf16.mxu0 0
  %62 = vmatpush1.bf16.msra.mxu0 0
  %63 = vmatprep.subr.bf16.mxu0 0
  %64 = vmatpush1.bf16.msra.mxu0 0
  %65 = vmatprep.subr.bf16.mxu0 0
  %66 = vmatpush1.bf16.msra.mxu0 0
  %67 = vmatprep.subr.bf16.mxu0 0
  %68 = vmatpush1.bf16.msra.mxu0 0
  %69 = vmatprep.subr.bf16.mxu0 0
  %70 = vmatpush1.bf16.msra.mxu0 0
  %71 = vmatprep.subr.bf16.mxu0 0
  %72 = vmatpush1.bf16.msra.mxu0 0
  %73 = vmatprep.subr.bf16.mxu0 0
  %74 = vmatpush1.bf16.msra.mxu0 0
  %75 = vmatprep.subr.bf16.mxu0 0
  %76 = vmatpush1.bf16.msra.mxu0 0
  %77 = vmatprep.subr.bf16.mxu0 0
  %78 = vmatpush1.bf16.msra.mxu0 0
  %79 = vmatprep.subr.bf16.mxu0 0
  %80 = vmatpush1.bf16.msra.mxu0 0
  %81 = vmatprep.subr.bf16.mxu0 0
  %82 = vmatpush1.bf16.msra.mxu0 0
  %83 = vmatprep.mubr.bf16.mxu0 0
  %84 = vmatmul.mubr.bf16.gmra.mrb[0].mxu0 %v49
  %v85 = vpop.f32.mrb[0].mxu0
  %v86 = vadd.f32 0.0, %v85
  %v87 = vpop.f32.mrb[0].mxu0
  %v88 = vpop.f32.mrb[0].mxu0
  %v89 = vadd.f32 0.0, %v88
  %v90 = vpop.f32.mrb[0].mxu0
  %91 = vdwg.mxu0
  %v92 = vadd.f32 %v22, %v86
  %v93 = vadd.f32 %v23, %v89
  %vm94 = vcmask 523264
  %95 = vst.msk [vmem:[#allocation2] sm:$0xff] %vm94, %v92
  %96 = vst.msk [vmem:[#allocation2 + $0x8] sm:$0xff] %vm94, %v93
  // Predicated region
  $region18: #{transformer_decoder_forward.26} parent=0 // pred_check
    %p97 = pneg %p15
  $region19: #{transformer_decoder_forward.26} parent=0 // pred_check_branch
    %99 = sbr.rel (%p97) target = $region21
  $region20: #{transformer_decoder_forward.26} parent=0 // pred_region
    %v100 = vld [vmem:[#allocation2] sm:$0xff]
    %v101 = vld [vmem:[#allocation2 + $0x8] sm:$0xff]
    %v102 = vld [vmem:[%s2] sm:$0x1]
    %v104 = vlaneseq
    %v105 = vshrl.u32 %v104, 7
    %v106 = vsub.s32 0, %v105
    %v107 = vrot.slane %v102, %v106
    %v109 = vadd.f32 %v100, %v107
    %v110 = vadd.f32 %v101, %v107
    %v111 = vmax.f32 %v109, 0.0
    %v112 = vmax.f32 %v110, 0.0
    %v113 = vpack.c.bf16 %v112, %v111
    %v115 = vunpack.c.l.b16 %v113
    %v116 = vunpack.c.h.b16 %v113
    %v117 = vpack.c.b16 %v115, %v115
    %v118 = vpack.c.b16 %v116, %v116
    %vm121 = vcmask 519168
    %122 = vst.msk [vmem:[%s3] sm:$0xf] %vm121, %v117
    %123 = vst.msk [vmem:[%s3 + $0x4] sm:$0xf] %vm121, %v118
  $region21: #{transformer_decoder_forward.26} parent=0 // pred_fallthru
    _
  // Predicated region
  $region22: #{transformer_decoder_forward.26} parent=0 // pred_check
    _
  $region23: #{transformer_decoder_forward.26} parent=0 // pred_check_branch
    %125 = sbr.rel (0) target = $region25
  $region24: #{transformer_decoder_forward.26} parent=0 // pred_region
    _
  $region25: #{transformer_decoder_forward.26} parent=0 // pred_fallthru
    _
  // Predicated region
  $region26: #{transformer_decoder_forward.26} parent=0 // pred_check
    _
  $region27: #{transformer_decoder_forward.26} parent=0 // pred_check_branch
    %127 = sbr.rel (0) target = $region29
  $region28: #{transformer_decoder_forward.26} parent=0 // pred_region
    _
  $region29: #{transformer_decoder_forward.26} parent=0 // pred_fallthru
    _

// kernel: transformer_decoder_forward.23
$region0: #{transformer_decoder_forward.23}
  #allocation0 [shape = 'u32[]', space=smem, size = 0x4, offset = 0x4, fixed_abs, tag = 'smem constant byte address 0x4 - core index']
  #allocation1 [shape = 'u32[144,128]{1,0:T(1,128)}', space=vmem, size = 0x12000, scoped, tag = 'internal scratch']
  #allocation2 [shape = 'f32[24,64]{1,0:T(8,128)}', space=vmem, size = 0x3000, scoped, tag = 'scratch operand']
  %s0 = inlined_call_operand.vmem [shape: bf16[24,32], index: 0, kind: input, shape index: {}]
  %s1 = inlined_call_operand.vmem [shape: bf16[32,64], index: 1, kind: input, shape index: {}]
  %s2 = inlined_call_operand.vmem [shape: f32[1,64], index: 2, kind: input, shape index: {}]
  %s3 = inlined_call_operand.vmem [shape: bf16[24,64], index: 3, kind: output, shape index: {}]
  %s4 = sld [smem:[#allocation0]]
  $region30: #{transformer_decoder_forward.23} parent=0
    _
  %s6 = ssub.s32 1, %s4
  %s7 = scalar_select 0, %s6, %s4
  // Predicated region
  $region2: #{transformer_decoder_forward.23} parent=0 // pred_check
    _
  $region3: #{transformer_decoder_forward.23} parent=0 // pred_check_branch
    %9 = sbr.rel (0) target = $region5
  $region4: #{transformer_decoder_forward.23} parent=0 // pred_region
    _
  $region5: #{transformer_decoder_forward.23} parent=0 // pred_fallthru
    _
  // Predicated region
  $region6: #{transformer_decoder_forward.23} parent=0 // pred_check
    _
  $region7: #{transformer_decoder_forward.23} parent=0 // pred_check_branch
    %11 = sbr.rel (0) target = $region9
  $region8: #{transformer_decoder_forward.23} parent=0 // pred_region
    _
  $region9: #{transformer_decoder_forward.23} parent=0 // pred_fallthru
    _
  // Predicated region
  $region10: #{transformer_decoder_forward.23} parent=0 // pred_check
    _
  $region11: #{transformer_decoder_forward.23} parent=0 // pred_check_branch
    %13 = sbr.rel (0) target = $region13
  $region12: #{transformer_decoder_forward.23} parent=0 // pred_region
    _
  $region13: #{transformer_decoder_forward.23} parent=0 // pred_fallthru
    _
  %p15 = scmp.eq.s32.totalorder 0, 0
  // Predicated region
  $region14: #{transformer_decoder_forward.23} parent=0 // pred_check
    %p16 = pneg %p15
  $region15: #{transformer_decoder_forward.23} parent=0 // pred_check_branch
    %18 = sbr.rel (%p16) target = $region17
  $region16: #{transformer_decoder_forward.23} parent=0 // pred_region
    %vm19 = vcmask 523264
    %20 = vst.msk [vmem:[#allocation2] sm:$0xff] %vm19, 0.0
    %21 = vst.msk [vmem:[#allocation2 + $0x8] sm:$0xff] %vm19, 0.0
    %22 = vst.msk [vmem:[#allocation2 + $0x10] sm:$0xff] %vm19, 0.0
  $region17: #{transformer_decoder_forward.23} parent=0 // pred_fallthru
    _
  %v23 = vld [vmem:[#allocation2] sm:$0xff]
  %v24 = vld [vmem:[#allocation2 + $0x8] sm:$0xff]
  %v25 = vld [vmem:[#allocation2 + $0x10] sm:$0xff]
  %v26 = vld [vmem:[%s0] sm:$0xf]
  %v27 = vld [vmem:[%s0 + $0x4] sm:$0xf]
  %v28 = vld [vmem:[%s0 + $0x8] sm:$0xf]
  %v29 = vld [vmem:[%s1] sm:$0xf]
  %v30 = vld [vmem:[%s1 + $0x4] sm:$0xf]
  %v31 = vld [vmem:[%s1 + $0x8] sm:$0xf]
  %v32 = vld [vmem:[%s1 + $0xc] sm:$0xf]
  %v36 = vunpack.c.l.b16 %v26
  %v37 = vunpack.c.l.b16 %v27
  %v38 = vunpack.c.l.b16 %v28
  %v39 = vpack.c.b16 %v37, %v36
  %v40 = vpack.c.b16 %v38, %v38
  %v45 = vunpack.c.l.b16 %v29
  %v46 = vunpack.c.l.b16 %v30
  %v47 = vunpack.c.l.b16 %v31
  %v48 = vunpack.c.l.b16 %v32
  %v49 = vpack.c.b16 %v46, %v45
  %v50 = vpack.c.b16 %v48, %v47
  %vm53 = vcmask 261120
  %v55 = vsel %vm53, %v39, 0
  %v58 = vsel %vm53, %v40, 0
  %60 = vmatprep.subr.bf16.mxu0 0
  %61 = vmatpush1.bf16.msra.mxu0 %v49
  %62 = vmatprep.subr.bf16.mxu0 0
  %63 = vmatpush1.bf16.msra.mxu0 %v50
  %64 = vmatprep.subr.bf16.mxu0 0
  %65 = vmatpush1.bf16.msra.mxu0 0
  %66 = vmatprep.subr.bf16.mxu0 0
  %67 = vmatpush1.bf16.msra.mxu0 0
  %68 = vmatprep.subr.bf16.mxu0 0
  %69 = vmatpush1.bf16.msra.mxu0 0
  %70 = vmatprep.subr.bf16.mxu0 0
  %71 = vmatpush1.bf16.msra.mxu0 0
  %72 = vmatprep.subr.bf16.mxu0 0
  %73 = vmatpush1.bf16.msra.mxu0 0
  %74 = vmatprep.subr.bf16.mxu0 0
  %75 = vmatpush1.bf16.msra.mxu0 0
  %76 = vmatprep.subr.bf16.mxu0 0
  %77 = vmatpush1.bf16.msra.mxu0 0
  %78 = vmatprep.subr.bf16.mxu0 0
  %79 = vmatpush1.bf16.msra.mxu0 0
  %80 = vmatprep.subr.bf16.mxu0 0
  %81 = vmatpush1.bf16.msra.mxu0 0
  %82 = vmatprep.subr.bf16.mxu0 0
  %83 = vmatpush1.bf16.msra.mxu0 0
  %84 = vmatprep.subr.bf16.mxu0 0
  %85 = vmatpush1.bf16.msra.mxu0 0
  %86 = vmatprep.subr.bf16.mxu0 0
  %87 = vmatpush1.bf16.msra.mxu0 0
  %88 = vmatprep.subr.bf16.mxu0 0
  %89 = vmatpush1.bf16.msra.mxu0 0
  %90 = vmatprep.subr.bf16.mxu0 0
  %91 = vmatpush1.bf16.msra.mxu0 0
  %92 = vmatprep.mubr.bf16.mxu0 0
  %93 = vmatmul.mubr.bf16.gmra.mrb[0].mxu0 %v55
  %v94 = vpop.f32.mrb[0].mxu0
  %v95 = vadd.f32 0.0, %v94
  %v96 = vpop.f32.mrb[0].mxu0
  %v97 = vpop.f32.mrb[0].mxu0
  %v98 = vadd.f32 0.0, %v97
  %v99 = vpop.f32.mrb[0].mxu0
  %100 = vmatprep.mubr.bf16.mxu0 0
  %101 = vmatmul.mubr.bf16.gmra.mrb[0].mxu0 %v58
  %v102 = vpop.f32.mrb[0].mxu0
  %v103 = vadd.f32 0.0, %v102
  %v104 = vpop.f32.mrb[0].mxu0
  %v105 = vpop.f32.mrb[0].mxu0
  %v106 = vpop.f32.mrb[0].mxu0
  %107 = vdwg.mxu0
  %v108 = vadd.f32 %v23, %v95
  %v109 = vadd.f32 %v24, %v98
  %v110 = vadd.f32 %v25, %v103
  %vm111 = vcmask 523264
  %112 = vst.msk [vmem:[#allocation2] sm:$0xff] %vm111, %v108
  %113 = vst.msk [vmem:[#allocation2 + $0x8] sm:$0xff] %vm111, %v109
  %114 = vst.msk [vmem:[#allocation2 + $0x10] sm:$0xff] %vm111, %v110
  // Predicated region
  $region18: #{transformer_decoder_forward.23} parent=0 // pred_check
    %p115 = pneg %p15
  $region19: #{transformer_decoder_forward.23} parent=0 // pred_check_branch
    %117 = sbr.rel (%p115) target = $region21
  $region20: #{transformer_decoder_forward.23} parent=0 // pred_region
    %v118 = vld [vmem:[#allocation2] sm:$0xff]
    %v119 = vld [vmem:[#allocation2 + $0x8] sm:$0xff]
    %v120 = vld [vmem:[#allocation2 + $0x10] sm:$0xff]
    %v121 = vld [vmem:[%s2] sm:$0x1]
    %v123 = vlaneseq
    %v124 = vshrl.u32 %v123, 7
    %v125 = vsub.s32 0, %v124
    %v126 = vrot.slane %v121, %v125
    %v128 = vadd.f32 %v118, %v126
    %v129 = vadd.f32 %v119, %v126
    %v130 = vadd.f32 %v120, %v126
    %v131 = vpack.c.bf16 %v129, %v128
    %v132 = vpack.c.bf16 %v130, %v130
    %v135 = vunpack.c.l.b16 %v131
    %v136 = vunpack.c.h.b16 %v131
    %v137 = vunpack.c.l.b16 %v132
    %v138 = vpack.c.b16 %v135, %v135
    %v139 = vpack.c.b16 %v136, %v136
    %v140 = vpack.c.b16 %v137, %v137
    %vm144 = vcmask 519168
    %145 = vst.msk [vmem:[%s3] sm:$0xf] %vm144, %v138
    %146 = vst.msk [vmem:[%s3 + $0x4] sm:$0xf] %vm144, %v139
    %147 = vst.msk [vmem:[%s3 + $0x8] sm:$0xf] %vm144, %v140
  $region21: #{transformer_decoder_forward.23} parent=0 // pred_fallthru
    _
  // Predicated region
  $region22: #{transformer_decoder_forward.23} parent=0 // pred_check
    _
  $region23: #{transformer_decoder_forward.23} parent=0 // pred_check_branch
    %149 = sbr.rel (0) target = $region25
  $region24: #{transformer_decoder_forward.23} parent=0 // pred_region
    _
  $region25: #{transformer_decoder_forward.23} parent=0 // pred_fallthru
    _
  // Predicated region
  $region26: #{transformer_decoder_forward.23} parent=0 // pred_check
    _
  $region27: #{transformer_decoder_forward.23} parent=0 // pred_check_branch
    %151 = sbr.rel (0) target = $region29
  $region28: #{transformer_decoder_forward.23} parent=0 // pred_region
    _
  $region29: #{transformer_decoder_forward.23} parent=0 // pred_fallthru
    _

// kernel: transformer_decoder_forward.24
$region0: #{transformer_decoder_forward.24}
  #allocation0 [shape = 'u32[]', space=smem, size = 0x4, offset = 0x4, fixed_abs, tag = 'smem constant byte address 0x4 - core index']
  #allocation1 [shape = 'u32[144,128]{1,0:T(1,128)}', space=vmem, size = 0x12000, scoped, tag = 'internal scratch']
  %s0 = inlined_call_operand.vmem [shape: bf16[2,8,32], index: 0, kind: input, shape index: {}]
  %s1 = inlined_call_operand.vmem [shape: bf16[2,10,32], index: 1, kind: input, shape index: {}]
  %s2 = inlined_call_operand.vmem [shape: bf16[2,10,32], index: 2, kind: input, shape index: {}]
  %s3 = inlined_call_operand.vmem [shape: bf16[2,8,32], index: 3, kind: output, shape index: {}]
  %s4 = sld [smem:[#allocation0]]
  $region45: #{transformer_decoder_forward.24} parent=0
    _
  %s6 = ssub.s32 1, %s4
  %s7 = scalar_select 0, %s6, %s4
  loop: start=0, step=1, limit=4
  $region2: #{transformer_decoder_forward.24} parent=0 // loop_pre_header
    _
  $region3: #{transformer_decoder_forward.24} parent=0 // loop_header
    %s9 = sphi 0, %s13
    %p10 = scmp.ge.s32.totalorder %s9, 4
    %s19 = sphi 0, %s21
    %s22 = sphi 0, %s19
    %s23 = sphi 0, %s22
    %s39 = sphi 0, %s23
    %s45 = sphi 0, %s47
    %s48 = sphi 0, %s45
    %s49 = sphi 0, %s48
    %s65 = sphi 0, %s49
    %s71 = sphi 0, %s73
    %s74 = sphi 0, %s71
    %s75 = sphi 0, %s74
    %s91 = sphi 0, %s75
    %s97 = sphi 0, %s99
    %s100 = sphi 0, %s97
    %s101 = sphi 0, %s100
    %s117 = sphi 0, %s101
  $region4: #{transformer_decoder_forward.24} parent=0 // loop_header_branch
    %12 = sbr.rel (%p10) target = $region8
  $region5: #{transformer_decoder_forward.24} parent=0 // loop_body
    %s14 = ssub.s32 %s9, 1
    %s15 = ssub.s32 %s9, 2
    %s16 = sadd.s32 %s9, 1
    %s17 = ssub.s32 %s9, %s16
    %p18 = scmp.eq.s32.totalorder %s17, 0
    %s20 = sadd.s32 %s19, 1
    %s21 = scalar_select %p18, %s19, %s20
    %p24 = pneg %p18
    %p25 = scmp.eq.s32.totalorder %s9, 1
    %p26 = por %p24, %p25
    %p27 = scmp.ne.s32.totalorder %s19, %s22
    %p28 = scmp.eq.s32.totalorder %s9, 0
    %p29 = por %p27, %p28
    %p30 = scmp.ne.s32.totalorder %s19, %s22
    %p31 = scmp.eq.s32.totalorder %s14, 1
    %p32 = por %p30, %p31
    %p33 = scmp.ne.s32.totalorder %s22, %s23
    %p34 = scmp.eq.s32.totalorder %s14, 0
    %p35 = por %p33, %p34
    %p36 = scmp.ne.s32.totalorder %s22, %s23
    %p37 = scmp.eq.s32.totalorder %s15, 1
    %p38 = por %p36, %p37
    %p40 = scmp.ne.s32.totalorder %s23, %s39
    %p41 = scmp.eq.s32.totalorder %s15, 0
    %p42 = por %p40, %p41
    %s43 = ssub.s32 %s9, %s16
    %p44 = scmp.eq.s32.totalorder %s43, 0
    %s46 = sadd.s32 %s45, 1
    %s47 = scalar_select %p44, %s45, %s46
    %p50 = pneg %p44
    %p51 = scmp.eq.s32.totalorder %s9, 1
    %p52 = por %p50, %p51
    %p53 = scmp.ne.s32.totalorder %s45, %s48
    %p54 = scmp.eq.s32.totalorder %s9, 0
    %p55 = por %p53, %p54
    %p56 = scmp.ne.s32.totalorder %s45, %s48
    %p57 = scmp.eq.s32.totalorder %s14, 1
    %p58 = por %p56, %p57
    %p59 = scmp.ne.s32.totalorder %s48, %s49
    %p60 = scmp.eq.s32.totalorder %s14, 0
    %p61 = por %p59, %p60
    %p62 = scmp.ne.s32.totalorder %s48, %s49
    %p63 = scmp.eq.s32.totalorder %s15, 1
    %p64 = por %p62, %p63
    %p66 = scmp.ne.s32.totalorder %s49, %s65
    %p67 = scmp.eq.s32.totalorder %s15, 0
    %p68 = por %p66, %p67
    %s69 = ssub.s32 %s9, %s16
    %p70 = scmp.eq.s32.totalorder %s69, 0
    %s72 = sadd.s32 %s71, 1
    %s73 = scalar_select %p70, %s71, %s72
    %p76 = pneg %p70
    %p77 = scmp.eq.s32.totalorder %s9, 1
    %p78 = por %p76, %p77
    %p79 = scmp.ne.s32.totalorder %s71, %s74
    %p80 = scmp.eq.s32.totalorder %s9, 0
    %p81 = por %p79, %p80
    %p82 = scmp.ne.s32.totalorder %s71, %s74
    %p83 = scmp.eq.s32.totalorder %s14, 1
    %p84 = por %p82, %p83
    %p85 = scmp.ne.s32.totalorder %s74, %s75
    %p86 = scmp.eq.s32.totalorder %s14, 0
    %p87 = por %p85, %p86
    %p88 = scmp.ne.s32.totalorder %s74, %s75
    %p89 = scmp.eq.s32.totalorder %s15, 1
    %p90 = por %p88, %p89
    %p92 = scmp.ne.s32.totalorder %s75, %s91
    %p93 = scmp.eq.s32.totalorder %s15, 0
    %p94 = por %p92, %p93
    %s95 = ssub.s32 %s9, %s16
    %p96 = scmp.eq.s32.totalorder %s95, 0
    %s98 = sadd.s32 %s97, 1
    %s99 = scalar_select %p96, %s97, %s98
    %p102 = pneg %p96
    %p103 = scmp.eq.s32.totalorder %s9, 1
    %p104 = por %p102, %p103
    %p105 = scmp.ne.s32.totalorder %s97, %s100
    %p106 = scmp.eq.s32.totalorder %s9, 0
    %p107 = por %p105, %p106
    %p108 = scmp.ne.s32.totalorder %s97, %s100
    %p109 = scmp.eq.s32.totalorder %s14, 1
    %p110 = por %p108, %p109
    %p111 = scmp.ne.s32.totalorder %s100, %s101
    %p112 = scmp.eq.s32.totalorder %s14, 0
    %p113 = por %p111, %p112
    %p114 = scmp.ne.s32.totalorder %s100, %s101
    %p115 = scmp.eq.s32.totalorder %s15, 1
    %p116 = por %p114, %p115
    %p118 = scmp.ne.s32.totalorder %s101, %s117
    %p119 = scmp.eq.s32.totalorder %s15, 0
    %p120 = por %p118, %p119
    %p121 = scmp.le.s32.totalorder 1, %s9
    %p122 = scmp.lt.s32.totalorder %s9, 3
    %p123 = pnand %p121, %p122
    %p124 = pneg %p123
    // Predicated region
    $region9: #{transformer_decoder_forward.24} parent=5 // pred_check
      _
    $region10: #{transformer_decoder_forward.24} parent=5 // pred_check_branch
      %126 = sbr.rel (%p123) target = $region12
    $region11: #{transformer_decoder_forward.24} parent=5 // pred_region
      %s127 = ssub.s32 %s9, 1
    $region12: #{transformer_decoder_forward.24} parent=5 // pred_fallthru
      _
    %p128 = scmp.lt.s32.totalorder %s9, 2
    // Predicated region
    $region13: #{transformer_decoder_forward.24} parent=5 // pred_check
      %p129 = pneg %p128
    $region14: #{transformer_decoder_forward.24} parent=5 // pred_check_branch
      %131 = sbr.rel (%p129) target = $region16
    $region15: #{transformer_decoder_forward.24} parent=5 // pred_region
      // Predicated region
      $region17: #{transformer_decoder_forward.24} parent=15 // pred_check
        %p132 = pneg %p29
      $region18: #{transformer_decoder_forward.24} parent=15 // pred_check_branch
        %134 = sbr.rel (%p132) target = $region20
      $region19: #{transformer_decoder_forward.24} parent=15 // pred_region
        %p135 = scmp.lt.s32.totalorder %s9, 1
        %s136 = scalar_select %p135, %s9, 1
        %s137 = smul.addr %s136, 4
        %s138 = scalar_lea.vmem %s0, %s137
      $region20: #{transformer_decoder_forward.24} parent=15 // pred_fallthru
        _
      // Predicated region
      $region21: #{transformer_decoder_forward.24} parent=15 // pred_check
        %p139 = pneg %p55
      $region22: #{transformer_decoder_forward.24} parent=15 // pred_check_branch
        %141 = sbr.rel (%p139) target = $region24
      $region23: #{transformer_decoder_forward.24} parent=15 // pred_region
        %p142 = scmp.lt.s32.totalorder %s9, 1
        %s143 = scalar_select %p142, %s9, 1
        %s144 = smul.addr %s143, 2
        %s145 = smul.addr %s144, 4
        %s146 = scalar_lea.vmem %s1, %s145
      $region24: #{transformer_decoder_forward.24} parent=15 // pred_fallthru
        _
      // Predicated region
      $region25: #{transformer_decoder_forward.24} parent=15 // pred_check
        %p147 = pneg %p81
      $region26: #{transformer_decoder_forward.24} parent=15 // pred_check_branch
        %149 = sbr.rel (%p147) target = $region28
      $region27: #{transformer_decoder_forward.24} parent=15 // pred_region
        %p150 = scmp.lt.s32.totalorder %s9, 1
        %s151 = scalar_select %p150, %s9, 1
        %s152 = smul.addr %s151, 2
        %s153 = smul.addr %s152, 4
        %s154 = scalar_lea.vmem %s2, %s153
      $region28: #{transformer_decoder_forward.24} parent=15 // pred_fallthru
        _
    $region16: #{transformer_decoder_forward.24} parent=5 // pred_fallthru
      _
    %p155 = scmp.le.s32.totalorder 1, %s9
    %p156 = scmp.lt.s32.totalorder %s9, 3
    %p157 = pnand %p155, %p156
    %p158 = pneg %p157
    // Predicated region
    $region29: #{transformer_decoder_forward.24} parent=5 // pred_check
      _
    $region30: #{transformer_decoder_forward.24} parent=5 // pred_check_branch
      %160 = sbr.rel (%p157) target = $region32
    $region31: #{transformer_decoder_forward.24} parent=5 // pred_region
      %s161 = ssub.s32 %s9, 1
      %p162 = scmp.lt.s32.totalorder %s14, 1
      %s163 = scalar_select %p162, %s14, 1
      %s164 = smul.addr %s163, 4
      %s165 = scalar_lea.vmem %s0, %s164
      %p166 = pneg %p35
      %p167 = pneg %p32
      %p168 = scmp.lt.s32.totalorder %s14, 1
      %s169 = scalar_select %p168, %s14, 1
      %s170 = smul.addr %s169, 2
      %s171 = smul.addr %s170, 4
      %s172 = scalar_lea.vmem %s1, %s171
      %p173 = pneg %p61
      %p174 = pneg %p58
      %p175 = scmp.lt.s32.totalorder %s14, 1
      %s176 = scalar_select %p175, %s14, 1
      %s177 = smul.addr %s176, 2
      %s178 = smul.addr %s177, 4
      %s179 = scalar_lea.vmem %s2, %s178
      %p180 = pneg %p87
      %p181 = pneg %p84
      %p182 = pneg %p113
      %p183 = pneg %p110
      %p184 = scmp.lt.s32.totalorder %s14, 1
      %s185 = scalar_select %p184, %s14, 1
      %s186 = smul.addr %s185, 4
      %s187 = scalar_lea.vmem %s3, %s186
      %p188 = scmp.lt.s32.totalorder %s14, 1
      %s189 = scalar_select %p188, %s14, 1
      %s190 = smul.addr %s189, 4
      %s191 = scalar_lea.vmem %s0, %s190
      %p192 = scmp.lt.s32.totalorder %s14, 1
      %s193 = scalar_select %p192, %s14, 1
      %s194 = smul.addr %s193, 2
      %s195 = smul.addr %s194, 4
      %s196 = scalar_lea.vmem %s1, %s195
      %p197 = scmp.lt.s32.totalorder %s14, 1
      %s198 = scalar_select %p197, %s14, 1
      %s199 = smul.addr %s198, 2
      %s200 = smul.addr %s199, 4
      %s201 = scalar_lea.vmem %s2, %s200
      %p202 = scmp.lt.s32.totalorder %s14, 1
      %s203 = scalar_select %p202, %s14, 1
      %s204 = smul.addr %s203, 4
      %s205 = scalar_lea.vmem %s3, %s204
      %v206 = vld [vmem:[%s191] sm:$0xf]
      %v207 = vunpack.c.l.bf16 %v206
      %v208 = vld [vmem:[%s196] sm:$0xf]
      %v209 = vld [vmem:[%s196 + $0x4] sm:$0x1]
      %v210 = vunpack.c.l.bf16 %v208
      %v211 = vunpack.c.l.bf16 %v209
      %v212 = vld [vmem:[%s201] sm:$0xf]
      %v213 = vld [vmem:[%s201 + $0x4] sm:$0x1]
      %v214 = vunpack.c.l.bf16 %v212
      %v215 = vunpack.c.l.bf16 %v213
      %vm216 = vcmask 64512
      %v218 = vsel %vm216, %v207, 0
      %v221 = vsel %vm216, %v210, 0
      %v224 = vsel %vm216, %v211, 0
      %226 = vmatprep.subr.mxu0 0.0
      %227 = vmatpush1.xpose.msra.mxu0 %v221
      %228 = vmatprep.subr.mxu0 0.0
      %229 = vmatpush1.xpose.msra.mxu0 %v224
      %230 = vmatprep.subr.mxu0 0.0
      %231 = vmatpush1.xpose.msra.mxu0 0.0
      %232 = vmatprep.subr.mxu0 0.0
      %233 = vmatpush1.xpose.msra.mxu0 0.0
      %234 = vmatprep.subr.mxu0 0.0
      %235 = vmatpush1.xpose.msra.mxu0 0.0
      %236 = vmatprep.subr.mxu0 0.0
      %237 = vmatpush1.xpose.msra.mxu0 0.0
      %238 = vmatprep.subr.mxu0 0.0
      %239 = vmatpush1.xpose.msra.mxu0 0.0
      %240 = vmatprep.subr.mxu0 0.0
      %241 = vmatpush1.xpose.msra.mxu0 0.0
      %242 = vmatprep.subr.mxu0 0.0
      %243 = vmatpush1.xpose.msra.mxu0 0.0
      %244 = vmatprep.subr.mxu0 0.0
      %245 = vmatpush1.xpose.msra.mxu0 0.0
      %246 = vmatprep.subr.mxu0 0.0
      %247 = vmatpush1.xpose.msra.mxu0 0.0
      %248 = vmatprep.subr.mxu0 0.0
      %249 = vmatpush1.xpose.msra.mxu0 0.0
      %250 = vmatprep.subr.mxu0 0.0
      %251 = vmatpush1.xpose.msra.mxu0 0.0
      %252 = vmatprep.subr.mxu0 0.0
      %253 = vmatpush1.xpose.msra.mxu0 0.0
      %254 = vmatprep.subr.mxu0 0.0
      %255 = vmatpush1.xpose.msra.mxu0 0.0
      %256 = vmatprep.subr.mxu0 0.0
      %257 = vmatpush1.xpose.msra.mxu0 0.0
      %258 = vmatprep.subr.mxu0 0.0
      %259 = vmatpush1.xpose.msra.mxu0 0.0
      %260 = vmatprep.subr.mxu0 0.0
      %261 = vmatpush1.xpose.msra.mxu0 0.0
      %262 = vmatprep.subr.mxu0 0.0
      %263 = vmatpush1.xpose.msra.mxu0 0.0
      %264 = vmatprep.subr.mxu0 0.0
      %265 = vmatpush1.xpose.msra.mxu0 0.0
      %266 = vmatprep.subr.mxu0 0.0
      %267 = vmatpush1.xpose.msra.mxu0 0.0
      %268 = vmatprep.subr.mxu0 0.0
      %269 = vmatpush1.xpose.msra.mxu0 0.0
      %270 = vmatprep.subr.mxu0 0.0
      %271 = vmatpush1.xpose.msra.mxu0 0.0
      %272 = vmatprep.subr.mxu0 0.0
      %273 = vmatpush1.xpose.msra.mxu0 0.0
      %274 = vmatprep.subr.mxu0 0.0
      %275 = vmatpush1.xpose.msra.mxu0 0.0
      %276 = vmatprep.subr.mxu0 0.0
      %277 = vmatpush1.xpose.msra.mxu0 0.0
      %278 = vmatprep.subr.mxu0 0.0
      %279 = vmatpush1.xpose.msra.mxu0 0.0
      %280 = vmatprep.subr.mxu0 0.0
      %281 = vmatpush1.xpose.msra.mxu0 0.0
      %282 = vmatprep.subr.mxu0 0.0
      %283 = vmatpush1.xpose.msra.mxu0 0.0
      %284 = vmatprep.subr.mxu0 0.0
      %285 = vmatpush1.xpose.msra.mxu0 0.0
      %286 = vmatprep.subr.mxu0 0.0
      %287 = vmatpush1.xpose.msra.mxu0 0.0
      %288 = vmatprep.subr.mxu0 0.0
      %289 = vmatpush1.xpose.msra.mxu0 0.0
      %290 = vmatprep.mubr.f32.mxu0 0.0
      %291 = vmatmul.mubr.f32.gmra.mrb[0].mxu0 %v218
      %v292 = vpop.f32.mrb[0].mxu0
      %v293 = vadd.f32 0.0, %v292
      %v294 = vpop.f32.mrb[0].mxu0
      %295 = vdwg.mxu0
      %v296 = vmul.f32 %v293, 0.35355338
      %vm297 = vcmask 80896
      %v298 = vsel %vm297, %v296, -inf
      %299 = vmax.xlane.f32.xlu0 %v298
      %v300 = vpop.xlane.xlu0 %299
      %v301 = vsub.f32 %v296, %v300
      %v302 = vmul.f32 %v301, 1.442695
      %v303 = vpow.pop %v302
      %v304 = vsel %vm297, %v303, 0.0
      %305 = vadd.xlane.f32.xlu0 %v304
      %v306 = vpop.xlane.xlu0 %305
      %v307 = vrcp.pop %v306
      %v308 = vmul.f32 %v303, %v307
      %v310 = vsel %vm297, %v308, 0
      %vm312 = vcmask 1041408
      %v314 = vsel %vm312, %v215, 0
      %316 = vmatprep.subr.mxu0 0.0
      %317 = vmatpush1.msra.mxu0 %v214
      %318 = vmatprep.subr.mxu0 0.0
      %319 = vmatpush1.msra.mxu0 %v314
      %320 = vmatprep.subr.mxu0 0.0
      %321 = vmatpush1.msra.mxu0 0.0
      %322 = vmatprep.subr.mxu0 0.0
      %323 = vmatpush1.msra.mxu0 0.0
      %324 = vmatprep.subr.mxu0 0.0
      %325 = vmatpush1.msra.mxu0 0.0
      %326 = vmatprep.subr.mxu0 0.0
      %327 = vmatpush1.msra.mxu0 0.0
      %328 = vmatprep.subr.mxu0 0.0
      %329 = vmatpush1.msra.mxu0 0.0
      %330 = vmatprep.subr.mxu0 0.0
      %331 = vmatpush1.msra.mxu0 0.0
      %332 = vmatprep.subr.mxu0 0.0
      %333 = vmatpush1.msra.mxu0 0.0
      %334 = vmatprep.subr.mxu0 0.0
      %335 = vmatpush1.msra.mxu0 0.0
      %336 = vmatprep.subr.mxu0 0.0
      %337 = vmatpush1.msra.mxu0 0.0
      %338 = vmatprep.subr.mxu0 0.0
      %339 = vmatpush1.msra.mxu0 0.0
      %340 = vmatprep.subr.mxu0 0.0
      %341 = vmatpush1.msra.mxu0 0.0
      %342 = vmatprep.subr.mxu0 0.0
      %343 = vmatpush1.msra.mxu0 0.0
      %344 = vmatprep.subr.mxu0 0.0
      %345 = vmatpush1.msra.mxu0 0.0
      %346 = vmatprep.subr.mxu0 0.0
      %347 = vmatpush1.msra.mxu0 0.0
      %348 = vmatprep.subr.mxu0 0.0
      %349 = vmatpush1.msra.mxu0 0.0
      %350 = vmatprep.subr.mxu0 0.0
      %351 = vmatpush1.msra.mxu0 0.0
      %352 = vmatprep.subr.mxu0 0.0
      %353 = vmatpush1.msra.mxu0 0.0
      %354 = vmatprep.subr.mxu0 0.0
      %355 = vmatpush1.msra.mxu0 0.0
      %356 = vmatprep.subr.mxu0 0.0
      %357 = vmatpush1.msra.mxu0 0.0
      %358 = vmatprep.subr.mxu0 0.0
      %359 = vmatpush1.msra.mxu0 0.0
      %360 = vmatprep.subr.mxu0 0.0
      %361 = vmatpush1.msra.mxu0 0.0
      %362 = vmatprep.subr.mxu0 0.0
      %363 = vmatpush1.msra.mxu0 0.0
      %364 = vmatprep.subr.mxu0 0.0
      %365 = vmatpush1.msra.mxu0 0.0
      %366 = vmatprep.subr.mxu0 0.0
      %367 = vmatpush1.msra.mxu0 0.0
      %368 = vmatprep.subr.mxu0 0.0
      %369 = vmatpush1.msra.mxu0 0.0
      %370 = vmatprep.subr.mxu0 0.0
      %371 = vmatpush1.msra.mxu0 0.0
      %372 = vmatprep.subr.mxu0 0.0
      %373 = vmatpush1.msra.mxu0 0.0
      %374 = vmatprep.subr.mxu0 0.0
      %375 = vmatpush1.msra.mxu0 0.0
      %376 = vmatprep.subr.mxu0 0.0
      %377 = vmatpush1.msra.mxu0 0.0
      %378 = vmatprep.subr.mxu0 0.0
      %379 = vmatpush1.msra.mxu0 0.0
      %380 = vmatprep.mubr.f32.mxu0 0.0
      %381 = vmatmul.mubr.f32.gmra.mrb[0].mxu0 %v310
      %v382 = vpop.f32.mrb[0].mxu0
      %v383 = vadd.f32 0.0, %v382
      %v384 = vpop.f32.mrb[0].mxu0
      %385 = vdwg.mxu0
      %v386 = vpack.c.bf16 %v383, %v383
      %vm387 = vcmask 60416
      %388 = vst.msk [vmem:[%s205] sm:$0xf] %vm387, %v386
      %v389 = vld [vmem:[%s191] sm:$0xf]
      %v390 = vunpack.c.l.bf16 %v389
      %v391 = vld [vmem:[%s196] sm:$0xf]
      %v392 = vld [vmem:[%s196 + $0x4] sm:$0x1]
      %v393 = vunpack.c.l.bf16 %v391
      %v394 = vunpack.c.l.bf16 %v392
      %v395 = vld [vmem:[%s201] sm:$0xf]
      %v396 = vld [vmem:[%s201 + $0x4] sm:$0x1]
      %v397 = vunpack.c.l.bf16 %v395
      %v398 = vunpack.c.l.bf16 %v396
      %400 = vrot.lane.b32.xlu0 %v390, 120
      %v401 = vpop.permute.xlu0 %400
      %404 = vrot.lane.b32.xlu0 %v393, 120
      %v405 = vpop.permute.xlu0 %404
      %406 = vrot.lane.b32.xlu0 %v394, 120
      %v407 = vpop.permute.xlu0 %406
      %v408 = vsel %vm216, %v401, 0
      %v410 = vsel %vm216, %v405, 0
      %v412 = vsel %vm216, %v407, 0
      %414 = vmatprep.subr.mxu0 0.0
      %415 = vmatpush1.xpose.msra.mxu0 %v410
      %416 = vmatprep.subr.mxu0 0.0
      %417 = vmatpush1.xpose.msra.mxu0 %v412
      %418 = vmatprep.subr.mxu0 0.0
      %419 = vmatpush1.xpose.msra.mxu0 0.0
      %420 = vmatprep.subr.mxu0 0.0
      %421 = vmatpush1.xpose.msra.mxu0 0.0
      %422 = vmatprep.subr.mxu0 0.0
      %423 = vmatpush1.xpose.msra.mxu0 0.0
      %424 = vmatprep.subr.mxu0 0.0
      %425 = vmatpush1.xpose.msra.mxu0 0.0
      %426 = vmatprep.subr.mxu0 0.0
      %427 = vmatpush1.xpose.msra.mxu0 0.0
      %428 = vmatprep.subr.mxu0 0.0
      %429 = vmatpush1.xpose.msra.mxu0 0.0
      %430 = vmatprep.subr.mxu0 0.0
      %431 = vmatpush1.xpose.msra.mxu0 0.0
      %432 = vmatprep.subr.mxu0 0.0
      %433 = vmatpush1.xpose.msra.mxu0 0.0
      %434 = vmatprep.subr.mxu0 0.0
      %435 = vmatpush1.xpose.msra.mxu0 0.0
      %436 = vmatprep.subr.mxu0 0.0
      %437 = vmatpush1.xpose.msra.mxu0 0.0
      %438 = vmatprep.subr.mxu0 0.0
      %439 = vmatpush1.xpose.msra.mxu0 0.0
      %440 = vmatprep.subr.mxu0 0.0
      %441 = vmatpush1.xpose.msra.mxu0 0.0
      %442 = vmatprep.subr.mxu0 0.0
      %443 = vmatpush1.xpose.msra.mxu0 0.0
      %444 = vmatprep.subr.mxu0 0.0
      %445 = vmatpush1.xpose.msra.mxu0 0.0
      %446 = vmatprep.subr.mxu0 0.0
      %447 = vmatpush1.xpose.msra.mxu0 0.0
      %448 = vmatprep.subr.mxu0 0.0
      %449 = vmatpush1.xpose.msra.mxu0 0.0
      %450 = vmatprep.subr.mxu0 0.0
      %451 = vmatpush1.xpose.msra.mxu0 0.0
      %452 = vmatprep.subr.mxu0 0.0
      %453 = vmatpush1.xpose.msra.mxu0 0.0
      %454 = vmatprep.subr.mxu0 0.0
      %455 = vmatpush1.xpose.msra.mxu0 0.0
      %456 = vmatprep.subr.mxu0 0.0
      %457 = vmatpush1.xpose.msra.mxu0 0.0
      %458 = vmatprep.subr.mxu0 0.0
      %459 = vmatpush1.xpose.msra.mxu0 0.0
      %460 = vmatprep.subr.mxu0 0.0
      %461 = vmatpush1.xpose.msra.mxu0 0.0
      %462 = vmatprep.subr.mxu0 0.0
      %463 = vmatpush1.xpose.msra.mxu0 0.0
      %464 = vmatprep.subr.mxu0 0.0
      %465 = vmatpush1.xpose.msra.mxu0 0.0
      %466 = vmatprep.subr.mxu0 0.0
      %467 = vmatpush1.xpose.msra.mxu0 0.0
      %468 = vmatprep.subr.mxu0 0.0
      %469 = vmatpush1.xpose.msra.mxu0 0.0
      %470 = vmatprep.subr.mxu0 0.0
      %471 = vmatpush1.xpose.msra.mxu0 0.0
      %472 = vmatprep.subr.mxu0 0.0
      %473 = vmatpush1.xpose.msra.mxu0 0.0
      %474 = vmatprep.subr.mxu0 0.0
      %475 = vmatpush1.xpose.msra.mxu0 0.0
      %476 = vmatprep.subr.mxu0 0.0
      %477 = vmatpush1.xpose.msra.mxu0 0.0
      %478 = vmatprep.mubr.f32.mxu0 0.0
      %479 = vmatmul.mubr.f32.gmra.mrb[0].mxu0 %v408
      %v480 = vpop.f32.mrb[0].mxu0
      %v481 = vadd.f32 0.0, %v480
      %v482 = vpop.f32.mrb[0].mxu0
      %483 = vdwg.mxu0
      %v484 = vmul.f32 %v481, 0.35355338
      %v485 = vsel %vm297, %v484, -inf
      %486 = vmax.xlane.f32.xlu0 %v485
      %v487 = vpop.xlane.xlu0 %486
      %v488 = vsub.f32 %v484, %v487
      %v489 = vmul.f32 %v488, 1.442695
      %v490 = vpow.pop %v489
      %v491 = vsel %vm297, %v490, 0.0
      %492 = vadd.xlane.f32.xlu0 %v491
      %v493 = vpop.xlane.xlu0 %492
      %v494 = vrcp.pop %v493
      %v495 = vmul.f32 %v490, %v494
      %498 = vrot.lane.b32.xlu0 %v397, 120
      %v499 = vpop.permute.xlu0 %498
      %500 = vrot.lane.b32.xlu0 %v398, 120
      %v501 = vpop.permute.xlu0 %500
      %v504 = vsel %vm297, %v495, 0
      %v506 = vsel %vm312, %v501, 0
      %508 = vmatprep.subr.mxu0 0.0
      %509 = vmatpush1.msra.mxu0 %v499
      %510 = vmatprep.subr.mxu0 0.0
      %511 = vmatpush1.msra.mxu0 %v506
      %512 = vmatprep.subr.mxu0 0.0
      %513 = vmatpush1.msra.mxu0 0.0
      %514 = vmatprep.subr.mxu0 0.0
      %515 = vmatpush1.msra.mxu0 0.0
      %516 = vmatprep.subr.mxu0 0.0
      %517 = vmatpush1.msra.mxu0 0.0
      %518 = vmatprep.subr.mxu0 0.0
      %519 = vmatpush1.msra.mxu0 0.0
      %520 = vmatprep.subr.mxu0 0.0
      %521 = vmatpush1.msra.mxu0 0.0
      %522 = vmatprep.subr.mxu0 0.0
      %523 = vmatpush1.msra.mxu0 0.0
      %524 = vmatprep.subr.mxu0 0.0
      %525 = vmatpush1.msra.mxu0 0.0
      %526 = vmatprep.subr.mxu0 0.0
      %527 = vmatpush1.msra.mxu0 0.0
      %528 = vmatprep.subr.mxu0 0.0
      %529 = vmatpush1.msra.mxu0 0.0
      %530 = vmatprep.subr.mxu0 0.0
      %531 = vmatpush1.msra.mxu0 0.0
      %532 = vmatprep.subr.mxu0 0.0
      %533 = vmatpush1.msra.mxu0 0.0
      %534 = vmatprep.subr.mxu0 0.0
      %535 = vmatpush1.msra.mxu0 0.0
      %536 = vmatprep.subr.mxu0 0.0
      %537 = vmatpush1.msra.mxu0 0.0
      %538 = vmatprep.subr.mxu0 0.0
      %539 = vmatpush1.msra.mxu0 0.0
      %540 = vmatprep.subr.mxu0 0.0
      %541 = vmatpush1.msra.mxu0 0.0
      %542 = vmatprep.subr.mxu0 0.0
      %543 = vmatpush1.msra.mxu0 0.0
      %544 = vmatprep.subr.mxu0 0.0
      %545 = vmatpush1.msra.mxu0 0.0
      %546 = vmatprep.subr.mxu0 0.0
      %547 = vmatpush1.msra.mxu0 0.0
      %548 = vmatprep.subr.mxu0 0.0
      %549 = vmatpush1.msra.mxu0 0.0
      %550 = vmatprep.subr.mxu0 0.0
      %551 = vmatpush1.msra.mxu0 0.0
      %552 = vmatprep.subr.mxu0 0.0
      %553 = vmatpush1.msra.mxu0 0.0
      %554 = vmatprep.subr.mxu0 0.0
      %555 = vmatpush1.msra.mxu0 0.0
      %556 = vmatprep.subr.mxu0 0.0
      %557 = vmatpush1.msra.mxu0 0.0
      %558 = vmatprep.subr.mxu0 0.0
      %559 = vmatpush1.msra.mxu0 0.0
      %560 = vmatprep.subr.mxu0 0.0
      %561 = vmatpush1.msra.mxu0 0.0
      %562 = vmatprep.subr.mxu0 0.0
      %563 = vmatpush1.msra.mxu0 0.0
      %564 = vmatprep.subr.mxu0 0.0
      %565 = vmatpush1.msra.mxu0 0.0
      %566 = vmatprep.subr.mxu0 0.0
      %567 = vmatpush1.msra.mxu0 0.0
      %568 = vmatprep.subr.mxu0 0.0
      %569 = vmatpush1.msra.mxu0 0.0
      %570 = vmatprep.subr.mxu0 0.0
      %571 = vmatpush1.msra.mxu0 0.0
      %572 = vmatprep.mubr.f32.mxu0 0.0
      %573 = vmatmul.mubr.f32.gmra.mrb[0].mxu0 %v504
      %v574 = vpop.f32.mrb[0].mxu0
      %v575 = vadd.f32 0.0, %v574
      %v576 = vpop.f32.mrb[0].mxu0
      %577 = vdwg.mxu0
      %v578 = vpack.c.bf16 %v575, %v575
      %v580 = vunpack.c.l.b16 %v578
      %v581 = vpack.c.b16 %v580, %v580
      %582 = vrot.lane.b32.xlu0 %v581, 8
      %v583 = vpop.permute.xlu0 %582
      %vm585 = vcmask 126016
      %586 = vst.msk [vmem:[%s205] sm:$0xf] %vm585, %v583
      %v587 = vld [vmem:[%s191] sm:$0xf]
      %v588 = vunpack.c.l.bf16 %v587
      %v589 = vld [vmem:[%s196] sm:$0xf]
      %v590 = vld [vmem:[%s196 + $0x4] sm:$0x1]
      %v591 = vunpack.c.l.bf16 %v589
      %v592 = vunpack.c.l.bf16 %v590
      %v593 = vld [vmem:[%s201] sm:$0xf]
      %v594 = vld [vmem:[%s201 + $0x4] sm:$0x1]
      %v595 = vunpack.c.l.bf16 %v593
      %v596 = vunpack.c.l.bf16 %v594
      %598 = vrot.lane.b32.xlu0 %v588, 112
      %v599 = vpop.permute.xlu0 %598
      %602 = vrot.lane.b32.xlu0 %v591, 112
      %v603 = vpop.permute.xlu0 %602
      %604 = vrot.lane.b32.xlu0 %v592, 112
      %v605 = vpop.permute.xlu0 %604
      %v606 = vsel %vm216, %v599, 0
      %v608 = vsel %vm216, %v603, 0
      %v610 = vsel %vm216, %v605, 0
      %612 = vmatprep.subr.mxu0 0.0
      %613 = vmatpush1.xpose.msra.mxu0 %v608
      %614 = vmatprep.subr.mxu0 0.0
      %615 = vmatpush1.xpose.msra.mxu0 %v610
      %616 = vmatprep.subr.mxu0 0.0
      %617 = vmatpush1.xpose.msra.mxu0 0.0
      %618 = vmatprep.subr.mxu0 0.0
      %619 = vmatpush1.xpose.msra.mxu0 0.0
      %620 = vmatprep.subr.mxu0 0.0
      %621 = vmatpush1.xpose.msra.mxu0 0.0
      %622 = vmatprep.subr.mxu0 0.0
      %623 = vmatpush1.xpose.msra.mxu0 0.0
      %624 = vmatprep.subr.mxu0 0.0
      %625 = vmatpush1.xpose.msra.mxu0 0.0
      %626 = vmatprep.subr.mxu0 0.0
      %627 = vmatpush1.xpose.msra.mxu0 0.0
      %628 = vmatprep.subr.mxu0 0.0
      %629 = vmatpush1.xpose.msra.mxu0 0.0
      %630 = vmatprep.subr.mxu0 0.0
      %631 = vmatpush1.xpose.msra.mxu0 0.0
      %632 = vmatprep.subr.mxu0 0.0
      %633 = vmatpush1.xpose.msra.mxu0 0.0
      %634 = vmatprep.subr.mxu0 0.0
      %635 = vmatpush1.xpose.msra.mxu0 0.0
      %636 = vmatprep.subr.mxu0 0.0
      %637 = vmatpush1.xpose.msra.mxu0 0.0
      %638 = vmatprep.subr.mxu0 0.0
      %639 = vmatpush1.xpose.msra.mxu0 0.0
      %640 = vmatprep.subr.mxu0 0.0
      %641 = vmatpush1.xpose.msra.mxu0 0.0
      %642 = vmatprep.subr.mxu0 0.0
      %643 = vmatpush1.xpose.msra.mxu0 0.0
      %644 = vmatprep.subr.mxu0 0.0
      %645 = vmatpush1.xpose.msra.mxu0 0.0
      %646 = vmatprep.subr.mxu0 0.0
      %647 = vmatpush1.xpose.msra.mxu0 0.0
      %648 = vmatprep.subr.mxu0 0.0
      %649 = vmatpush1.xpose.msra.mxu0 0.0
      %650 = vmatprep.subr.mxu0 0.0
      %651 = vmatpush1.xpose.msra.mxu0 0.0
      %652 = vmatprep.subr.mxu0 0.0
      %653 = vmatpush1.xpose.msra.mxu0 0.0
      %654 = vmatprep.subr.mxu0 0.0
      %655 = vmatpush1.xpose.msra.mxu0 0.0
      %656 = vmatprep.subr.mxu0 0.0
      %657 = vmatpush1.xpose.msra.mxu0 0.0
      %658 = vmatprep.subr.mxu0 0.0
      %659 = vmatpush1.xpose.msra.mxu0 0.0
      %660 = vmatprep.subr.mxu0 0.0
      %661 = vmatpush1.xpose.msra.mxu0 0.0
      %662 = vmatprep.subr.mxu0 0.0
      %663 = vmatpush1.xpose.msra.mxu0 0.0
      %664 = vmatprep.subr.mxu0 0.0
      %665 = vmatpush1.xpose.msra.mxu0 0.0
      %666 = vmatprep.subr.mxu0 0.0
      %667 = vmatpush1.xpose.msra.mxu0 0.0
      %668 = vmatprep.subr.mxu0 0.0
      %669 = vmatpush1.xpose.msra.mxu0 0.0
      %670 = vmatprep.subr.mxu0 0.0
      %671 = vmatpush1.xpose.msra.mxu0 0.0
      %672 = vmatprep.subr.mxu0 0.0
      %673 = vmatpush1.xpose.msra.mxu0 0.0
      %674 = vmatprep.subr.mxu0 0.0
      %675 = vmatpush1.xpose.msra.mxu0 0.0
      %676 = vmatprep.mubr.f32.mxu0 0.0
      %677 = vmatmul.mubr.f32.gmra.mrb[0].mxu0 %v606
      %v678 = vpop.f32.mrb[0].mxu0
      %v679 = vadd.f32 0.0, %v678
      %v680 = vpop.f32.mrb[0].mxu0
      %681 = vdwg.mxu0
      %v682 = vmul.f32 %v679, 0.35355338
      %v683 = vsel %vm297, %v682, -inf
      %684 = vmax.xlane.f32.xlu0 %v683
      %v685 = vpop.xlane.xlu0 %684
      %v686 = vsub.f32 %v682, %v685
      %v687 = vmul.f32 %v686, 1.442695
      %v688 = vpow.pop %v687
      %v689 = vsel %vm297, %v688, 0.0
      %690 = vadd.xlane.f32.xlu0 %v689
      %v691 = vpop.xlane.xlu0 %690
      %v692 = vrcp.pop %v691
      %v693 = vmul.f32 %v688, %v692
      %696 = vrot.lane.b32.xlu0 %v595, 112
      %v697 = vpop.permute.xlu0 %696
      %698 = vrot.lane.b32.xlu0 %v596, 112
      %v699 = vpop.permute.xlu0 %698
      %v702 = vsel %vm297, %v693, 0
      %v704 = vsel %vm312, %v699, 0
      %706 = vmatprep.subr.mxu0 0.0
      %707 = vmatpush1.msra.mxu0 %v697
      %708 = vmatprep.subr.mxu0 0.0
      %709 = vmatpush1.msra.mxu0 %v704
      %710 = vmatprep.subr.mxu0 0.0
      %711 = vmatpush1.msra.mxu0 0.0
      %712 = vmatprep.subr.mxu0 0.0
      %713 = vmatpush1.msra.mxu0 0.0
      %714 = vmatprep.subr.mxu0 0.0
      %715 = vmatpush1.msra.mxu0 0.0
      %716 = vmatprep.subr.mxu0 0.0
      %717 = vmatpush1.msra.mxu0 0.0
      %718 = vmatprep.subr.mxu0 0.0
      %719 = vmatpush1.msra.mxu0 0.0
      %720 = vmatprep.subr.mxu0 0.0
      %721 = vmatpush1.msra.mxu0 0.0
      %722 = vmatprep.subr.mxu0 0.0
      %723 = vmatpush1.msra.mxu0 0.0
      %724 = vmatprep.subr.mxu0 0.0
      %725 = vmatpush1.msra.mxu0 0.0
      %726 = vmatprep.subr.mxu0 0.0
      %727 = vmatpush1.msra.mxu0 0.0
      %728 = vmatprep.subr.mxu0 0.0
      %729 = vmatpush1.msra.mxu0 0.0
      %730 = vmatprep.subr.mxu0 0.0
      %731 = vmatpush1.msra.mxu0 0.0
      %732 = vmatprep.subr.mxu0 0.0
      %733 = vmatpush1.msra.mxu0 0.0
      %734 = vmatprep.subr.mxu0 0.0
      %735 = vmatpush1.msra.mxu0 0.0
      %736 = vmatprep.subr.mxu0 0.0
      %737 = vmatpush1.msra.mxu0 0.0
      %738 = vmatprep.subr.mxu0 0.0
      %739 = vmatpush1.msra.mxu0 0.0
      %740 = vmatprep.subr.mxu0 0.0
      %741 = vmatpush1.msra.mxu0 0.0
      %742 = vmatprep.subr.mxu0 0.0
      %743 = vmatpush1.msra.mxu0 0.0
      %744 = vmatprep.subr.mxu0 0.0
      %745 = vmatpush1.msra.mxu0 0.0
      %746 = vmatprep.subr.mxu0 0.0
      %747 = vmatpush1.msra.mxu0 0.0
      %748 = vmatprep.subr.mxu0 0.0
      %749 = vmatpush1.msra.mxu0 0.0
      %750 = vmatprep.subr.mxu0 0.0
      %751 = vmatpush1.msra.mxu0 0.0
      %752 = vmatprep.subr.mxu0 0.0
      %753 = vmatpush1.msra.mxu0 0.0
      %754 = vmatprep.subr.mxu0 0.0
      %755 = vmatpush1.msra.mxu0 0.0
      %756 = vmatprep.subr.mxu0 0.0
      %757 = vmatpush1.msra.mxu0 0.0
      %758 = vmatprep.subr.mxu0 0.0
      %759 = vmatpush1.msra.mxu0 0.0
      %760 = vmatprep.subr.mxu0 0.0
      %761 = vmatpush1.msra.mxu0 0.0
      %762 = vmatprep.subr.mxu0 0.0
      %763 = vmatpush1.msra.mxu0 0.0
      %764 = vmatprep.subr.mxu0 0.0
      %765 = vmatpush1.msra.mxu0 0.0
      %766 = vmatprep.subr.mxu0 0.0
      %767 = vmatpush1.msra.mxu0 0.0
      %768 = vmatprep.subr.mxu0 0.0
      %769 = vmatpush1.msra.mxu0 0.0
      %770 = vmatprep.mubr.f32.mxu0 0.0
      %771 = vmatmul.mubr.f32.gmra.mrb[0].mxu0 %v702
      %v772 = vpop.f32.mrb[0].mxu0
      %v773 = vadd.f32 0.0, %v772
      %v774 = vpop.f32.mrb[0].mxu0
      %775 = vdwg.mxu0
      %v776 = vpack.c.bf16 %v773, %v773
      %v778 = vunpack.c.l.b16 %v776
      %v779 = vpack.c.b16 %v778, %v778
      %780 = vrot.lane.b32.xlu0 %v779, 16
      %v781 = vpop.permute.xlu0 %780
      %vm783 = vcmask 191616
      %784 = vst.msk [vmem:[%s205] sm:$0xf] %vm783, %v781
      %v785 = vld [vmem:[%s191] sm:$0xf]
      %v786 = vunpack.c.l.bf16 %v785
      %v787 = vld [vmem:[%s196] sm:$0xf]
      %v788 = vld [vmem:[%s196 + $0x4] sm:$0x1]
      %v789 = vunpack.c.l.bf16 %v787
      %v790 = vunpack.c.l.bf16 %v788
      %v791 = vld [vmem:[%s201] sm:$0xf]
      %v792 = vld [vmem:[%s201 + $0x4] sm:$0x1]
      %v793 = vunpack.c.l.bf16 %v791
      %v794 = vunpack.c.l.bf16 %v792
      %796 = vrot.lane.b32.xlu0 %v786, 104
      %v797 = vpop.permute.xlu0 %796
      %800 = vrot.lane.b32.xlu0 %v789, 104
      %v801 = vpop.permute.xlu0 %800
      %802 = vrot.lane.b32.xlu0 %v790, 104
      %v803 = vpop.permute.xlu0 %802
      %v804 = vsel %vm216, %v797, 0
      %v806 = vsel %vm216, %v801, 0
      %v808 = vsel %vm216, %v803, 0
      %810 = vmatprep.subr.mxu0 0.0
      %811 = vmatpush1.xpose.msra.mxu0 %v806
      %812 = vmatprep.subr.mxu0 0.0
      %813 = vmatpush1.xpose.msra.mxu0 %v808
      %814 = vmatprep.subr.mxu0 0.0
      %815 = vmatpush1.xpose.msra.mxu0 0.0
      %816 = vmatprep.subr.mxu0 0.0
      %817 = vmatpush1.xpose.msra.mxu0 0.0
      %818 = vmatprep.subr.mxu0 0.0
      %819 = vmatpush1.xpose.msra.mxu0 0.0
      %820 = vmatprep.subr.mxu0 0.0
      %821 = vmatpush1.xpose.msra.mxu0 0.0
      %822 = vmatprep.subr.mxu0 0.0
      %823 = vmatpush1.xpose.msra.mxu0 0.0
      %824 = vmatprep.subr.mxu0 0.0
      %825 = vmatpush1.xpose.msra.mxu0 0.0
      %826 = vmatprep.subr.mxu0 0.0
      %827 = vmatpush1.xpose.msra.mxu0 0.0
      %828 = vmatprep.subr.mxu0 0.0
      %829 = vmatpush1.xpose.msra.mxu0 0.0
      %830 = vmatprep.subr.mxu0 0.0
      %831 = vmatpush1.xpose.msra.mxu0 0.0
      %832 = vmatprep.subr.mxu0 0.0
      %833 = vmatpush1.xpose.msra.mxu0 0.0
      %834 = vmatprep.subr.mxu0 0.0
      %835 = vmatpush1.xpose.msra.mxu0 0.0
      %836 = vmatprep.subr.mxu0 0.0
      %837 = vmatpush1.xpose.msra.mxu0 0.0
      %838 = vmatprep.subr.mxu0 0.0
      %839 = vmatpush1.xpose.msra.mxu0 0.0
      %840 = vmatprep.subr.mxu0 0.0
      %841 = vmatpush1.xpose.msra.mxu0 0.0
      %842 = vmatprep.subr.mxu0 0.0
      %843 = vmatpush1.xpose.msra.mxu0 0.0
      %844 = vmatprep.subr.mxu0 0.0
      %845 = vmatpush1.xpose.msra.mxu0 0.0
      %846 = vmatprep.subr.mxu0 0.0
      %847 = vmatpush1.xpose.msra.mxu0 0.0
      %848 = vmatprep.subr.mxu0 0.0
      %849 = vmatpush1.xpose.msra.mxu0 0.0
      %850 = vmatprep.subr.mxu0 0.0
      %851 = vmatpush1.xpose.msra.mxu0 0.0
      %852 = vmatprep.subr.mxu0 0.0
      %853 = vmatpush1.xpose.msra.mxu0 0.0
      %854 = vmatprep.subr.mxu0 0.0
      %855 = vmatpush1.xpose.msra.mxu0 0.0
      %856 = vmatprep.subr.mxu0 0.0
      %857 = vmatpush1.xpose.msra.mxu0 0.0
      %858 = vmatprep.subr.mxu0 0.0
      %859 = vmatpush1.xpose.msra.mxu0 0.0
      %860 = vmatprep.subr.mxu0 0.0
      %861 = vmatpush1.xpose.msra.mxu0 0.0
      %862 = vmatprep.subr.mxu0 0.0
      %863 = vmatpush1.xpose.msra.mxu0 0.0
      %864 = vmatprep.subr.mxu0 0.0
      %865 = vmatpush1.xpose.msra.mxu0 0.0
      %866 = vmatprep.subr.mxu0 0.0
      %867 = vmatpush1.xpose.msra.mxu0 0.0
      %868 = vmatprep.subr.mxu0 0.0
      %869 = vmatpush1.xpose.msra.mxu0 0.0
      %870 = vmatprep.subr.mxu0 0.0
      %871 = vmatpush1.xpose.msra.mxu0 0.0
      %872 = vmatprep.subr.mxu0 0.0
      %873 = vmatpush1.xpose.msra.mxu0 0.0
      %874 = vmatprep.mubr.f32.mxu0 0.0
      %875 = vmatmul.mubr.f32.gmra.mrb[0].mxu0 %v804
      %v876 = vpop.f32.mrb[0].mxu0
      %v877 = vadd.f32 0.0, %v876
      %v878 = vpop.f32.mrb[0].mxu0
      %879 = vdwg.mxu0
      %v880 = vmul.f32 %v877, 0.35355338
      %v881 = vsel %vm297, %v880, -inf
      %882 = vmax.xlane.f32.xlu0 %v881
      %v883 = vpop.xlane.xlu0 %882
      %v884 = vsub.f32 %v880, %v883
      %v885 = vmul.f32 %v884, 1.442695
      %v886 = vpow.pop %v885
      %v887 = vsel %vm297, %v886, 0.0
      %888 = vadd.xlane.f32.xlu0 %v887
      %v889 = vpop.xlane.xlu0 %888
      %v890 = vrcp.pop %v889
      %v891 = vmul.f32 %v886, %v890
      %894 = vrot.lane.b32.xlu0 %v793, 104
      %v895 = vpop.permute.xlu0 %894
      %896 = vrot.lane.b32.xlu0 %v794, 104
      %v897 = vpop.permute.xlu0 %896
      %v900 = vsel %vm297, %v891, 0
      %v902 = vsel %vm312, %v897, 0
      %904 = vmatprep.subr.mxu0 0.0
      %905 = vmatpush1.msra.mxu0 %v895
      %906 = vmatprep.subr.mxu0 0.0
      %907 = vmatpush1.msra.mxu0 %v902
      %908 = vmatprep.subr.mxu0 0.0
      %909 = vmatpush1.msra.mxu0 0.0
      %910 = vmatprep.subr.mxu0 0.0
      %911 = vmatpush1.msra.mxu0 0.0
      %912 = vmatprep.subr.mxu0 0.0
      %913 = vmatpush1.msra.mxu0 0.0
      %914 = vmatprep.subr.mxu0 0.0
      %915 = vmatpush1.msra.mxu0 0.0
      %916 = vmatprep.subr.mxu0 0.0
      %917 = vmatpush1.msra.mxu0 0.0
      %918 = vmatprep.subr.mxu0 0.0
      %919 = vmatpush1.msra.mxu0 0.0
      %920 = vmatprep.subr.mxu0 0.0
      %921 = vmatpush1.msra.mxu0 0.0
      %922 = vmatprep.subr.mxu0 0.0
      %923 = vmatpush1.msra.mxu0 0.0
      %924 = vmatprep.subr.mxu0 0.0
      %925 = vmatpush1.msra.mxu0 0.0
      %926 = vmatprep.subr.mxu0 0.0
      %927 = vmatpush1.msra.mxu0 0.0
      %928 = vmatprep.subr.mxu0 0.0
      %929 = vmatpush1.msra.mxu0 0.0
      %930 = vmatprep.subr.mxu0 0.0
      %931 = vmatpush1.msra.mxu0 0.0
      %932 = vmatprep.subr.mxu0 0.0
      %933 = vmatpush1.msra.mxu0 0.0
      %934 = vmatprep.subr.mxu0 0.0
      %935 = vmatpush1.msra.mxu0 0.0
      %936 = vmatprep.subr.mxu0 0.0
      %937 = vmatpush1.msra.mxu0 0.0
      %938 = vmatprep.subr.mxu0 0.0
      %939 = vmatpush1.msra.mxu0 0.0
      %940 = vmatprep.subr.mxu0 0.0
      %941 = vmatpush1.msra.mxu0 0.0
      %942 = vmatprep.subr.mxu0 0.0
      %943 = vmatpush1.msra.mxu0 0.0
      %944 = vmatprep.subr.mxu0 0.0
      %945 = vmatpush1.msra.mxu0 0.0
      %946 = vmatprep.subr.mxu0 0.0
      %947 = vmatpush1.msra.mxu0 0.0
      %948 = vmatprep.subr.mxu0 0.0
      %949 = vmatpush1.msra.mxu0 0.0
      %950 = vmatprep.subr.mxu0 0.0
      %951 = vmatpush1.msra.mxu0 0.0
      %952 = vmatprep.subr.mxu0 0.0
      %953 = vmatpush1.msra.mxu0 0.0
      %954 = vmatprep.subr.mxu0 0.0
      %955 = vmatpush1.msra.mxu0 0.0
      %956 = vmatprep.subr.mxu0 0.0
      %957 = vmatpush1.msra.mxu0 0.0
      %958 = vmatprep.subr.mxu0 0.0
      %959 = vmatpush1.msra.mxu0 0.0
      %960 = vmatprep.subr.mxu0 0.0
      %961 = vmatpush1.msra.mxu0 0.0
      %962 = vmatprep.subr.mxu0 0.0
      %963 = vmatpush1.msra.mxu0 0.0
      %964 = vmatprep.subr.mxu0 0.0
      %965 = vmatpush1.msra.mxu0 0.0
      %966 = vmatprep.subr.mxu0 0.0
      %967 = vmatpush1.msra.mxu0 0.0
      %968 = vmatprep.mubr.f32.mxu0 0.0
      %969 = vmatmul.mubr.f32.gmra.mrb[0].mxu0 %v900
      %v970 = vpop.f32.mrb[0].mxu0
      %v971 = vadd.f32 0.0, %v970
      %v972 = vpop.f32.mrb[0].mxu0
      %973 = vdwg.mxu0
      %v974 = vpack.c.bf16 %v971, %v971
      %v976 = vunpack.c.l.b16 %v974
      %v977 = vpack.c.b16 %v976, %v976
      %978 = vrot.lane.b32.xlu0 %v977, 24
      %v979 = vpop.permute.xlu0 %978
      %vm981 = vcmask 257216
      %982 = vst.msk [vmem:[%s205] sm:$0xf] %vm981, %v979
      %p983 = scmp.lt.s32.totalorder %s14, 1
      %s984 = scalar_select %p983, %s14, 1
      %s985 = smul.addr %s984, 4
      %s986 = scalar_lea.vmem %s3, %s985
      // Predicated region
      $region33: #{transformer_decoder_forward.24} parent=31 // pred_check
        %p987 = pneg %p110
      $region34: #{transformer_decoder_forward.24} parent=31 // pred_check_branch
        %989 = sbr.rel (%p987) target = $region36
      $region35: #{transformer_decoder_forward.24} parent=31 // pred_region
        _
      $region36: #{transformer_decoder_forward.24} parent=31 // pred_fallthru
        _
    $region32: #{transformer_decoder_forward.24} parent=5 // pred_fallthru
      _
    %p990 = scmp.le.s32.totalorder 2, %s9
    // Predicated region
    $region37: #{transformer_decoder_forward.24} parent=5 // pred_check
      %p991 = pneg %p990
    $region38: #{transformer_decoder_forward.24} parent=5 // pred_check_branch
      %993 = sbr.rel (%p991) target = $region40
    $region39: #{transformer_decoder_forward.24} parent=5 // pred_region
      %s994 = ssub.s32 %s9, 2
      // Predicated region
      $region41: #{transformer_decoder_forward.24} parent=39 // pred_check
        %p995 = pneg %p116
      $region42: #{transformer_decoder_forward.24} parent=39 // pred_check_branch
        %997 = sbr.rel (%p995) target = $region44
      $region43: #{transformer_decoder_forward.24} parent=39 // pred_region
        %p998 = scmp.lt.s32.totalorder %s15, 1
        %s999 = scalar_select %p998, %s15, 1
        %s1000 = smul.addr %s999, 4
        %s1001 = scalar_lea.vmem %s3, %s1000
      $region44: #{transformer_decoder_forward.24} parent=39 // pred_fallthru
        _
    $region40: #{transformer_decoder_forward.24} parent=5 // pred_fallthru
      _
  $region6: #{transformer_decoder_forward.24} parent=0 // loop_footer
    %s13 = sadd.s32 1, %s9
  $region7: #{transformer_decoder_forward.24} parent=0 // loop_footer_branch
    %8 = sbr.rel target = $region3
  $region8: #{transformer_decoder_forward.24} parent=0 // loop_exit
    _

// kernel: transformer_decoder_forward.27
$region0: #{transformer_decoder_forward.27}
  #allocation0 [shape = 'u32[]', space=smem, size = 0x4, offset = 0x4, fixed_abs, tag = 'smem constant byte address 0x4 - core index']
  #allocation1 [shape = 'u32[144,128]{1,0:T(1,128)}', space=vmem, size = 0x12000, scoped, tag = 'internal scratch']
  #allocation2 [shape = 'f32[16,32]{1,0:T(8,128)}', space=vmem, size = 0x2000, scoped, tag = 'scratch operand']
  %s0 = inlined_call_operand.vmem [shape: bf16[16,64], index: 0, kind: input, shape index: {}]
  %s1 = inlined_call_operand.vmem [shape: bf16[64,32], index: 1, kind: input, shape index: {}]
  %s2 = inlined_call_operand.vmem [shape: f32[1,32], index: 2, kind: input, shape index: {}]
  %s3 = inlined_call_operand.vmem [shape: f32[16,32], index: 3, kind: input, shape index: {}]
  %s4 = inlined_call_operand.vmem [shape: f32[1,32], index: 4, kind: input, shape index: {}]
  %s5 = inlined_call_operand.vmem [shape: f32[1,32], index: 5, kind: input, shape index: {}]
  %s6 = inlined_call_operand.vmem [shape: f32[16,32], index: 6, kind: output, shape index: {}]
  %s7 = sld [smem:[#allocation0]]
  $region42: #{transformer_decoder_forward.27} parent=0
    _
  %s9 = ssub.s32 1, %s7
  %s10 = scalar_select 0, %s9, %s7
  // Predicated region
  $region2: #{transformer_decoder_forward.27} parent=0 // pred_check
    _
  $region3: #{transformer_decoder_forward.27} parent=0 // pred_check_branch
    %12 = sbr.rel (0) target = $region5
  $region4: #{transformer_decoder_forward.27} parent=0 // pred_region
    _
  $region5: #{transformer_decoder_forward.27} parent=0 // pred_fallthru
    _
  // Predicated region
  $region6: #{transformer_decoder_forward.27} parent=0 // pred_check
    _
  $region7: #{transformer_decoder_forward.27} parent=0 // pred_check_branch
    %14 = sbr.rel (0) target = $region9
  $region8: #{transformer_decoder_forward.27} parent=0 // pred_region
    _
  $region9: #{transformer_decoder_forward.27} parent=0 // pred_fallthru
    _
  // Predicated region
  $region10: #{transformer_decoder_forward.27} parent=0 // pred_check
    _
  $region11: #{transformer_decoder_forward.27} parent=0 // pred_check_branch
    %16 = sbr.rel (0) target = $region13
  $region12: #{transformer_decoder_forward.27} parent=0 // pred_region
    _
  $region13: #{transformer_decoder_forward.27} parent=0 // pred_fallthru
    _
  // Predicated region
  $region14: #{transformer_decoder_forward.27} parent=0 // pred_check
    _
  $region15: #{transformer_decoder_forward.27} parent=0 // pred_check_branch
    %18 = sbr.rel (0) target = $region17
  $region16: #{transformer_decoder_forward.27} parent=0 // pred_region
    _
  $region17: #{transformer_decoder_forward.27} parent=0 // pred_fallthru
    _
  // Predicated region
  $region18: #{transformer_decoder_forward.27} parent=0 // pred_check
    _
  $region19: #{transformer_decoder_forward.27} parent=0 // pred_check_branch
    %20 = sbr.rel (0) target = $region21
  $region20: #{transformer_decoder_forward.27} parent=0 // pred_region
    _
  $region21: #{transformer_decoder_forward.27} parent=0 // pred_fallthru
    _
  // Predicated region
  $region22: #{transformer_decoder_forward.27} parent=0 // pred_check
    _
  $region23: #{transformer_decoder_forward.27} parent=0 // pred_check_branch
    %22 = sbr.rel (0) target = $region25
  $region24: #{transformer_decoder_forward.27} parent=0 // pred_region
    _
  $region25: #{transformer_decoder_forward.27} parent=0 // pred_fallthru
    _
  %p24 = scmp.eq.s32.totalorder 0, 0
  // Predicated region
  $region26: #{transformer_decoder_forward.27} parent=0 // pred_check
    %p25 = pneg %p24
  $region27: #{transformer_decoder_forward.27} parent=0 // pred_check_branch
    %27 = sbr.rel (%p25) target = $region29
  $region28: #{transformer_decoder_forward.27} parent=0 // pred_region
    %vm28 = vcmask 261120
    %29 = vst.msk [vmem:[#allocation2] sm:$0xff] %vm28, 0.0
    %30 = vst.msk [vmem:[#allocation2 + $0x8] sm:$0xff] %vm28, 0.0
  $region29: #{transformer_decoder_forward.27} parent=0 // pred_fallthru
    _
  %v31 = vld [vmem:[#allocation2] sm:$0xff]
  %v32 = vld [vmem:[#allocation2 + $0x8] sm:$0xff]
  %v33 = vld [vmem:[%s0] sm:$0xf]
  %v34 = vld [vmem:[%s0 + $0x4] sm:$0xf]
  %v35 = vld [vmem:[%s1] sm:$0xf]
  %v36 = vld [vmem:[%s1 + $0x4] sm:$0xf]
  %v37 = vld [vmem:[%s1 + $0x8] sm:$0xf]
  %v38 = vld [vmem:[%s1 + $0xc] sm:$0xf]
  %v39 = vld [vmem:[%s1 + $0x10] sm:$0xf]
  %v40 = vld [vmem:[%s1 + $0x14] sm:$0xf]
  %v41 = vld [vmem:[%s1 + $0x18] sm:$0xf]
  %v42 = vld [vmem:[%s1 + $0x1c] sm:$0xf]
  %v45 = vunpack.c.l.b16 %v33
  %v46 = vunpack.c.l.b16 %v34
  %v47 = vpack.c.b16 %v46, %v45
  %v56 = vunpack.c.l.b16 %v35
  %v57 = vunpack.c.l.b16 %v36
  %v58 = vunpack.c.l.b16 %v37
  %v59 = vunpack.c.l.b16 %v38
  %v60 = vunpack.c.l.b16 %v39
  %v61 = vunpack.c.l.b16 %v40
  %v62 = vunpack.c.l.b16 %v41
  %v63 = vunpack.c.l.b16 %v42
  %v64 = vpack.c.b16 %v57, %v56
  %v65 = vpack.c.b16 %v59, %v58
  %v66 = vpack.c.b16 %v61, %v60
  %v67 = vpack.c.b16 %v63, %v62
  %vm72 = vcmask 523264
  %v74 = vsel %vm72, %v47, 0
  %76 = vmatprep.subr.bf16.mxu0 0
  %77 = vmatpush1.bf16.msra.mxu0 %v64
  %78 = vmatprep.subr.bf16.mxu0 0
  %79 = vmatpush1.bf16.msra.mxu0 %v65
  %80 = vmatprep.subr.bf16.mxu0 0
  %81 = vmatpush1.bf16.msra.mxu0 %v66
  %82 = vmatprep.subr.bf16.mxu0 0
  %83 = vmatpush1.bf16.msra.mxu0 %v67
  %84 = vmatprep.subr.bf16.mxu0 0
  %85 = vmatpush1.bf16.msra.mxu0 0
  %86 = vmatprep.subr.bf16.mxu0 0
  %87 = vmatpush1.bf16.msra.mxu0 0
  %88 = vmatprep.subr.bf16.mxu0 0
  %89 = vmatpush1.bf16.msra.mxu0 0
  %90 = vmatprep.subr.bf16.mxu0 0
  %91 = vmatpush1.bf16.msra.mxu0 0
  %92 = vmatprep.subr.bf16.mxu0 0
  %93 = vmatpush1.bf16.msra.mxu0 0
  %94 = vmatprep.subr.bf16.mxu0 0
  %95 = vmatpush1.bf16.msra.mxu0 0
  %96 = vmatprep.subr.bf16.mxu0 0
  %97 = vmatpush1.bf16.msra.mxu0 0
  %98 = vmatprep.subr.bf16.mxu0 0
  %99 = vmatpush1.bf16.msra.mxu0 0
  %100 = vmatprep.subr.bf16.mxu0 0
  %101 = vmatpush1.bf16.msra.mxu0 0
  %102 = vmatprep.subr.bf16.mxu0 0
  %103 = vmatpush1.bf16.msra.mxu0 0
  %104 = vmatprep.subr.bf16.mxu0 0
  %105 = vmatpush1.bf16.msra.mxu0 0
  %106 = vmatprep.subr.bf16.mxu0 0
  %107 = vmatpush1.bf16.msra.mxu0 0
  %108 = vmatprep.mubr.bf16.mxu0 0
  %109 = vmatmul.mubr.bf16.gmra.mrb[0].mxu0 %v74
  %v110 = vpop.f32.mrb[0].mxu0
  %v111 = vadd.f32 0.0, %v110
  %v112 = vpop.f32.mrb[0].mxu0
  %v113 = vpop.f32.mrb[0].mxu0
  %v114 = vadd.f32 0.0, %v113
  %v115 = vpop.f32.mrb[0].mxu0
  %116 = vdwg.mxu0
  %v117 = vadd.f32 %v31, %v111
  %v118 = vadd.f32 %v32, %v114
  %vm119 = vcmask 261120
  %120 = vst.msk [vmem:[#allocation2] sm:$0xff] %vm119, %v117
  %121 = vst.msk [vmem:[#allocation2 + $0x8] sm:$0xff] %vm119, %v118
  // Predicated region
  $region30: #{transformer_decoder_forward.27} parent=0 // pred_check
    %p122 = pneg %p24
  $region31: #{transformer_decoder_forward.27} parent=0 // pred_check_branch
    %124 = sbr.rel (%p122) target = $region33
  $region32: #{transformer_decoder_forward.27} parent=0 // pred_region
    %v125 = vld [vmem:[#allocation2] sm:$0xff]
    %v126 = vld [vmem:[#allocation2 + $0x8] sm:$0xff]
    %v127 = vld [vmem:[%s2] sm:$0x1]
    %v129 = vlaneseq
    %v130 = vshrl.u32 %v129, 7
    %v131 = vsub.s32 0, %v130
    %v132 = vrot.slane %v127, %v131
    %v134 = vadd.f32 %v125, %v132
    %v135 = vadd.f32 %v126, %v132
    %v136 = vld [vmem:[%s3] sm:$0xff]
    %v137 = vld [vmem:[%s3 + $0x8] sm:$0xff]
    %v138 = vadd.f32 %v134, %v136
    %v139 = vadd.f32 %v135, %v137
    %v140 = vsel %vm119, %v138, 0.0
    %141 = vadd.xlane.f32.xlu0 %v140
    %v142 = vpop.xlane.xlu0 %141
    %v143 = vsel %vm119, %v139, 0.0
    %144 = vadd.xlane.f32.xlu0 %v143
    %v145 = vpop.xlane.xlu0 %144
    %v146 = vrcp.pop 32.0
    %v147 = vmul.f32 %v142, %v146
    %v148 = vmul.f32 %v145, %v146
    %v149 = vsub.f32 %v138, %v147
    %v150 = vsub.f32 %v139, %v148
    %v151 = vmul.f32 %v149, %v149
    %v152 = vmul.f32 %v150, %v150
    %v153 = vsel %vm119, %v151, 0.0
    %154 = vadd.xlane.f32.xlu0 %v153
    %v155 = vpop.xlane.xlu0 %154
    %v156 = vsel %vm119, %v152, 0.0
    %157 = vadd.xlane.f32.xlu0 %v156
    %v158 = vpop.xlane.xlu0 %157
    %v159 = vmul.f32 %v155, %v146
    %v160 = vmul.f32 %v158, %v146
    %v161 = vadd.f32 %v159, 1e-05
    %v162 = vadd.f32 %v160, 1e-05
    %v163 = vrsqrt.pop %v161
    %v164 = vrsqrt.pop %v162
    %v165 = vmul.f32 %v149, %v163
    %v166 = vmul.f32 %v150, %v164
    %v167 = vld [vmem:[%s4] sm:$0x1]
    %v169 = vlaneseq
    %v170 = vshrl.u32 %v169, 7
    %v171 = vsub.s32 0, %v170
    %v172 = vrot.slane %v167, %v171
    %v174 = vmul.f32 %v165, %v172
    %v175 = vmul.f32 %v166, %v172
    %v176 = vld [vmem:[%s5] sm:$0x1]
    %v178 = vlaneseq
    %v179 = vshrl.u32 %v178, 7
    %v180 = vsub.s32 0, %v179
    %v181 = vrot.slane %v176, %v180
    %v183 = vadd.f32 %v174, %v181
    %v184 = vadd.f32 %v175, %v181
    %185 = vst.msk [vmem:[%s6] sm:$0xff] %vm119, %v183
    %186 = vst.msk [vmem:[%s6 + $0x8] sm:$0xff] %vm119, %v184
  $region33: #{transformer_decoder_forward.27} parent=0 // pred_fallthru
    _
  // Predicated region
  $region34: #{transformer_decoder_forward.27} parent=0 // pred_check
    _
  $region35: #{transformer_decoder_forward.27} parent=0 // pred_check_branch
    %188 = sbr.rel (0) target = $region37
  $region36: #{transformer_decoder_forward.27} parent=0 // pred_region
    _
  $region37: #{transformer_decoder_forward.27} parent=0 // pred_fallthru
    _
  // Predicated region
  $region38: #{transformer_decoder_forward.27} parent=0 // pred_check
    _
  $region39: #{transformer_decoder_forward.27} parent=0 // pred_check_branch
    %190 = sbr.rel (0) target = $region41
  $region40: #{transformer_decoder_forward.27} parent=0 // pred_region
    _
  $region41: #{transformer_decoder_forward.27} parent=0 // pred_fallthru
    _

// kernel: transformer_decoder_forward.37
$region0: #{transformer_decoder_forward.37}
  #allocation0 [shape = 'u32[]', space=smem, size = 0x4, offset = 0x4, fixed_abs, tag = 'smem constant byte address 0x4 - core index']
  #allocation1 [shape = 'u32[144,128]{1,0:T(1,128)}', space=vmem, size = 0x12000, scoped, tag = 'internal scratch']
  #allocation2 [shape = 'f32[16,16]{1,0:T(8,128)}', space=vmem, size = 0x2000, scoped, tag = 'scratch operand']
  %s0 = inlined_call_operand.vmem [shape: bf16[16,32], index: 0, kind: input, shape index: {}]
  %s1 = inlined_call_operand.vmem [shape: bf16[32,16], index: 1, kind: input, shape index: {}]
  %s2 = inlined_call_operand.vmem [shape: f32[1,16], index: 2, kind: input, shape index: {}]
  %s3 = inlined_call_operand.hbm [shape: f32[16,16], index: 3, kind: output, shape index: {}]
  %s4 = sld [smem:[#allocation0]]
  $region30: #{transformer_decoder_forward.37} parent=0
    _
  %s6 = ssub.s32 1, %s4
  %s7 = scalar_select 0, %s6, %s4
  $region1: #{transformer_decoder_forward.37} parent=0
    #allocation3 [shape = 'u8[8192]{0}', space=vmem, size = 0x2000, scoped, tag = 'output window, operand 0, single buffered']
    #allocation4 [shape = 's32[1]{0}', space=sflag, size = 0x4, scoped, tag = 'scoped memory for transformer_decoder_forward.37']
    %8 = vsyncpa [#allocation4], 0
    // Predicated region
    $region2: #{transformer_decoder_forward.37} parent=1 // pred_check
      _
    $region3: #{transformer_decoder_forward.37} parent=1 // pred_check_branch
      %10 = sbr.rel (0) target = $region5
    $region4: #{transformer_decoder_forward.37} parent=1 // pred_region
      _
    $region5: #{transformer_decoder_forward.37} parent=1 // pred_fallthru
      _
    // Predicated region
    $region6: #{transformer_decoder_forward.37} parent=1 // pred_check
      _
    $region7: #{transformer_decoder_forward.37} parent=1 // pred_check_branch
      %12 = sbr.rel (0) target = $region9
    $region8: #{transformer_decoder_forward.37} parent=1 // pred_region
      _
    $region9: #{transformer_decoder_forward.37} parent=1 // pred_fallthru
      _
    // Predicated region
    $region10: #{transformer_decoder_forward.37} parent=1 // pred_check
      _
    $region11: #{transformer_decoder_forward.37} parent=1 // pred_check_branch
      %14 = sbr.rel (0) target = $region13
    $region12: #{transformer_decoder_forward.37} parent=1 // pred_region
      _
    $region13: #{transformer_decoder_forward.37} parent=1 // pred_fallthru
      _
    %p16 = scmp.eq.s32.totalorder 0, 0
    // Predicated region
    $region14: #{transformer_decoder_forward.37} parent=1 // pred_check
      %p17 = pneg %p16
    $region15: #{transformer_decoder_forward.37} parent=1 // pred_check_branch
      %19 = sbr.rel (%p17) target = $region17
    $region16: #{transformer_decoder_forward.37} parent=1 // pred_region
      %vm20 = vcmask 130048
      %21 = vst.msk [vmem:[#allocation2] sm:$0xff] %vm20, 0.0
      %22 = vst.msk [vmem:[#allocation2 + $0x8] sm:$0xff] %vm20, 0.0
    $region17: #{transformer_decoder_forward.37} parent=1 // pred_fallthru
      _
    %v23 = vld [vmem:[#allocation2] sm:$0xff]
    %v24 = vld [vmem:[#allocation2 + $0x8] sm:$0xff]
    %v25 = vld [vmem:[%s0] sm:$0xf]
    %v26 = vld [vmem:[%s0 + $0x4] sm:$0xf]
    %v27 = vld [vmem:[%s1] sm:$0xf]
    %v28 = vld [vmem:[%s1 + $0x4] sm:$0xf]
    %v29 = vld [vmem:[%s1 + $0x8] sm:$0xf]
    %v30 = vld [vmem:[%s1 + $0xc] sm:$0xf]
    %v33 = vunpack.c.l.b16 %v25
    %v34 = vunpack.c.l.b16 %v26
    %v35 = vpack.c.b16 %v34, %v33
    %v40 = vunpack.c.l.b16 %v27
    %v41 = vunpack.c.l.b16 %v28
    %v42 = vunpack.c.l.b16 %v29
    %v43 = vunpack.c.l.b16 %v30
    %v44 = vpack.c.b16 %v41, %v40
    %v45 = vpack.c.b16 %v43, %v42
    %vm48 = vcmask 261120
    %v50 = vsel %vm48, %v35, 0
    %52 = vmatprep.subr.bf16.mxu0 0
    %53 = vmatpush1.bf16.msra.mxu0 %v44
    %54 = vmatprep.subr.bf16.mxu0 0
    %55 = vmatpush1.bf16.msra.mxu0 %v45
    %56 = vmatprep.subr.bf16.mxu0 0
    %57 = vmatpush1.bf16.msra.mxu0 0
    %58 = vmatprep.subr.bf16.mxu0 0
    %59 = vmatpush1.bf16.msra.mxu0 0
    %60 = vmatprep.subr.bf16.mxu0 0
    %61 = vmatpush1.bf16.msra.mxu0 0
    %62 = vmatprep.subr.bf16.mxu0 0
    %63 = vmatpush1.bf16.msra.mxu0 0
    %64 = vmatprep.subr.bf16.mxu0 0
    %65 = vmatpush1.bf16.msra.mxu0 0
    %66 = vmatprep.subr.bf16.mxu0 0
    %67 = vmatpush1.bf16.msra.mxu0 0
    %68 = vmatprep.subr.bf16.mxu0 0
    %69 = vmatpush1.bf16.msra.mxu0 0
    %70 = vmatprep.subr.bf16.mxu0 0
    %71 = vmatpush1.bf16.msra.mxu0 0
    %72 = vmatprep.subr.bf16.mxu0 0
    %73 = vmatpush1.bf16.msra.mxu0 0
    %74 = vmatprep.subr.bf16.mxu0 0
    %75 = vmatpush1.bf16.msra.mxu0 0
    %76 = vmatprep.subr.bf16.mxu0 0
    %77 = vmatpush1.bf16.msra.mxu0 0
    %78 = vmatprep.subr.bf16.mxu0 0
    %79 = vmatpush1.bf16.msra.mxu0 0
    %80 = vmatprep.subr.bf16.mxu0 0
    %81 = vmatpush1.bf16.msra.mxu0 0
    %82 = vmatprep.subr.bf16.mxu0 0
    %83 = vmatpush1.bf16.msra.mxu0 0
    %84 = vmatprep.mubr.bf16.mxu0 0
    %85 = vmatmul.mubr.bf16.gmra.mrb[0].mxu0 %v50
    %v86 = vpop.f32.mrb[0].mxu0
    %v87 = vadd.f32 0.0, %v86
    %v88 = vpop.f32.mrb[0].mxu0
    %v89 = vpop.f32.mrb[0].mxu0
    %v90 = vadd.f32 0.0, %v89
    %v91 = vpop.f32.mrb[0].mxu0
    %92 = vdwg.mxu0
    %v93 = vadd.f32 %v23, %v87
    %v94 = vadd.f32 %v24, %v90
    %vm95 = vcmask 130048
    %96 = vst.msk [vmem:[#allocation2] sm:$0xff] %vm95, %v93
    %97 = vst.msk [vmem:[#allocation2 + $0x8] sm:$0xff] %vm95, %v94
    // Predicated region
    $region18: #{transformer_decoder_forward.37} parent=1 // pred_check
      %p98 = pneg %p16
    $region19: #{transformer_decoder_forward.37} parent=1 // pred_check_branch
      %100 = sbr.rel (%p98) target = $region21
    $region20: #{transformer_decoder_forward.37} parent=1 // pred_region
      %v101 = vld [vmem:[#allocation2] sm:$0xff]
      %v102 = vld [vmem:[#allocation2 + $0x8] sm:$0xff]
      %v103 = vld [vmem:[%s2] sm:$0x1]
      %v105 = vlaneseq
      %v106 = vshrl.u32 %v105, 7
      %v107 = vsub.s32 0, %v106
      %v108 = vrot.slane %v103, %v107
      %v110 = vadd.f32 %v101, %v108
      %v111 = vadd.f32 %v102, %v108
      %112 = vst.msk [vmem:[#allocation3] sm:$0xff] %vm95, %v110
      %113 = vst.msk [vmem:[#allocation3 + $0x8] sm:$0xff] %vm95, %v111
    $region21: #{transformer_decoder_forward.37} parent=1 // pred_fallthru
      _
    // Predicated region
    $region22: #{transformer_decoder_forward.37} parent=1 // pred_check
      _
    $region23: #{transformer_decoder_forward.37} parent=1 // pred_check_branch
      %115 = sbr.rel (0) target = $region25
    $region24: #{transformer_decoder_forward.37} parent=1 // pred_region
      %s117 = ssub.s32 256, 256
      %118 = vsyncadd [#allocation4], %s117
      %s119 = sshll.u32 [#allocation3], 4
      %s120 = int_to_ptr.vmem [resolvable:$true] %s119
      %125 = dma.vmem_to_hbm [thread:$0]  %s120, 256, %s3, [#allocation4], 128, 128, 8
    $region25: #{transformer_decoder_forward.37} parent=1 // pred_fallthru
      _
    // Predicated region
    $region26: #{transformer_decoder_forward.37} parent=1 // pred_check
      _
    $region27: #{transformer_decoder_forward.37} parent=1 // pred_check_branch
      %127 = sbr.rel (0) target = $region29
    $region28: #{transformer_decoder_forward.37} parent=1 // pred_region
      %128 = dma.done [#allocation4], 256
    $region29: #{transformer_decoder_forward.37} parent=1 // pred_fallthru
      _
    %129 = vsyncpa [#allocation4], 1

</llo_original>
